<compile_context>
chip_gen: v5e
topology: v5e:2x2
jax: 0.10.0
libtpu: 0.0.40
codegen_flags: <defaults>
</compile_context>

<pallas_src>
import functools

import jax
import jax.numpy as jnp
from jax import lax
from jax.experimental import pallas as pl
from jax.experimental.pallas import tpu as pltpu


def _question_attention_kernel(ctx_ref, q_ref, wc_ref, wq_ref, b_ref, wa_ref,
                               out_ref, *, seq_len, per_token_question):
    """One grid step = TB batch rows of QuestionAttention.

    ctx_ref : (TB*S, 300)  flattened context tokens (MXU dtype, e.g. bf16)
    q_ref   : (TB, D)   f32   2-D question branch, or
              (TB*S, D) f32   per-token (3-D) question branch
    wc_ref  : (300, 2D) fused [W_tanh | W_sigmoid], context rows (MXU dtype)
    wq_ref  : (D, 2D)   fused [W_tanh | W_sigmoid], question rows (MXU dtype)
    b_ref   : (1, 2D)   f32 fused [b_tanh | b_sigmoid]
    wa_ref  : (1, D)    f32 attention projection weight (Linear(dim, 1))
    out_ref : (TB, D)   f32
    """
    TB, D = out_ref.shape
    S = seq_len
    TBS = TB * S
    NEG = jnp.float32(-1e30)

    # ---- fused tanh/sigmoid gate pre-activation: one big MXU matmul --------
    pre = jnp.dot(ctx_ref[...], wc_ref[...],
                  preferred_element_type=jnp.float32)               # (TB*S, 2D)

    if per_token_question:
        pre = pre + jnp.dot(q_ref[...].astype(wq_ref.dtype), wq_ref[...],
                            preferred_element_type=jnp.float32)
    else:
        # One (TB, 2D) row per batch element, broadcast over that batch's S
        # tokens via a one-hot "expander" matmul (keeps everything rank-2).
        g_q = jnp.dot(q_ref[...].astype(wq_ref.dtype), wq_ref[...],
                      preferred_element_type=jnp.float32)           # (TB, 2D)
        r = lax.broadcasted_iota(jnp.int32, (TBS, TB), 0)
        c0 = lax.broadcasted_iota(jnp.int32, (TBS, TB), 1) * S
        expander = ((r >= c0) & (r < c0 + S)).astype(jnp.float32)   # (TB*S, TB)
        pre = pre + jnp.dot(expander, g_q,
                            preferred_element_type=jnp.float32)

    pre = pre + b_ref[...]
    gate = jnp.tanh(pre[:, :D]) * jax.nn.sigmoid(pre[:, D:])        # (TB*S, D)

    # ---- attention logits, one per token, laid out along lanes -------------
    # (1, D) . (TB*S, D)^T  ->  (1, TB*S)   (q @ k.T style dot_general)
    logits = lax.dot_general(wa_ref[...], gate, (((1,), (1,)), ((), ())),
                             preferred_element_type=jnp.float32)    # (1, TB*S)
    # NOTE: the scalar attention bias `ba` is a constant logit offset; it
    # cancels exactly in the softmax, so it is not applied here.

    # ---- per-batch softmax over its S tokens (block-diagonal layout) -------
    col = lax.broadcasted_iota(jnp.int32, (TB, TBS), 1)
    row0 = lax.broadcasted_iota(jnp.int32, (TB, TBS), 0) * S
    own = (col >= row0) & (col < row0 + S)       # row b owns cols [b*S, b*S+S)
    masked = jnp.where(own, logits, NEG)                            # (TB, TB*S)
    m = jnp.max(masked, axis=-1, keepdims=True)                     # (TB, 1)
    e = jnp.exp(masked - m)                      # non-owned columns -> 0
    denom = jnp.sum(e, axis=-1, keepdims=True)                      # (TB, 1)
    attn = e * pl.reciprocal(denom, approx=False)                   # (TB, TB*S)

    if per_token_question:
        # attention-weighted sum of the per-token question: one MXU matmul.
        out_ref[...] = jnp.dot(attn, q_ref[...],
                               preferred_element_type=jnp.float32)  # (TB, D)
    else:
        # all S (expanded) question rows of one batch are identical, so the
        # weighted sum collapses to (sum of attention weights) * question.
        attn_sum = jnp.sum(attn, axis=-1, keepdims=True)            # (TB, 1)
        out_ref[...] = attn_sum * q_ref[...]


@functools.partial(jax.jit, static_argnames=("block_b", "mxu_dtype"))
def question_attention(context, question, wt, bt, ws, bs, wa, ba,
                       *, block_b=8, mxu_dtype=jnp.bfloat16):
    """JAX/Pallas equivalent of QuestionAttention.forward.

    context  : (B, S, 300) f32
    question : (B, D) f32 (module expands over the S tokens) or (B, S, D) f32
    wt, ws   : (300 + D, D) gate weights, stored transposed (x @ W layout)
    bt, bs   : (D,) gate biases;  wa : (D,) attn weight;  ba : (1,) attn bias
    returns  : (B, D) f32  (PyTorch's .squeeze() would give (D,) for B == 1)
    """
    B, S, C = context.shape
    D = wt.shape[1]
    per_token = question.ndim == 3

    # fused [tanh | sigmoid] gate weights, split into context / question rows
    w_ctx = jnp.concatenate([wt[:C], ws[:C]], axis=1).astype(mxu_dtype)  # (C, 2D)
    w_q = jnp.concatenate([wt[C:], ws[C:]], axis=1).astype(mxu_dtype)    # (D, 2D)
    b_fused = jnp.concatenate([bt, bs]).reshape(1, 2 * D).astype(jnp.float32)
    wa2 = wa.reshape(1, D).astype(jnp.float32)
    del ba  # constant logit offset; cancels exactly in the softmax

    TB = block_b                    # batch rows per grid step
    assert TB % 8 == 0, "block_b must be a multiple of 8 (sublane alignment)"
    B_pad = -(-B // TB) * TB
    grid = (B_pad // TB,)

    ctx = context.astype(mxu_dtype)
    if B_pad != B:
        ctx = jnp.pad(ctx, ((0, B_pad - B), (0, 0), (0, 0)))
    ctx_flat = ctx.reshape(B_pad * S, C)          # free row-major reshape

    q = question.astype(jnp.float32)
    if per_token:
        if B_pad != B:
            q = jnp.pad(q, ((0, B_pad - B), (0, 0), (0, 0)))
        q_in = q.reshape(B_pad * S, D)
        q_spec = pl.BlockSpec((TB * S, D), lambda b: (b, 0))
    else:
        if B_pad != B:
            q = jnp.pad(q, ((0, B_pad - B), (0, 0)))
        q_in = q
        q_spec = pl.BlockSpec((TB, D), lambda b: (b, 0))

    kernel = functools.partial(_question_attention_kernel,
                               seq_len=S, per_token_question=per_token)

    out = pl.pallas_call(
        kernel,
        out_shape=jax.ShapeDtypeStruct((B_pad, D), jnp.float32),
        grid_spec=pltpu.PrefetchScalarGridSpec(
            num_scalar_prefetch=0,
            grid=grid,
            in_specs=[
                pl.BlockSpec((TB * S, C), lambda b: (b, 0)),  # context tokens
                q_spec,                                       # question
                pl.BlockSpec((C, 2 * D), lambda b: (0, 0)),   # gate W (ctx rows)
                pl.BlockSpec((D, 2 * D), lambda b: (0, 0)),   # gate W (question rows)
                pl.BlockSpec((1, 2 * D), lambda b: (0, 0)),   # gate bias
                pl.BlockSpec((1, D), lambda b: (0, 0)),       # attention weight
            ],
            out_specs=pl.BlockSpec((TB, D), lambda b: (b, 0)),
        ),
        compiler_params=pltpu.CompilerParams(
            dimension_semantics=("parallel",)),
    )(ctx_flat, q_in, w_ctx, w_q, b_fused, wa2)

    if B_pad != B:
        out = out[:B]
    return out


def _xavier_uniform(key, fan_in, fan_out):
    bound = (6.0 / (fan_in + fan_out)) ** 0.5
    # Stored already transposed: (in, out), so the model does x @ W.
    return jax.random.uniform(key, (fan_in, fan_out), dtype=jnp.float32,
                              minval=-bound, maxval=bound)


def _reference(context, question, wt, bt, ws, bs, wa, ba):
    """Pure-JAX (XLA) transcription of QuestionAttention.forward."""
    if question.ndim == 2:
        question = jnp.broadcast_to(
            question[:, None, :],
            (question.shape[0], context.shape[1], question.shape[1]))
    cat = jnp.concatenate([context, question], axis=-1)
    g = jnp.tanh(cat @ wt + bt) * jax.nn.sigmoid(cat @ ws + bs)
    a = (g @ wa.reshape(-1, 1) + ba)[..., 0]            # (B, S)
    attn = jax.nn.softmax(a, axis=1)
    return jnp.einsum("bs,bsd->bd", attn, question)


if __name__ == "__main__":
    dim = 32          # QuestionAttention(dim)
    ctx_feat = 300    # hard-coded in the module (cat dim = 300 + dim)
    B, S = 2, 77      # the 2-D question branch expands to 77 tokens

    key = jax.random.PRNGKey(0)
    k_ctx, k_q, k_q3, k_wt, k_ws, k_wa = jax.random.split(key, 6)

    context = jax.random.normal(k_ctx, (B, S, ctx_feat), dtype=jnp.float32)
    question_2d = jax.random.normal(k_q, (B, dim), dtype=jnp.float32)
    question_3d = jax.random.normal(k_q3, (B, S, dim), dtype=jnp.float32)

    wt = _xavier_uniform(k_wt, ctx_feat + dim, dim)
    bt = jnp.zeros((dim,), jnp.float32)
    ws = _xavier_uniform(k_ws, ctx_feat + dim, dim)
    bs = jnp.zeros((dim,), jnp.float32)
    wa = _xavier_uniform(k_wa, dim, 1).reshape(dim)      # attn: Linear(dim, 1)
    ba = jnp.zeros((1,), jnp.float32)

    # --- 2-D question branch (the module's main path) -----------------------
    out2 = question_attention(context, question_2d, wt, bt, ws, bs, wa, ba)
    out2 = jax.block_until_ready(out2)
    ref2 = _reference(context, question_2d, wt, bt, ws, bs, wa, ba)
    assert out2.shape == (B, dim)
    assert jnp.allclose(out2, ref2, atol=1e-4, rtol=1e-4), "2-D branch mismatch"

    # --- 3-D (per-token) question branch ------------------------------------
    out3 = question_attention(context, question_3d, wt, bt, ws, bs, wa, ba)
    out3 = jax.block_until_ready(out3)
    ref3 = _reference(context, question_3d, wt, bt, ws, bs, wa, ba)
    assert out3.shape == (B, dim)
    # bf16 MXU inputs (f32 accumulation) vs. the pure-f32 reference.
    assert jnp.allclose(out3, ref3, atol=2e-2, rtol=2e-2), "3-D branch mismatch"

    print("KERNEL_OK")
</pallas_src>

<mosaic_0001>
module attributes {stable_mosaic.version = 11 : i64} {
  func.func @_question_attention_kernel(%arg0: i32, %arg1: memref<616x300xbf16, #tpu.memory_space<vmem>>, %arg2: memref<8x32xf32, #tpu.memory_space<vmem>>, %arg3: memref<300x64xbf16, #tpu.memory_space<vmem>>, %arg4: memref<32x64xbf16, #tpu.memory_space<vmem>>, %arg5: memref<1x64xf32, #tpu.memory_space<vmem>>, %arg6: memref<1x32xf32, #tpu.memory_space<vmem>>, %arg7: memref<8x32xf32, #tpu.memory_space<vmem>>) attributes {dimension_semantics = [#tpu.dimension_semantics<parallel>], iteration_bounds = array<i64: 1>, scalar_prefetch = 0 : i64, scratch_operands = 0 : i64, tpu.core_type = #tpu.core_type<tc>, window_params = [{transform_indices = @transform_0, window_bounds = array<i64: 616, 300>}, {transform_indices = @transform_1, window_bounds = array<i64: 8, 32>}, {pipeline_mode = #tpu.pipeline_mode<synchronous>, transform_indices = @transform_2, window_bounds = array<i64: 300, 64>}, {pipeline_mode = #tpu.pipeline_mode<synchronous>, transform_indices = @transform_3, window_bounds = array<i64: 32, 64>}, {pipeline_mode = #tpu.pipeline_mode<synchronous>, transform_indices = @transform_4, window_bounds = array<i64: 1, 64>}, {pipeline_mode = #tpu.pipeline_mode<synchronous>, transform_indices = @transform_5, window_bounds = array<i64: 1, 32>}, {transform_indices = @transform_6, window_bounds = array<i64: 8, 32>}]} {
    %c0 = arith.constant 0 : index
    %c0_0 = arith.constant 0 : index
    %0 = vector.load %arg1[%c0, %c0_0] : memref<616x300xbf16, #tpu.memory_space<vmem>>, vector<616x300xbf16>
    %c0_1 = arith.constant 0 : index
    %c0_2 = arith.constant 0 : index
    %1 = vector.load %arg3[%c0_1, %c0_2] : memref<300x64xbf16, #tpu.memory_space<vmem>>, vector<300x64xbf16>
    %cst = arith.constant dense<0.000000e+00> : vector<616x64xf32>
    %2 = tpu.matmul %0, %1, %cst {dimension_numbers = #tpu.dot_dimension_numbers<[1], [0], [0], [1], [0, 0, 1, 1], [], []>} : vector<616x300xbf16>, vector<300x64xbf16>, vector<616x64xf32> -> vector<616x64xf32>
    %c0_3 = arith.constant 0 : index
    %c0_4 = arith.constant 0 : index
    %3 = vector.load %arg2[%c0_3, %c0_4] : memref<8x32xf32, #tpu.memory_space<vmem>>, vector<8x32xf32>
    %4 = arith.truncf %3 : vector<8x32xf32> to vector<8x32xbf16>
    %c0_5 = arith.constant 0 : index
    %c0_6 = arith.constant 0 : index
    %5 = vector.load %arg4[%c0_5, %c0_6] : memref<32x64xbf16, #tpu.memory_space<vmem>>, vector<32x64xbf16>
    %cst_7 = arith.constant dense<0.000000e+00> : vector<8x64xf32>
    %6 = tpu.matmul %4, %5, %cst_7 {dimension_numbers = #tpu.dot_dimension_numbers<[1], [0], [0], [1], [0, 0, 1, 1], [], []>} : vector<8x32xbf16>, vector<32x64xbf16>, vector<8x64xf32> -> vector<8x64xf32>
    %7 = tpu.iota {dimensions = array<i32: 0>} : vector<616x8xi32>
    %8 = tpu.iota {dimensions = array<i32: 1>} : vector<616x8xi32>
    %c77_i32 = arith.constant 77 : i32
    %9 = vector.broadcast %c77_i32 : i32 to vector<616x8xi32>
    %10 = arith.muli %8, %9 : vector<616x8xi32>
    %11 = arith.cmpi sge, %7, %10 : vector<616x8xi32>
    %c77_i32_8 = arith.constant 77 : i32
    %12 = vector.broadcast %c77_i32_8 : i32 to vector<616x8xi32>
    %13 = arith.addi %10, %12 : vector<616x8xi32>
    %14 = arith.cmpi slt, %7, %13 : vector<616x8xi32>
    %15 = arith.andi %11, %14 : vector<616x8xi1>
    %16 = arith.extui %15 : vector<616x8xi1> to vector<616x8xi32>
    %17 = arith.sitofp %16 : vector<616x8xi32> to vector<616x8xf32>
    %cst_9 = arith.constant dense<0.000000e+00> : vector<616x64xf32>
    %18 = tpu.matmul %17, %6, %cst_9 {dimension_numbers = #tpu.dot_dimension_numbers<[1], [0], [0], [1], [0, 0, 1, 1], [], []>} : vector<616x8xf32>, vector<8x64xf32>, vector<616x64xf32> -> vector<616x64xf32>
    %19 = arith.addf %2, %18 : vector<616x64xf32>
    %c0_10 = arith.constant 0 : index
    %c0_11 = arith.constant 0 : index
    %20 = vector.load %arg5[%c0_10, %c0_11] : memref<1x64xf32, #tpu.memory_space<vmem>>, vector<1x64xf32>
    %21 = vector.broadcast %20 : vector<1x64xf32> to vector<616x64xf32>
    %22 = arith.addf %19, %21 : vector<616x64xf32>
    %23 = vector.extract_strided_slice %22 {offsets = [0, 0], sizes = [616, 32], strides = [1, 1]} : vector<616x64xf32> to vector<616x32xf32>
    %24 = math.tanh %23 : vector<616x32xf32>
    %25 = vector.extract_strided_slice %22 {offsets = [0, 32], sizes = [616, 32], strides = [1, 1]} : vector<616x64xf32> to vector<616x32xf32>
    %26 = arith.negf %25 : vector<616x32xf32>
    %27 = math.exp %26 : vector<616x32xf32>
    %cst_12 = arith.constant 1.000000e+00 : f32
    %28 = vector.broadcast %cst_12 : f32 to vector<616x32xf32>
    %29 = arith.addf %28, %27 : vector<616x32xf32>
    %30 = arith.divf %28, %29 : vector<616x32xf32>
    %31 = arith.mulf %24, %30 : vector<616x32xf32>
    %c0_13 = arith.constant 0 : index
    %c0_14 = arith.constant 0 : index
    %32 = vector.load %arg6[%c0_13, %c0_14] : memref<1x32xf32, #tpu.memory_space<vmem>>, vector<1x32xf32>
    %cst_15 = arith.constant dense<0.000000e+00> : vector<1x616xf32>
    %33 = tpu.matmul %32, %31, %cst_15 {dimension_numbers = #tpu.dot_dimension_numbers<[1], [1], [0], [0], [0, 0, 1, 0], [], []>} : vector<1x32xf32>, vector<616x32xf32>, vector<1x616xf32> -> vector<1x616xf32>
    %34 = tpu.iota {dimensions = array<i32: 1>} : vector<8x616xi32>
    %35 = tpu.iota {dimensions = array<i32: 0>} : vector<8x616xi32>
    %c77_i32_16 = arith.constant 77 : i32
    %36 = vector.broadcast %c77_i32_16 : i32 to vector<8x616xi32>
    %37 = arith.muli %35, %36 : vector<8x616xi32>
    %38 = arith.cmpi sge, %34, %37 : vector<8x616xi32>
    %c77_i32_17 = arith.constant 77 : i32
    %39 = vector.broadcast %c77_i32_17 : i32 to vector<8x616xi32>
    %40 = arith.addi %37, %39 : vector<8x616xi32>
    %41 = arith.cmpi slt, %34, %40 : vector<8x616xi32>
    %42 = arith.andi %38, %41 : vector<8x616xi1>
    %cst_18 = arith.constant -1.000000e+30 : f32
    %43 = vector.shape_cast %33 : vector<1x616xf32> to vector<1x616xf32>
    %44 = vector.broadcast %43 : vector<1x616xf32> to vector<8x616xf32>
    %45 = vector.broadcast %cst_18 : f32 to vector<8x616xf32>
    %46 = arith.select %42, %44, %45 : vector<8x616xi1>, vector<8x616xf32>
    %cst_19 = arith.constant dense<0xFF800000> : vector<8xf32>
    %47 = vector.multi_reduction <maximumf>, %46, %cst_19 [1] : vector<8x616xf32> to vector<8xf32>
    %48 = vector.shape_cast %47 : vector<8xf32> to vector<8x1xf32>
    %49 = vector.broadcast %48 : vector<8x1xf32> to vector<8x616xf32>
    %50 = arith.subf %46, %49 : vector<8x616xf32>
    %51 = math.exp %50 : vector<8x616xf32>
    %cst_20 = arith.constant dense<0.000000e+00> : vector<8xf32>
    %52 = vector.multi_reduction <add>, %51, %cst_20 [1] : vector<8x616xf32> to vector<8xf32>
    %53 = vector.shape_cast %52 : vector<8xf32> to vector<8x1xf32>
    %54 = tpu.reciprocal %53 : vector<8x1xf32> -> vector<8x1xf32>
    %55 = vector.broadcast %54 : vector<8x1xf32> to vector<8x616xf32>
    %56 = arith.mulf %51, %55 : vector<8x616xf32>
    %cst_21 = arith.constant dense<0.000000e+00> : vector<8xf32>
    %57 = vector.multi_reduction <add>, %56, %cst_21 [1] : vector<8x616xf32> to vector<8xf32>
    %58 = vector.shape_cast %57 : vector<8xf32> to vector<8x1xf32>
    %c0_22 = arith.constant 0 : index
    %c0_23 = arith.constant 0 : index
    %59 = vector.load %arg2[%c0_22, %c0_23] : memref<8x32xf32, #tpu.memory_space<vmem>>, vector<8x32xf32>
    %60 = vector.broadcast %58 : vector<8x1xf32> to vector<8x32xf32>
    %61 = arith.mulf %60, %59 : vector<8x32xf32>
    %c0_24 = arith.constant 0 : index
    %c0_25 = arith.constant 0 : index
    %62 = vector.load %arg7[%c0_24, %c0_25] : memref<8x32xf32, #tpu.memory_space<vmem>>, vector<8x32xf32>
    tpu.vector_store %arg7[%c0_24, %c0_25], %61 {strides = array<i32>} : memref<8x32xf32, #tpu.memory_space<vmem>>, vector<8x32xf32>,
    return
  }
  func.func @transform_0(%arg0: i32) -> (i32, i32) {
    %c0_i32 = arith.constant 0 : i32
    %c0_i32_0 = arith.constant 0 : i32
    return %arg0, %c0_i32 : i32, i32
  }
  func.func @transform_1(%arg0: i32) -> (i32, i32) {
    %c0_i32 = arith.constant 0 : i32
    %c0_i32_0 = arith.constant 0 : i32
    return %arg0, %c0_i32 : i32, i32
  }
  func.func @transform_2(%arg0: i32) -> (i32, i32) {
    %c0_i32 = arith.constant 0 : i32
    %c0_i32_0 = arith.constant 0 : i32
    %c0_i32_1 = arith.constant 0 : i32
    return %c0_i32, %c0_i32_0 : i32, i32
  }
  func.func @transform_3(%arg0: i32) -> (i32, i32) {
    %c0_i32 = arith.constant 0 : i32
    %c0_i32_0 = arith.constant 0 : i32
    %c0_i32_1 = arith.constant 0 : i32
    return %c0_i32, %c0_i32_0 : i32, i32
  }
  func.func @transform_4(%arg0: i32) -> (i32, i32) {
    %c0_i32 = arith.constant 0 : i32
    %c0_i32_0 = arith.constant 0 : i32
    %c0_i32_1 = arith.constant 0 : i32
    return %c0_i32, %c0_i32_0 : i32, i32
  }
  func.func @transform_5(%arg0: i32) -> (i32, i32) {
    %c0_i32 = arith.constant 0 : i32
    %c0_i32_0 = arith.constant 0 : i32
    %c0_i32_1 = arith.constant 0 : i32
    return %c0_i32, %c0_i32_0 : i32, i32
  }
  func.func @transform_6(%arg0: i32) -> (i32, i32) {
    %c0_i32 = arith.constant 0 : i32
    %c0_i32_0 = arith.constant 0 : i32
    return %arg0, %c0_i32 : i32, i32
  }
}

</mosaic_0001>

<llo_original>
// kernel: question_attention.1
$region0: #{question_attention.1}
  #allocation0 [shape = 'u32[]', space=smem, size = 0x4, offset = 0x4, fixed_abs, tag = 'smem constant byte address 0x4 - core index']
  #allocation1 [shape = 'u32[72,128]{1,0:T(1,128)}', space=vmem, size = 0x9000, scoped, tag = 'internal scratch']
  %s0 = inlined_call_operand.vmem [shape: bf16[616,300], index: 0, kind: input, shape index: {}]
  %s1 = inlined_call_operand.vmem [shape: f32[8,32], index: 1, kind: input, shape index: {}]
  %s2 = inlined_call_operand.vmem [shape: bf16[300,64], index: 2, kind: input, shape index: {}]
  %s3 = inlined_call_operand.vmem [shape: bf16[32,64], index: 3, kind: input, shape index: {}]
  %s4 = inlined_call_operand.vmem [shape: f32[1,64], index: 4, kind: input, shape index: {}]
  %s5 = inlined_call_operand.vmem [shape: f32[1,32], index: 5, kind: input, shape index: {}]
  %s6 = inlined_call_operand.vmem [shape: f32[8,32], index: 6, kind: output, shape index: {}]
  %s7 = sld [smem:[#allocation0]]
  $region34: #{question_attention.1} parent=0
    _
  %s9 = ssub.s32 1, %s7
  %s10 = scalar_select 0, %s9, %s7
  // Predicated region
  $region2: #{question_attention.1} parent=0 // pred_check
    _
  $region3: #{question_attention.1} parent=0 // pred_check_branch
    %12 = sbr.rel (0) target = $region5
  $region4: #{question_attention.1} parent=0 // pred_region
    _
  $region5: #{question_attention.1} parent=0 // pred_fallthru
    _
  // Predicated region
  $region6: #{question_attention.1} parent=0 // pred_check
    _
  $region7: #{question_attention.1} parent=0 // pred_check_branch
    %14 = sbr.rel (0) target = $region9
  $region8: #{question_attention.1} parent=0 // pred_region
    _
  $region9: #{question_attention.1} parent=0 // pred_fallthru
    _
  // Predicated region
  $region10: #{question_attention.1} parent=0 // pred_check
    _
  $region11: #{question_attention.1} parent=0 // pred_check_branch
    %16 = sbr.rel (0) target = $region13
  $region12: #{question_attention.1} parent=0 // pred_region
    _
  $region13: #{question_attention.1} parent=0 // pred_fallthru
    _
  // Predicated region
  $region14: #{question_attention.1} parent=0 // pred_check
    _
  $region15: #{question_attention.1} parent=0 // pred_check_branch
    %18 = sbr.rel (0) target = $region17
  $region16: #{question_attention.1} parent=0 // pred_region
    _
  $region17: #{question_attention.1} parent=0 // pred_fallthru
    _
  // Predicated region
  $region18: #{question_attention.1} parent=0 // pred_check
    _
  $region19: #{question_attention.1} parent=0 // pred_check_branch
    %20 = sbr.rel (0) target = $region21
  $region20: #{question_attention.1} parent=0 // pred_region
    _
  $region21: #{question_attention.1} parent=0 // pred_fallthru
    _
  // Predicated region
  $region22: #{question_attention.1} parent=0 // pred_check
    _
  $region23: #{question_attention.1} parent=0 // pred_check_branch
    %22 = sbr.rel (0) target = $region25
  $region24: #{question_attention.1} parent=0 // pred_region
    _
  $region25: #{question_attention.1} parent=0 // pred_fallthru
    _
  %v24 = vld [vmem:[%s0] sm:$0xff]
  %v25 = vld [vmem:[%s0 + $0x8] sm:$0xf]
  %v26 = vld [vmem:[%s0 + $0xc] sm:$0xff]
  %v27 = vld [vmem:[%s0 + $0x14] sm:$0xf]
  %v28 = vld [vmem:[%s0 + $0x18] sm:$0xff]
  %v29 = vld [vmem:[%s0 + $0x20] sm:$0xf]
  %v30 = vld [vmem:[%s0 + $0x24] sm:$0xff]
  %v31 = vld [vmem:[%s0 + $0x2c] sm:$0xf]
  %v32 = vld [vmem:[%s0 + $0x30] sm:$0xff]
  %v33 = vld [vmem:[%s0 + $0x38] sm:$0xf]
  %v34 = vld [vmem:[%s0 + $0x3c] sm:$0xff]
  %v35 = vld [vmem:[%s0 + $0x44] sm:$0xf]
  %v36 = vld [vmem:[%s0 + $0x48] sm:$0xff]
  %v37 = vld [vmem:[%s0 + $0x50] sm:$0xf]
  %v38 = vld [vmem:[%s0 + $0x54] sm:$0xff]
  %v39 = vld [vmem:[%s0 + $0x5c] sm:$0xf]
  %v40 = vld [vmem:[%s0 + $0x60] sm:$0xff]
  %v41 = vld [vmem:[%s0 + $0x68] sm:$0xf]
  %v42 = vld [vmem:[%s0 + $0x6c] sm:$0xff]
  %v43 = vld [vmem:[%s0 + $0x74] sm:$0xf]
  %v44 = vld [vmem:[%s0 + $0x78] sm:$0xff]
  %v45 = vld [vmem:[%s0 + $0x80] sm:$0xf]
  %v46 = vld [vmem:[%s0 + $0x84] sm:$0xff]
  %v47 = vld [vmem:[%s0 + $0x8c] sm:$0xf]
  %v48 = vld [vmem:[%s0 + $0x90] sm:$0xff]
  %v49 = vld [vmem:[%s0 + $0x98] sm:$0xf]
  %v50 = vld [vmem:[%s0 + $0x9c] sm:$0xff]
  %v51 = vld [vmem:[%s0 + $0xa4] sm:$0xf]
  %v52 = vld [vmem:[%s0 + $0xa8] sm:$0xff]
  %v53 = vld [vmem:[%s0 + $0xb0] sm:$0xf]
  %v54 = vld [vmem:[%s0 + $0xb4] sm:$0xff]
  %v55 = vld [vmem:[%s0 + $0xbc] sm:$0xf]
  %v56 = vld [vmem:[%s0 + $0xc0] sm:$0xff]
  %v57 = vld [vmem:[%s0 + $0xc8] sm:$0xf]
  %v58 = vld [vmem:[%s0 + $0xcc] sm:$0xff]
  %v59 = vld [vmem:[%s0 + $0xd4] sm:$0xf]
  %v60 = vld [vmem:[%s0 + $0xd8] sm:$0xff]
  %v61 = vld [vmem:[%s0 + $0xe0] sm:$0xf]
  %v62 = vld [vmem:[%s0 + $0xe4] sm:$0xff]
  %v63 = vld [vmem:[%s0 + $0xec] sm:$0xf]
  %v64 = vld [vmem:[%s0 + $0xf0] sm:$0xff]
  %v65 = vld [vmem:[%s0 + $0xf8] sm:$0xf]
  %v66 = vld [vmem:[%s0 + $0xfc] sm:$0xff]
  %v67 = vld [vmem:[%s0 + $0x104] sm:$0xf]
  %v68 = vld [vmem:[%s0 + $0x108] sm:$0xff]
  %v69 = vld [vmem:[%s0 + $0x110] sm:$0xf]
  %v70 = vld [vmem:[%s0 + $0x114] sm:$0xff]
  %v71 = vld [vmem:[%s0 + $0x11c] sm:$0xf]
  %v72 = vld [vmem:[%s0 + $0x120] sm:$0xff]
  %v73 = vld [vmem:[%s0 + $0x128] sm:$0xf]
  %v74 = vld [vmem:[%s0 + $0x12c] sm:$0xff]
  %v75 = vld [vmem:[%s0 + $0x134] sm:$0xf]
  %v76 = vld [vmem:[%s0 + $0x138] sm:$0xff]
  %v77 = vld [vmem:[%s0 + $0x140] sm:$0xf]
  %v78 = vld [vmem:[%s0 + $0x144] sm:$0xff]
  %v79 = vld [vmem:[%s0 + $0x14c] sm:$0xf]
  %v80 = vld [vmem:[%s0 + $0x150] sm:$0xff]
  %v81 = vld [vmem:[%s0 + $0x158] sm:$0xf]
  %v82 = vld [vmem:[%s0 + $0x15c] sm:$0xff]
  %v83 = vld [vmem:[%s0 + $0x164] sm:$0xf]
  %v84 = vld [vmem:[%s0 + $0x168] sm:$0xff]
  %v85 = vld [vmem:[%s0 + $0x170] sm:$0xf]
  %v86 = vld [vmem:[%s0 + $0x174] sm:$0xff]
  %v87 = vld [vmem:[%s0 + $0x17c] sm:$0xf]
  %v88 = vld [vmem:[%s0 + $0x180] sm:$0xff]
  %v89 = vld [vmem:[%s0 + $0x188] sm:$0xf]
  %v90 = vld [vmem:[%s0 + $0x18c] sm:$0xff]
  %v91 = vld [vmem:[%s0 + $0x194] sm:$0xf]
  %v92 = vld [vmem:[%s0 + $0x198] sm:$0xff]
  %v93 = vld [vmem:[%s0 + $0x1a0] sm:$0xf]
  %v94 = vld [vmem:[%s0 + $0x1a4] sm:$0xff]
  %v95 = vld [vmem:[%s0 + $0x1ac] sm:$0xf]
  %v96 = vld [vmem:[%s0 + $0x1b0] sm:$0xff]
  %v97 = vld [vmem:[%s0 + $0x1b8] sm:$0xf]
  %v98 = vld [vmem:[%s0 + $0x1bc] sm:$0xff]
  %v99 = vld [vmem:[%s0 + $0x1c4] sm:$0xf]
  %v100 = vld [vmem:[%s0 + $0x1c8] sm:$0xff]
  %v101 = vld [vmem:[%s0 + $0x1d0] sm:$0xf]
  %v102 = vld [vmem:[%s0 + $0x1d4] sm:$0xff]
  %v103 = vld [vmem:[%s0 + $0x1dc] sm:$0xf]
  %v104 = vld [vmem:[%s0 + $0x1e0] sm:$0xff]
  %v105 = vld [vmem:[%s0 + $0x1e8] sm:$0xf]
  %v106 = vld [vmem:[%s0 + $0x1ec] sm:$0xff]
  %v107 = vld [vmem:[%s0 + $0x1f4] sm:$0xf]
  %v108 = vld [vmem:[%s0 + $0x1f8] sm:$0xff]
  %v109 = vld [vmem:[%s0 + $0x200] sm:$0xf]
  %v110 = vld [vmem:[%s0 + $0x204] sm:$0xff]
  %v111 = vld [vmem:[%s0 + $0x20c] sm:$0xf]
  %v112 = vld [vmem:[%s0 + $0x210] sm:$0xff]
  %v113 = vld [vmem:[%s0 + $0x218] sm:$0xf]
  %v114 = vld [vmem:[%s0 + $0x21c] sm:$0xff]
  %v115 = vld [vmem:[%s0 + $0x224] sm:$0xf]
  %v116 = vld [vmem:[%s0 + $0x228] sm:$0xff]
  %v117 = vld [vmem:[%s0 + $0x230] sm:$0xf]
  %v118 = vld [vmem:[%s0 + $0x234] sm:$0xff]
  %v119 = vld [vmem:[%s0 + $0x23c] sm:$0xf]
  %v120 = vld [vmem:[%s0 + $0x240] sm:$0xff]
  %v121 = vld [vmem:[%s0 + $0x248] sm:$0xf]
  %v122 = vld [vmem:[%s0 + $0x24c] sm:$0xff]
  %v123 = vld [vmem:[%s0 + $0x254] sm:$0xf]
  %v124 = vld [vmem:[%s0 + $0x258] sm:$0xff]
  %v125 = vld [vmem:[%s0 + $0x260] sm:$0xf]
  %v126 = vld [vmem:[%s0 + $0x264] sm:$0xff]
  %v127 = vld [vmem:[%s0 + $0x26c] sm:$0xf]
  %v128 = vld [vmem:[%s0 + $0x270] sm:$0xff]
  %v129 = vld [vmem:[%s0 + $0x278] sm:$0xf]
  %v130 = vld [vmem:[%s0 + $0x27c] sm:$0xff]
  %v131 = vld [vmem:[%s0 + $0x284] sm:$0xf]
  %v132 = vld [vmem:[%s0 + $0x288] sm:$0xff]
  %v133 = vld [vmem:[%s0 + $0x290] sm:$0xf]
  %v134 = vld [vmem:[%s0 + $0x294] sm:$0xff]
  %v135 = vld [vmem:[%s0 + $0x29c] sm:$0xf]
  %v136 = vld [vmem:[%s0 + $0x2a0] sm:$0xff]
  %v137 = vld [vmem:[%s0 + $0x2a8] sm:$0xf]
  %v138 = vld [vmem:[%s0 + $0x2ac] sm:$0xff]
  %v139 = vld [vmem:[%s0 + $0x2b4] sm:$0xf]
  %v140 = vld [vmem:[%s0 + $0x2b8] sm:$0xff]
  %v141 = vld [vmem:[%s0 + $0x2c0] sm:$0xf]
  %v142 = vld [vmem:[%s0 + $0x2c4] sm:$0xff]
  %v143 = vld [vmem:[%s0 + $0x2cc] sm:$0xf]
  %v144 = vld [vmem:[%s0 + $0x2d0] sm:$0xff]
  %v145 = vld [vmem:[%s0 + $0x2d8] sm:$0xf]
  %v146 = vld [vmem:[%s0 + $0x2dc] sm:$0xff]
  %v147 = vld [vmem:[%s0 + $0x2e4] sm:$0xf]
  %v148 = vld [vmem:[%s0 + $0x2e8] sm:$0xff]
  %v149 = vld [vmem:[%s0 + $0x2f0] sm:$0xf]
  %v150 = vld [vmem:[%s0 + $0x2f4] sm:$0xff]
  %v151 = vld [vmem:[%s0 + $0x2fc] sm:$0xf]
  %v152 = vld [vmem:[%s0 + $0x300] sm:$0xff]
  %v153 = vld [vmem:[%s0 + $0x308] sm:$0xf]
  %v154 = vld [vmem:[%s0 + $0x30c] sm:$0xff]
  %v155 = vld [vmem:[%s0 + $0x314] sm:$0xf]
  %v156 = vld [vmem:[%s0 + $0x318] sm:$0xff]
  %v157 = vld [vmem:[%s0 + $0x320] sm:$0xf]
  %v158 = vld [vmem:[%s0 + $0x324] sm:$0xff]
  %v159 = vld [vmem:[%s0 + $0x32c] sm:$0xf]
  %v160 = vld [vmem:[%s0 + $0x330] sm:$0xff]
  %v161 = vld [vmem:[%s0 + $0x338] sm:$0xf]
  %v162 = vld [vmem:[%s0 + $0x33c] sm:$0xff]
  %v163 = vld [vmem:[%s0 + $0x344] sm:$0xf]
  %v164 = vld [vmem:[%s0 + $0x348] sm:$0xff]
  %v165 = vld [vmem:[%s0 + $0x350] sm:$0xf]
  %v166 = vld [vmem:[%s0 + $0x354] sm:$0xff]
  %v167 = vld [vmem:[%s0 + $0x35c] sm:$0xf]
  %v168 = vld [vmem:[%s0 + $0x360] sm:$0xff]
  %v169 = vld [vmem:[%s0 + $0x368] sm:$0xf]
  %v170 = vld [vmem:[%s0 + $0x36c] sm:$0xff]
  %v171 = vld [vmem:[%s0 + $0x374] sm:$0xf]
  %v172 = vld [vmem:[%s0 + $0x378] sm:$0xff]
  %v173 = vld [vmem:[%s0 + $0x380] sm:$0xf]
  %v174 = vld [vmem:[%s0 + $0x384] sm:$0xff]
  %v175 = vld [vmem:[%s0 + $0x38c] sm:$0xf]
  %v176 = vld [vmem:[%s0 + $0x390] sm:$0xff]
  %v177 = vld [vmem:[%s0 + $0x398] sm:$0xf]
  %v178 = vld [vmem:[%s2] sm:$0xf]
  %v179 = vld [vmem:[%s2 + $0x4] sm:$0xf]
  %v180 = vld [vmem:[%s2 + $0x8] sm:$0xf]
  %v181 = vld [vmem:[%s2 + $0xc] sm:$0xf]
  %v182 = vld [vmem:[%s2 + $0x10] sm:$0xf]
  %v183 = vld [vmem:[%s2 + $0x14] sm:$0xf]
  %v184 = vld [vmem:[%s2 + $0x18] sm:$0xf]
  %v185 = vld [vmem:[%s2 + $0x1c] sm:$0xf]
  %v186 = vld [vmem:[%s2 + $0x20] sm:$0xf]
  %v187 = vld [vmem:[%s2 + $0x24] sm:$0xf]
  %v188 = vld [vmem:[%s2 + $0x28] sm:$0xf]
  %v189 = vld [vmem:[%s2 + $0x2c] sm:$0xf]
  %v190 = vld [vmem:[%s2 + $0x30] sm:$0xf]
  %v191 = vld [vmem:[%s2 + $0x34] sm:$0xf]
  %v192 = vld [vmem:[%s2 + $0x38] sm:$0xf]
  %v193 = vld [vmem:[%s2 + $0x3c] sm:$0xf]
  %v194 = vld [vmem:[%s2 + $0x40] sm:$0xf]
  %v195 = vld [vmem:[%s2 + $0x44] sm:$0xf]
  %v196 = vld [vmem:[%s2 + $0x48] sm:$0xf]
  %v197 = vld [vmem:[%s2 + $0x4c] sm:$0xf]
  %v198 = vld [vmem:[%s2 + $0x50] sm:$0xf]
  %v199 = vld [vmem:[%s2 + $0x54] sm:$0xf]
  %v200 = vld [vmem:[%s2 + $0x58] sm:$0xf]
  %v201 = vld [vmem:[%s2 + $0x5c] sm:$0xf]
  %v202 = vld [vmem:[%s2 + $0x60] sm:$0xf]
  %v203 = vld [vmem:[%s2 + $0x64] sm:$0xf]
  %v204 = vld [vmem:[%s2 + $0x68] sm:$0xf]
  %v205 = vld [vmem:[%s2 + $0x6c] sm:$0xf]
  %v206 = vld [vmem:[%s2 + $0x70] sm:$0xf]
  %v207 = vld [vmem:[%s2 + $0x74] sm:$0xf]
  %v208 = vld [vmem:[%s2 + $0x78] sm:$0xf]
  %v209 = vld [vmem:[%s2 + $0x7c] sm:$0xf]
  %v210 = vld [vmem:[%s2 + $0x80] sm:$0xf]
  %v211 = vld [vmem:[%s2 + $0x84] sm:$0xf]
  %v212 = vld [vmem:[%s2 + $0x88] sm:$0xf]
  %v213 = vld [vmem:[%s2 + $0x8c] sm:$0xf]
  %v214 = vld [vmem:[%s2 + $0x90] sm:$0xf]
  %v215 = vld [vmem:[%s2 + $0x94] sm:$0x3]
  %v216 = vld [vmem:[%s1] sm:$0xff]
  %v217 = vpack.c.bf16 %v216, %v216
  %v218 = vld [vmem:[%s3] sm:$0xf]
  %v219 = vld [vmem:[%s3 + $0x4] sm:$0xf]
  %v220 = vld [vmem:[%s3 + $0x8] sm:$0xf]
  %v221 = vld [vmem:[%s3 + $0xc] sm:$0xf]
  %v226 = vunpack.c.l.b16 %v218
  %v227 = vunpack.c.l.b16 %v219
  %v228 = vunpack.c.l.b16 %v220
  %v229 = vunpack.c.l.b16 %v221
  %v230 = vpack.c.b16 %v227, %v226
  %v231 = vpack.c.b16 %v229, %v228
  %vm234 = vcmask 261120
  %v236 = vsel %vm234, %v217, 0
  %238 = vmatpush.bf16.msra.mxu0 0
  %239 = vmatpush.bf16.msra.mxu0 0
  %240 = vmatpush.bf16.msra.mxu0 0
  %241 = vmatpush.bf16.msra.mxu0 0
  %242 = vmatpush.bf16.msra.mxu0 0
  %243 = vmatpush.bf16.msra.mxu0 0
  %244 = vmatpush.bf16.msra.mxu0 %v231
  %245 = vmatpush.bf16.msra.mxu0 %v230
  %246 = vmatmul.bf16.gmra.mxu0 %v236
  %v247 = vpop.f32.mrf.mxu0
  %v248 = vadd.f32 0.0, %v247
  %v249 = vpop.f32.mrf.mxu0
  %250 = vdwg.mxu0
  %v251 = vlaneseq
  %v252 = vshrl.u32 %v251, 7
  %v253 = vadd.s32 %v252, 8
  %v254 = vadd.s32 %v252, 16
  %v255 = vadd.s32 %v252, 24
  %v256 = vadd.s32 %v252, 32
  %v257 = vadd.s32 %v252, 40
  %v258 = vadd.s32 %v252, 48
  %v259 = vadd.s32 %v252, 56
  %v260 = vadd.s32 %v252, 64
  %v261 = vadd.s32 %v252, 72
  %v262 = vadd.s32 %v252, 80
  %v263 = vadd.s32 %v252, 88
  %v264 = vadd.s32 %v252, 96
  %v265 = vadd.s32 %v252, 104
  %v266 = vadd.s32 %v252, 112
  %v267 = vadd.s32 %v252, 120
  %v268 = vadd.s32 %v252, 128
  %v269 = vadd.s32 %v252, 136
  %v270 = vadd.s32 %v252, 144
  %v271 = vadd.s32 %v252, 152
  %v272 = vadd.s32 %v252, 160
  %v273 = vadd.s32 %v252, 168
  %v274 = vadd.s32 %v252, 176
  %v275 = vadd.s32 %v252, 184
  %v276 = vadd.s32 %v252, 192
  %v277 = vadd.s32 %v252, 200
  %v278 = vadd.s32 %v252, 208
  %v279 = vadd.s32 %v252, 216
  %v280 = vadd.s32 %v252, 224
  %v281 = vadd.s32 %v252, 232
  %v282 = vadd.s32 %v252, 240
  %v283 = vadd.s32 %v252, 248
  %v284 = vadd.s32 %v252, 256
  %v285 = vadd.s32 %v252, 264
  %v286 = vadd.s32 %v252, 272
  %v287 = vadd.s32 %v252, 280
  %v288 = vadd.s32 %v252, 288
  %v289 = vadd.s32 %v252, 296
  %v290 = vadd.s32 %v252, 304
  %v291 = vadd.s32 %v252, 312
  %v292 = vadd.s32 %v252, 320
  %v293 = vadd.s32 %v252, 328
  %v294 = vadd.s32 %v252, 336
  %v295 = vadd.s32 %v252, 344
  %v296 = vadd.s32 %v252, 352
  %v297 = vadd.s32 %v252, 360
  %v298 = vadd.s32 %v252, 368
  %v299 = vadd.s32 %v252, 376
  %v300 = vadd.s32 %v252, 384
  %v301 = vadd.s32 %v252, 392
  %v302 = vadd.s32 %v252, 400
  %v303 = vadd.s32 %v252, 408
  %v304 = vadd.s32 %v252, 416
  %v305 = vadd.s32 %v252, 424
  %v306 = vadd.s32 %v252, 432
  %v307 = vadd.s32 %v252, 440
  %v308 = vadd.s32 %v252, 448
  %v309 = vadd.s32 %v252, 456
  %v310 = vadd.s32 %v252, 464
  %v311 = vadd.s32 %v252, 472
  %v312 = vadd.s32 %v252, 480
  %v313 = vadd.s32 %v252, 488
  %v314 = vadd.s32 %v252, 496
  %v315 = vadd.s32 %v252, 504
  %v316 = vadd.s32 %v252, 512
  %v317 = vadd.s32 %v252, 520
  %v318 = vadd.s32 %v252, 528
  %v319 = vadd.s32 %v252, 536
  %v320 = vadd.s32 %v252, 544
  %v321 = vadd.s32 %v252, 552
  %v322 = vadd.s32 %v252, 560
  %v323 = vadd.s32 %v252, 568
  %v324 = vadd.s32 %v252, 576
  %v325 = vadd.s32 %v252, 584
  %v326 = vadd.s32 %v252, 592
  %v327 = vadd.s32 %v252, 600
  %v328 = vadd.s32 %v252, 608
  %v329 = vlaneseq
  %v330 = vand.u32 %v329, 127
  %v331 = vmul.u32 %v330, 77
  %vm332 = vcmp.ge.s32.totalorder %v252, %v331
  %vm333 = vcmp.ge.s32.totalorder %v253, %v331
  %vm334 = vcmp.ge.s32.totalorder %v254, %v331
  %vm335 = vcmp.ge.s32.totalorder %v255, %v331
  %vm336 = vcmp.ge.s32.totalorder %v256, %v331
  %vm337 = vcmp.ge.s32.totalorder %v257, %v331
  %vm338 = vcmp.ge.s32.totalorder %v258, %v331
  %vm339 = vcmp.ge.s32.totalorder %v259, %v331
  %vm340 = vcmp.ge.s32.totalorder %v260, %v331
  %vm341 = vcmp.ge.s32.totalorder %v261, %v331
  %vm342 = vcmp.ge.s32.totalorder %v262, %v331
  %vm343 = vcmp.ge.s32.totalorder %v263, %v331
  %vm344 = vcmp.ge.s32.totalorder %v264, %v331
  %vm345 = vcmp.ge.s32.totalorder %v265, %v331
  %vm346 = vcmp.ge.s32.totalorder %v266, %v331
  %vm347 = vcmp.ge.s32.totalorder %v267, %v331
  %vm348 = vcmp.ge.s32.totalorder %v268, %v331
  %vm349 = vcmp.ge.s32.totalorder %v269, %v331
  %vm350 = vcmp.ge.s32.totalorder %v270, %v331
  %vm351 = vcmp.ge.s32.totalorder %v271, %v331
  %vm352 = vcmp.ge.s32.totalorder %v272, %v331
  %vm353 = vcmp.ge.s32.totalorder %v273, %v331
  %vm354 = vcmp.ge.s32.totalorder %v274, %v331
  %vm355 = vcmp.ge.s32.totalorder %v275, %v331
  %vm356 = vcmp.ge.s32.totalorder %v276, %v331
  %vm357 = vcmp.ge.s32.totalorder %v277, %v331
  %vm358 = vcmp.ge.s32.totalorder %v278, %v331
  %vm359 = vcmp.ge.s32.totalorder %v279, %v331
  %vm360 = vcmp.ge.s32.totalorder %v280, %v331
  %vm361 = vcmp.ge.s32.totalorder %v281, %v331
  %vm362 = vcmp.ge.s32.totalorder %v282, %v331
  %vm363 = vcmp.ge.s32.totalorder %v283, %v331
  %vm364 = vcmp.ge.s32.totalorder %v284, %v331
  %vm365 = vcmp.ge.s32.totalorder %v285, %v331
  %vm366 = vcmp.ge.s32.totalorder %v286, %v331
  %vm367 = vcmp.ge.s32.totalorder %v287, %v331
  %vm368 = vcmp.ge.s32.totalorder %v288, %v331
  %vm369 = vcmp.ge.s32.totalorder %v289, %v331
  %vm370 = vcmp.ge.s32.totalorder %v290, %v331
  %vm371 = vcmp.ge.s32.totalorder %v291, %v331
  %vm372 = vcmp.ge.s32.totalorder %v292, %v331
  %vm373 = vcmp.ge.s32.totalorder %v293, %v331
  %vm374 = vcmp.ge.s32.totalorder %v294, %v331
  %vm375 = vcmp.ge.s32.totalorder %v295, %v331
  %vm376 = vcmp.ge.s32.totalorder %v296, %v331
  %vm377 = vcmp.ge.s32.totalorder %v297, %v331
  %vm378 = vcmp.ge.s32.totalorder %v298, %v331
  %vm379 = vcmp.ge.s32.totalorder %v299, %v331
  %vm380 = vcmp.ge.s32.totalorder %v300, %v331
  %vm381 = vcmp.ge.s32.totalorder %v301, %v331
  %vm382 = vcmp.ge.s32.totalorder %v302, %v331
  %vm383 = vcmp.ge.s32.totalorder %v303, %v331
  %vm384 = vcmp.ge.s32.totalorder %v304, %v331
  %vm385 = vcmp.ge.s32.totalorder %v305, %v331
  %vm386 = vcmp.ge.s32.totalorder %v306, %v331
  %vm387 = vcmp.ge.s32.totalorder %v307, %v331
  %vm388 = vcmp.ge.s32.totalorder %v308, %v331
  %vm389 = vcmp.ge.s32.totalorder %v309, %v331
  %vm390 = vcmp.ge.s32.totalorder %v310, %v331
  %vm391 = vcmp.ge.s32.totalorder %v311, %v331
  %vm392 = vcmp.ge.s32.totalorder %v312, %v331
  %vm393 = vcmp.ge.s32.totalorder %v313, %v331
  %vm394 = vcmp.ge.s32.totalorder %v314, %v331
  %vm395 = vcmp.ge.s32.totalorder %v315, %v331
  %vm396 = vcmp.ge.s32.totalorder %v316, %v331
  %vm397 = vcmp.ge.s32.totalorder %v317, %v331
  %vm398 = vcmp.ge.s32.totalorder %v318, %v331
  %vm399 = vcmp.ge.s32.totalorder %v319, %v331
  %vm400 = vcmp.ge.s32.totalorder %v320, %v331
  %vm401 = vcmp.ge.s32.totalorder %v321, %v331
  %vm402 = vcmp.ge.s32.totalorder %v322, %v331
  %vm403 = vcmp.ge.s32.totalorder %v323, %v331
  %vm404 = vcmp.ge.s32.totalorder %v324, %v331
  %vm405 = vcmp.ge.s32.totalorder %v325, %v331
  %vm406 = vcmp.ge.s32.totalorder %v326, %v331
  %vm407 = vcmp.ge.s32.totalorder %v327, %v331
  %vm408 = vcmp.ge.s32.totalorder %v328, %v331
  %v409 = vadd.s32 %v331, 77
  %vm410 = vcmp.lt.s32.totalorder %v252, %v409
  %vm411 = vcmp.lt.s32.totalorder %v253, %v409
  %vm412 = vcmp.lt.s32.totalorder %v254, %v409
  %vm413 = vcmp.lt.s32.totalorder %v255, %v409
  %vm414 = vcmp.lt.s32.totalorder %v256, %v409
  %vm415 = vcmp.lt.s32.totalorder %v257, %v409
  %vm416 = vcmp.lt.s32.totalorder %v258, %v409
  %vm417 = vcmp.lt.s32.totalorder %v259, %v409
  %vm418 = vcmp.lt.s32.totalorder %v260, %v409
  %vm419 = vcmp.lt.s32.totalorder %v261, %v409
  %vm420 = vcmp.lt.s32.totalorder %v262, %v409
  %vm421 = vcmp.lt.s32.totalorder %v263, %v409
  %vm422 = vcmp.lt.s32.totalorder %v264, %v409
  %vm423 = vcmp.lt.s32.totalorder %v265, %v409
  %vm424 = vcmp.lt.s32.totalorder %v266, %v409
  %vm425 = vcmp.lt.s32.totalorder %v267, %v409
  %vm426 = vcmp.lt.s32.totalorder %v268, %v409
  %vm427 = vcmp.lt.s32.totalorder %v269, %v409
  %vm428 = vcmp.lt.s32.totalorder %v270, %v409
  %vm429 = vcmp.lt.s32.totalorder %v271, %v409
  %vm430 = vcmp.lt.s32.totalorder %v272, %v409
  %vm431 = vcmp.lt.s32.totalorder %v273, %v409
  %vm432 = vcmp.lt.s32.totalorder %v274, %v409
  %vm433 = vcmp.lt.s32.totalorder %v275, %v409
  %vm434 = vcmp.lt.s32.totalorder %v276, %v409
  %vm435 = vcmp.lt.s32.totalorder %v277, %v409
  %vm436 = vcmp.lt.s32.totalorder %v278, %v409
  %vm437 = vcmp.lt.s32.totalorder %v279, %v409
  %vm438 = vcmp.lt.s32.totalorder %v280, %v409
  %vm439 = vcmp.lt.s32.totalorder %v281, %v409
  %vm440 = vcmp.lt.s32.totalorder %v282, %v409
  %vm441 = vcmp.lt.s32.totalorder %v283, %v409
  %vm442 = vcmp.lt.s32.totalorder %v284, %v409
  %vm443 = vcmp.lt.s32.totalorder %v285, %v409
  %vm444 = vcmp.lt.s32.totalorder %v286, %v409
  %vm445 = vcmp.lt.s32.totalorder %v287, %v409
  %vm446 = vcmp.lt.s32.totalorder %v288, %v409
  %vm447 = vcmp.lt.s32.totalorder %v289, %v409
  %vm448 = vcmp.lt.s32.totalorder %v290, %v409
  %vm449 = vcmp.lt.s32.totalorder %v291, %v409
  %vm450 = vcmp.lt.s32.totalorder %v292, %v409
  %vm451 = vcmp.lt.s32.totalorder %v293, %v409
  %vm452 = vcmp.lt.s32.totalorder %v294, %v409
  %vm453 = vcmp.lt.s32.totalorder %v295, %v409
  %vm454 = vcmp.lt.s32.totalorder %v296, %v409
  %vm455 = vcmp.lt.s32.totalorder %v297, %v409
  %vm456 = vcmp.lt.s32.totalorder %v298, %v409
  %vm457 = vcmp.lt.s32.totalorder %v299, %v409
  %vm458 = vcmp.lt.s32.totalorder %v300, %v409
  %vm459 = vcmp.lt.s32.totalorder %v301, %v409
  %vm460 = vcmp.lt.s32.totalorder %v302, %v409
  %vm461 = vcmp.lt.s32.totalorder %v303, %v409
  %vm462 = vcmp.lt.s32.totalorder %v304, %v409
  %vm463 = vcmp.lt.s32.totalorder %v305, %v409
  %vm464 = vcmp.lt.s32.totalorder %v306, %v409
  %vm465 = vcmp.lt.s32.totalorder %v307, %v409
  %vm466 = vcmp.lt.s32.totalorder %v308, %v409
  %vm467 = vcmp.lt.s32.totalorder %v309, %v409
  %vm468 = vcmp.lt.s32.totalorder %v310, %v409
  %vm469 = vcmp.lt.s32.totalorder %v311, %v409
  %vm470 = vcmp.lt.s32.totalorder %v312, %v409
  %vm471 = vcmp.lt.s32.totalorder %v313, %v409
  %vm472 = vcmp.lt.s32.totalorder %v314, %v409
  %vm473 = vcmp.lt.s32.totalorder %v315, %v409
  %vm474 = vcmp.lt.s32.totalorder %v316, %v409
  %vm475 = vcmp.lt.s32.totalorder %v317, %v409
  %vm476 = vcmp.lt.s32.totalorder %v318, %v409
  %vm477 = vcmp.lt.s32.totalorder %v319, %v409
  %vm478 = vcmp.lt.s32.totalorder %v320, %v409
  %vm479 = vcmp.lt.s32.totalorder %v321, %v409
  %vm480 = vcmp.lt.s32.totalorder %v322, %v409
  %vm481 = vcmp.lt.s32.totalorder %v323, %v409
  %vm482 = vcmp.lt.s32.totalorder %v324, %v409
  %vm483 = vcmp.lt.s32.totalorder %v325, %v409
  %vm484 = vcmp.lt.s32.totalorder %v326, %v409
  %vm485 = vcmp.lt.s32.totalorder %v327, %v409
  %vm486 = vcmp.lt.s32.totalorder %v328, %v409
  %vm487 = vmand %vm332, %vm410
  %vm488 = vmand %vm333, %vm411
  %vm489 = vmand %vm334, %vm412
  %vm490 = vmand %vm335, %vm413
  %vm491 = vmand %vm336, %vm414
  %vm492 = vmand %vm337, %vm415
  %vm493 = vmand %vm338, %vm416
  %vm494 = vmand %vm339, %vm417
  %vm495 = vmand %vm340, %vm418
  %vm496 = vmand %vm341, %vm419
  %vm497 = vmand %vm342, %vm420
  %vm498 = vmand %vm343, %vm421
  %vm499 = vmand %vm344, %vm422
  %vm500 = vmand %vm345, %vm423
  %vm501 = vmand %vm346, %vm424
  %vm502 = vmand %vm347, %vm425
  %vm503 = vmand %vm348, %vm426
  %vm504 = vmand %vm349, %vm427
  %vm505 = vmand %vm350, %vm428
  %vm506 = vmand %vm351, %vm429
  %vm507 = vmand %vm352, %vm430
  %vm508 = vmand %vm353, %vm431
  %vm509 = vmand %vm354, %vm432
  %vm510 = vmand %vm355, %vm433
  %vm511 = vmand %vm356, %vm434
  %vm512 = vmand %vm357, %vm435
  %vm513 = vmand %vm358, %vm436
  %vm514 = vmand %vm359, %vm437
  %vm515 = vmand %vm360, %vm438
  %vm516 = vmand %vm361, %vm439
  %vm517 = vmand %vm362, %vm440
  %vm518 = vmand %vm363, %vm441
  %vm519 = vmand %vm364, %vm442
  %vm520 = vmand %vm365, %vm443
  %vm521 = vmand %vm366, %vm444
  %vm522 = vmand %vm367, %vm445
  %vm523 = vmand %vm368, %vm446
  %vm524 = vmand %vm369, %vm447
  %vm525 = vmand %vm370, %vm448
  %vm526 = vmand %vm371, %vm449
  %vm527 = vmand %vm372, %vm450
  %vm528 = vmand %vm373, %vm451
  %vm529 = vmand %vm374, %vm452
  %vm530 = vmand %vm375, %vm453
  %vm531 = vmand %vm376, %vm454
  %vm532 = vmand %vm377, %vm455
  %vm533 = vmand %vm378, %vm456
  %vm534 = vmand %vm379, %vm457
  %vm535 = vmand %vm380, %vm458
  %vm536 = vmand %vm381, %vm459
  %vm537 = vmand %vm382, %vm460
  %vm538 = vmand %vm383, %vm461
  %vm539 = vmand %vm384, %vm462
  %vm540 = vmand %vm385, %vm463
  %vm541 = vmand %vm386, %vm464
  %vm542 = vmand %vm387, %vm465
  %vm543 = vmand %vm388, %vm466
  %vm544 = vmand %vm389, %vm467
  %vm545 = vmand %vm390, %vm468
  %vm546 = vmand %vm391, %vm469
  %vm547 = vmand %vm392, %vm470
  %vm548 = vmand %vm393, %vm471
  %vm549 = vmand %vm394, %vm472
  %vm550 = vmand %vm395, %vm473
  %vm551 = vmand %vm396, %vm474
  %vm552 = vmand %vm397, %vm475
  %vm553 = vmand %vm398, %vm476
  %vm554 = vmand %vm399, %vm477
  %vm555 = vmand %vm400, %vm478
  %vm556 = vmand %vm401, %vm479
  %vm557 = vmand %vm402, %vm480
  %vm558 = vmand %vm403, %vm481
  %vm559 = vmand %vm404, %vm482
  %vm560 = vmand %vm405, %vm483
  %vm561 = vmand %vm406, %vm484
  %vm562 = vmand %vm407, %vm485
  %vm563 = vmand %vm408, %vm486
  %v564 = vsel %vm487, 1, 0
  %v565 = vsel %vm488, 1, 0
  %v566 = vsel %vm489, 1, 0
  %v567 = vsel %vm490, 1, 0
  %v568 = vsel %vm491, 1, 0
  %v569 = vsel %vm492, 1, 0
  %v570 = vsel %vm493, 1, 0
  %v571 = vsel %vm494, 1, 0
  %v572 = vsel %vm495, 1, 0
  %v573 = vsel %vm496, 1, 0
  %v574 = vsel %vm497, 1, 0
  %v575 = vsel %vm498, 1, 0
  %v576 = vsel %vm499, 1, 0
  %v577 = vsel %vm500, 1, 0
  %v578 = vsel %vm501, 1, 0
  %v579 = vsel %vm502, 1, 0
  %v580 = vsel %vm503, 1, 0
  %v581 = vsel %vm504, 1, 0
  %v582 = vsel %vm505, 1, 0
  %v583 = vsel %vm506, 1, 0
  %v584 = vsel %vm507, 1, 0
  %v585 = vsel %vm508, 1, 0
  %v586 = vsel %vm509, 1, 0
  %v587 = vsel %vm510, 1, 0
  %v588 = vsel %vm511, 1, 0
  %v589 = vsel %vm512, 1, 0
  %v590 = vsel %vm513, 1, 0
  %v591 = vsel %vm514, 1, 0
  %v592 = vsel %vm515, 1, 0
  %v593 = vsel %vm516, 1, 0
  %v594 = vsel %vm517, 1, 0
  %v595 = vsel %vm518, 1, 0
  %v596 = vsel %vm519, 1, 0
  %v597 = vsel %vm520, 1, 0
  %v598 = vsel %vm521, 1, 0
  %v599 = vsel %vm522, 1, 0
  %v600 = vsel %vm523, 1, 0
  %v601 = vsel %vm524, 1, 0
  %v602 = vsel %vm525, 1, 0
  %v603 = vsel %vm526, 1, 0
  %v604 = vsel %vm527, 1, 0
  %v605 = vsel %vm528, 1, 0
  %v606 = vsel %vm529, 1, 0
  %v607 = vsel %vm530, 1, 0
  %v608 = vsel %vm531, 1, 0
  %v609 = vsel %vm532, 1, 0
  %v610 = vsel %vm533, 1, 0
  %v611 = vsel %vm534, 1, 0
  %v612 = vsel %vm535, 1, 0
  %v613 = vsel %vm536, 1, 0
  %v614 = vsel %vm537, 1, 0
  %v615 = vsel %vm538, 1, 0
  %v616 = vsel %vm539, 1, 0
  %v617 = vsel %vm540, 1, 0
  %v618 = vsel %vm541, 1, 0
  %v619 = vsel %vm542, 1, 0
  %v620 = vsel %vm543, 1, 0
  %v621 = vsel %vm544, 1, 0
  %v622 = vsel %vm545, 1, 0
  %v623 = vsel %vm546, 1, 0
  %v624 = vsel %vm547, 1, 0
  %v625 = vsel %vm548, 1, 0
  %v626 = vsel %vm549, 1, 0
  %v627 = vsel %vm550, 1, 0
  %v628 = vsel %vm551, 1, 0
  %v629 = vsel %vm552, 1, 0
  %v630 = vsel %vm553, 1, 0
  %v631 = vsel %vm554, 1, 0
  %v632 = vsel %vm555, 1, 0
  %v633 = vsel %vm556, 1, 0
  %v634 = vsel %vm557, 1, 0
  %v635 = vsel %vm558, 1, 0
  %v636 = vsel %vm559, 1, 0
  %v637 = vsel %vm560, 1, 0
  %v638 = vsel %vm561, 1, 0
  %v639 = vsel %vm562, 1, 0
  %v640 = vsel %vm563, 1, 0
  %v641 = vcvt.s32.f32 %v564
  %v642 = vcvt.s32.f32 %v565
  %v643 = vcvt.s32.f32 %v566
  %v644 = vcvt.s32.f32 %v567
  %v645 = vcvt.s32.f32 %v568
  %v646 = vcvt.s32.f32 %v569
  %v647 = vcvt.s32.f32 %v570
  %v648 = vcvt.s32.f32 %v571
  %v649 = vcvt.s32.f32 %v572
  %v650 = vcvt.s32.f32 %v573
  %v651 = vcvt.s32.f32 %v574
  %v652 = vcvt.s32.f32 %v575
  %v653 = vcvt.s32.f32 %v576
  %v654 = vcvt.s32.f32 %v577
  %v655 = vcvt.s32.f32 %v578
  %v656 = vcvt.s32.f32 %v579
  %v657 = vcvt.s32.f32 %v580
  %v658 = vcvt.s32.f32 %v581
  %v659 = vcvt.s32.f32 %v582
  %v660 = vcvt.s32.f32 %v583
  %v661 = vcvt.s32.f32 %v584
  %v662 = vcvt.s32.f32 %v585
  %v663 = vcvt.s32.f32 %v586
  %v664 = vcvt.s32.f32 %v587
  %v665 = vcvt.s32.f32 %v588
  %v666 = vcvt.s32.f32 %v589
  %v667 = vcvt.s32.f32 %v590
  %v668 = vcvt.s32.f32 %v591
  %v669 = vcvt.s32.f32 %v592
  %v670 = vcvt.s32.f32 %v593
  %v671 = vcvt.s32.f32 %v594
  %v672 = vcvt.s32.f32 %v595
  %v673 = vcvt.s32.f32 %v596
  %v674 = vcvt.s32.f32 %v597
  %v675 = vcvt.s32.f32 %v598
  %v676 = vcvt.s32.f32 %v599
  %v677 = vcvt.s32.f32 %v600
  %v678 = vcvt.s32.f32 %v601
  %v679 = vcvt.s32.f32 %v602
  %v680 = vcvt.s32.f32 %v603
  %v681 = vcvt.s32.f32 %v604
  %v682 = vcvt.s32.f32 %v605
  %v683 = vcvt.s32.f32 %v606
  %v684 = vcvt.s32.f32 %v607
  %v685 = vcvt.s32.f32 %v608
  %v686 = vcvt.s32.f32 %v609
  %v687 = vcvt.s32.f32 %v610
  %v688 = vcvt.s32.f32 %v611
  %v689 = vcvt.s32.f32 %v612
  %v690 = vcvt.s32.f32 %v613
  %v691 = vcvt.s32.f32 %v614
  %v692 = vcvt.s32.f32 %v615
  %v693 = vcvt.s32.f32 %v616
  %v694 = vcvt.s32.f32 %v617
  %v695 = vcvt.s32.f32 %v618
  %v696 = vcvt.s32.f32 %v619
  %v697 = vcvt.s32.f32 %v620
  %v698 = vcvt.s32.f32 %v621
  %v699 = vcvt.s32.f32 %v622
  %v700 = vcvt.s32.f32 %v623
  %v701 = vcvt.s32.f32 %v624
  %v702 = vcvt.s32.f32 %v625
  %v703 = vcvt.s32.f32 %v626
  %v704 = vcvt.s32.f32 %v627
  %v705 = vcvt.s32.f32 %v628
  %v706 = vcvt.s32.f32 %v629
  %v707 = vcvt.s32.f32 %v630
  %v708 = vcvt.s32.f32 %v631
  %v709 = vcvt.s32.f32 %v632
  %v710 = vcvt.s32.f32 %v633
  %v711 = vcvt.s32.f32 %v634
  %v712 = vcvt.s32.f32 %v635
  %v713 = vcvt.s32.f32 %v636
  %v714 = vcvt.s32.f32 %v637
  %v715 = vcvt.s32.f32 %v638
  %v716 = vcvt.s32.f32 %v639
  %v717 = vcvt.s32.f32 %v640
  %vm718 = vcmask 64512
  %v720 = vsel %vm718, %v641, 0
  %v723 = vsel %vm718, %v642, 0
  %v726 = vsel %vm718, %v643, 0
  %v729 = vsel %vm718, %v644, 0
  %v732 = vsel %vm718, %v645, 0
  %v735 = vsel %vm718, %v646, 0
  %v738 = vsel %vm718, %v647, 0
  %v741 = vsel %vm718, %v648, 0
  %v744 = vsel %vm718, %v649, 0
  %v747 = vsel %vm718, %v650, 0
  %v750 = vsel %vm718, %v651, 0
  %v753 = vsel %vm718, %v652, 0
  %v756 = vsel %vm718, %v653, 0
  %v759 = vsel %vm718, %v654, 0
  %v762 = vsel %vm718, %v655, 0
  %v765 = vsel %vm718, %v656, 0
  %v768 = vsel %vm718, %v657, 0
  %v771 = vsel %vm718, %v658, 0
  %v774 = vsel %vm718, %v659, 0
  %v777 = vsel %vm718, %v660, 0
  %v780 = vsel %vm718, %v661, 0
  %v783 = vsel %vm718, %v662, 0
  %v786 = vsel %vm718, %v663, 0
  %v789 = vsel %vm718, %v664, 0
  %v792 = vsel %vm718, %v665, 0
  %v795 = vsel %vm718, %v666, 0
  %v798 = vsel %vm718, %v667, 0
  %v801 = vsel %vm718, %v668, 0
  %v804 = vsel %vm718, %v669, 0
  %v807 = vsel %vm718, %v670, 0
  %v810 = vsel %vm718, %v671, 0
  %v813 = vsel %vm718, %v672, 0
  %v816 = vsel %vm718, %v673, 0
  %v819 = vsel %vm718, %v674, 0
  %v822 = vsel %vm718, %v675, 0
  %v825 = vsel %vm718, %v676, 0
  %v828 = vsel %vm718, %v677, 0
  %v831 = vsel %vm718, %v678, 0
  %v834 = vsel %vm718, %v679, 0
  %v837 = vsel %vm718, %v680, 0
  %v840 = vsel %vm718, %v681, 0
  %v843 = vsel %vm718, %v682, 0
  %v846 = vsel %vm718, %v683, 0
  %v849 = vsel %vm718, %v684, 0
  %v852 = vsel %vm718, %v685, 0
  %v855 = vsel %vm718, %v686, 0
  %v858 = vsel %vm718, %v687, 0
  %v861 = vsel %vm718, %v688, 0
  %v864 = vsel %vm718, %v689, 0
  %v867 = vsel %vm718, %v690, 0
  %v870 = vsel %vm718, %v691, 0
  %v873 = vsel %vm718, %v692, 0
  %v876 = vsel %vm718, %v693, 0
  %v879 = vsel %vm718, %v694, 0
  %v882 = vsel %vm718, %v695, 0
  %v885 = vsel %vm718, %v696, 0
  %v888 = vsel %vm718, %v697, 0
  %v891 = vsel %vm718, %v698, 0
  %v894 = vsel %vm718, %v699, 0
  %v897 = vsel %vm718, %v700, 0
  %v900 = vsel %vm718, %v701, 0
  %v903 = vsel %vm718, %v702, 0
  %v906 = vsel %vm718, %v703, 0
  %v909 = vsel %vm718, %v704, 0
  %v912 = vsel %vm718, %v705, 0
  %v915 = vsel %vm718, %v706, 0
  %v918 = vsel %vm718, %v707, 0
  %v921 = vsel %vm718, %v708, 0
  %v924 = vsel %vm718, %v709, 0
  %v927 = vsel %vm718, %v710, 0
  %v930 = vsel %vm718, %v711, 0
  %v933 = vsel %vm718, %v712, 0
  %v936 = vsel %vm718, %v713, 0
  %v939 = vsel %vm718, %v714, 0
  %v942 = vsel %vm718, %v715, 0
  %v945 = vsel %vm718, %v716, 0
  %v948 = vsel %vm718, %v717, 0
  %950 = vmatpush.msra.mxu0 0.0
  %951 = vmatpush.msra.mxu0 0.0
  %952 = vmatpush.msra.mxu0 0.0
  %953 = vmatpush.msra.mxu0 0.0
  %954 = vmatpush.msra.mxu0 0.0
  %955 = vmatpush.msra.mxu0 0.0
  %956 = vmatpush.msra.mxu0 0.0
  %957 = vmatpush.msra.mxu0 0.0
  %958 = vmatpush.msra.mxu0 0.0
  %959 = vmatpush.msra.mxu0 0.0
  %960 = vmatpush.msra.mxu0 0.0
  %961 = vmatpush.msra.mxu0 0.0
  %962 = vmatpush.msra.mxu0 0.0
  %963 = vmatpush.msra.mxu0 0.0
  %964 = vmatpush.msra.mxu0 0.0
  %965 = vmatpush.msra.mxu0 %v248
  %966 = vmatmul.f32.gmra.mxu0 %v720
  %v967 = vpop.f32.mrf.mxu0
  %v968 = vadd.f32 0.0, %v967
  %969 = vmatmul.f32.gmra.mxu0 %v723
  %v970 = vpop.f32.mrf.mxu0
  %v971 = vadd.f32 0.0, %v970
  %972 = vmatmul.f32.gmra.mxu0 %v726
  %v973 = vpop.f32.mrf.mxu0
  %v974 = vadd.f32 0.0, %v973
  %975 = vmatmul.f32.gmra.mxu0 %v729
  %v976 = vpop.f32.mrf.mxu0
  %v977 = vadd.f32 0.0, %v976
  %978 = vmatmul.f32.gmra.mxu0 %v732
  %v979 = vpop.f32.mrf.mxu0
  %v980 = vadd.f32 0.0, %v979
  %981 = vmatmul.f32.gmra.mxu0 %v735
  %v982 = vpop.f32.mrf.mxu0
  %v983 = vadd.f32 0.0, %v982
  %984 = vmatmul.f32.gmra.mxu0 %v738
  %v985 = vpop.f32.mrf.mxu0
  %v986 = vadd.f32 0.0, %v985
  %987 = vmatmul.f32.gmra.mxu0 %v741
  %v988 = vpop.f32.mrf.mxu0
  %v989 = vadd.f32 0.0, %v988
  %990 = vmatmul.f32.gmra.mxu0 %v744
  %v991 = vpop.f32.mrf.mxu0
  %v992 = vadd.f32 0.0, %v991
  %993 = vmatmul.f32.gmra.mxu0 %v747
  %v994 = vpop.f32.mrf.mxu0
  %v995 = vadd.f32 0.0, %v994
  %996 = vmatmul.f32.gmra.mxu0 %v750
  %v997 = vpop.f32.mrf.mxu0
  %v998 = vadd.f32 0.0, %v997
  %999 = vmatmul.f32.gmra.mxu0 %v753
  %v1000 = vpop.f32.mrf.mxu0
  %v1001 = vadd.f32 0.0, %v1000
  %1002 = vmatmul.f32.gmra.mxu0 %v756
  %v1003 = vpop.f32.mrf.mxu0
  %v1004 = vadd.f32 0.0, %v1003
  %1005 = vmatmul.f32.gmra.mxu0 %v759
  %v1006 = vpop.f32.mrf.mxu0
  %v1007 = vadd.f32 0.0, %v1006
  %1008 = vmatmul.f32.gmra.mxu0 %v762
  %v1009 = vpop.f32.mrf.mxu0
  %v1010 = vadd.f32 0.0, %v1009
  %1011 = vmatmul.f32.gmra.mxu0 %v765
  %v1012 = vpop.f32.mrf.mxu0
  %v1013 = vadd.f32 0.0, %v1012
  %1014 = vmatmul.f32.gmra.mxu0 %v768
  %v1015 = vpop.f32.mrf.mxu0
  %v1016 = vadd.f32 0.0, %v1015
  %1017 = vmatmul.f32.gmra.mxu0 %v771
  %v1018 = vpop.f32.mrf.mxu0
  %v1019 = vadd.f32 0.0, %v1018
  %1020 = vmatmul.f32.gmra.mxu0 %v774
  %v1021 = vpop.f32.mrf.mxu0
  %v1022 = vadd.f32 0.0, %v1021
  %1023 = vmatmul.f32.gmra.mxu0 %v777
  %v1024 = vpop.f32.mrf.mxu0
  %v1025 = vadd.f32 0.0, %v1024
  %1026 = vmatmul.f32.gmra.mxu0 %v780
  %v1027 = vpop.f32.mrf.mxu0
  %v1028 = vadd.f32 0.0, %v1027
  %1029 = vmatmul.f32.gmra.mxu0 %v783
  %v1030 = vpop.f32.mrf.mxu0
  %v1031 = vadd.f32 0.0, %v1030
  %1032 = vmatmul.f32.gmra.mxu0 %v786
  %v1033 = vpop.f32.mrf.mxu0
  %v1034 = vadd.f32 0.0, %v1033
  %1035 = vmatmul.f32.gmra.mxu0 %v789
  %v1036 = vpop.f32.mrf.mxu0
  %v1037 = vadd.f32 0.0, %v1036
  %1038 = vmatmul.f32.gmra.mxu0 %v792
  %v1039 = vpop.f32.mrf.mxu0
  %v1040 = vadd.f32 0.0, %v1039
  %1041 = vmatmul.f32.gmra.mxu0 %v795
  %v1042 = vpop.f32.mrf.mxu0
  %v1043 = vadd.f32 0.0, %v1042
  %1044 = vmatmul.f32.gmra.mxu0 %v798
  %v1045 = vpop.f32.mrf.mxu0
  %v1046 = vadd.f32 0.0, %v1045
  %1047 = vmatmul.f32.gmra.mxu0 %v801
  %v1048 = vpop.f32.mrf.mxu0
  %v1049 = vadd.f32 0.0, %v1048
  %1050 = vmatmul.f32.gmra.mxu0 %v804
  %v1051 = vpop.f32.mrf.mxu0
  %v1052 = vadd.f32 0.0, %v1051
  %1053 = vmatmul.f32.gmra.mxu0 %v807
  %v1054 = vpop.f32.mrf.mxu0
  %v1055 = vadd.f32 0.0, %v1054
  %1056 = vmatmul.f32.gmra.mxu0 %v810
  %v1057 = vpop.f32.mrf.mxu0
  %v1058 = vadd.f32 0.0, %v1057
  %1059 = vmatmul.f32.gmra.mxu0 %v813
  %v1060 = vpop.f32.mrf.mxu0
  %v1061 = vadd.f32 0.0, %v1060
  %1062 = vmatmul.f32.gmra.mxu0 %v816
  %v1063 = vpop.f32.mrf.mxu0
  %v1064 = vadd.f32 0.0, %v1063
  %1065 = vmatmul.f32.gmra.mxu0 %v819
  %v1066 = vpop.f32.mrf.mxu0
  %v1067 = vadd.f32 0.0, %v1066
  %1068 = vmatmul.f32.gmra.mxu0 %v822
  %v1069 = vpop.f32.mrf.mxu0
  %v1070 = vadd.f32 0.0, %v1069
  %1071 = vmatmul.f32.gmra.mxu0 %v825
  %v1072 = vpop.f32.mrf.mxu0
  %v1073 = vadd.f32 0.0, %v1072
  %1074 = vmatmul.f32.gmra.mxu0 %v828
  %v1075 = vpop.f32.mrf.mxu0
  %v1076 = vadd.f32 0.0, %v1075
  %1077 = vmatmul.f32.gmra.mxu0 %v831
  %v1078 = vpop.f32.mrf.mxu0
  %v1079 = vadd.f32 0.0, %v1078
  %1080 = vmatmul.f32.gmra.mxu0 %v834
  %v1081 = vpop.f32.mrf.mxu0
  %v1082 = vadd.f32 0.0, %v1081
  %1083 = vmatmul.f32.gmra.mxu0 %v837
  %v1084 = vpop.f32.mrf.mxu0
  %v1085 = vadd.f32 0.0, %v1084
  %1086 = vmatmul.f32.gmra.mxu0 %v840
  %v1087 = vpop.f32.mrf.mxu0
  %v1088 = vadd.f32 0.0, %v1087
  %1089 = vmatmul.f32.gmra.mxu0 %v843
  %v1090 = vpop.f32.mrf.mxu0
  %v1091 = vadd.f32 0.0, %v1090
  %1092 = vmatmul.f32.gmra.mxu0 %v846
  %v1093 = vpop.f32.mrf.mxu0
  %v1094 = vadd.f32 0.0, %v1093
  %1095 = vmatmul.f32.gmra.mxu0 %v849
  %v1096 = vpop.f32.mrf.mxu0
  %v1097 = vadd.f32 0.0, %v1096
  %1098 = vmatmul.f32.gmra.mxu0 %v852
  %v1099 = vpop.f32.mrf.mxu0
  %v1100 = vadd.f32 0.0, %v1099
  %1101 = vmatmul.f32.gmra.mxu0 %v855
  %v1102 = vpop.f32.mrf.mxu0
  %v1103 = vadd.f32 0.0, %v1102
  %1104 = vmatmul.f32.gmra.mxu0 %v858
  %v1105 = vpop.f32.mrf.mxu0
  %v1106 = vadd.f32 0.0, %v1105
  %1107 = vmatmul.f32.gmra.mxu0 %v861
  %v1108 = vpop.f32.mrf.mxu0
  %v1109 = vadd.f32 0.0, %v1108
  %1110 = vmatmul.f32.gmra.mxu0 %v864
  %v1111 = vpop.f32.mrf.mxu0
  %v1112 = vadd.f32 0.0, %v1111
  %1113 = vmatmul.f32.gmra.mxu0 %v867
  %v1114 = vpop.f32.mrf.mxu0
  %v1115 = vadd.f32 0.0, %v1114
  %1116 = vmatmul.f32.gmra.mxu0 %v870
  %v1117 = vpop.f32.mrf.mxu0
  %v1118 = vadd.f32 0.0, %v1117
  %1119 = vmatmul.f32.gmra.mxu0 %v873
  %v1120 = vpop.f32.mrf.mxu0
  %v1121 = vadd.f32 0.0, %v1120
  %1122 = vmatmul.f32.gmra.mxu0 %v876
  %v1123 = vpop.f32.mrf.mxu0
  %v1124 = vadd.f32 0.0, %v1123
  %1125 = vmatmul.f32.gmra.mxu0 %v879
  %v1126 = vpop.f32.mrf.mxu0
  %v1127 = vadd.f32 0.0, %v1126
  %1128 = vmatmul.f32.gmra.mxu0 %v882
  %v1129 = vpop.f32.mrf.mxu0
  %v1130 = vadd.f32 0.0, %v1129
  %1131 = vmatmul.f32.gmra.mxu0 %v885
  %v1132 = vpop.f32.mrf.mxu0
  %v1133 = vadd.f32 0.0, %v1132
  %1134 = vmatmul.f32.gmra.mxu0 %v888
  %v1135 = vpop.f32.mrf.mxu0
  %v1136 = vadd.f32 0.0, %v1135
  %1137 = vmatmul.f32.gmra.mxu0 %v891
  %v1138 = vpop.f32.mrf.mxu0
  %v1139 = vadd.f32 0.0, %v1138
  %1140 = vmatmul.f32.gmra.mxu0 %v894
  %v1141 = vpop.f32.mrf.mxu0
  %v1142 = vadd.f32 0.0, %v1141
  %1143 = vmatmul.f32.gmra.mxu0 %v897
  %v1144 = vpop.f32.mrf.mxu0
  %v1145 = vadd.f32 0.0, %v1144
  %1146 = vmatmul.f32.gmra.mxu0 %v900
  %v1147 = vpop.f32.mrf.mxu0
  %v1148 = vadd.f32 0.0, %v1147
  %1149 = vmatmul.f32.gmra.mxu0 %v903
  %v1150 = vpop.f32.mrf.mxu0
  %v1151 = vadd.f32 0.0, %v1150
  %1152 = vmatmul.f32.gmra.mxu0 %v906
  %v1153 = vpop.f32.mrf.mxu0
  %v1154 = vadd.f32 0.0, %v1153
  %1155 = vmatmul.f32.gmra.mxu0 %v909
  %v1156 = vpop.f32.mrf.mxu0
  %v1157 = vadd.f32 0.0, %v1156
  %1158 = vmatmul.f32.gmra.mxu0 %v912
  %v1159 = vpop.f32.mrf.mxu0
  %v1160 = vadd.f32 0.0, %v1159
  %1161 = vmatmul.f32.gmra.mxu0 %v915
  %v1162 = vpop.f32.mrf.mxu0
  %v1163 = vadd.f32 0.0, %v1162
  %1164 = vmatmul.f32.gmra.mxu0 %v918
  %v1165 = vpop.f32.mrf.mxu0
  %v1166 = vadd.f32 0.0, %v1165
  %1167 = vmatmul.f32.gmra.mxu0 %v921
  %v1168 = vpop.f32.mrf.mxu0
  %v1169 = vadd.f32 0.0, %v1168
  %1170 = vmatmul.f32.gmra.mxu0 %v924
  %v1171 = vpop.f32.mrf.mxu0
  %v1172 = vadd.f32 0.0, %v1171
  %1173 = vmatmul.f32.gmra.mxu0 %v927
  %v1174 = vpop.f32.mrf.mxu0
  %v1175 = vadd.f32 0.0, %v1174
  %1176 = vmatmul.f32.gmra.mxu0 %v930
  %v1177 = vpop.f32.mrf.mxu0
  %v1178 = vadd.f32 0.0, %v1177
  %1179 = vmatmul.f32.gmra.mxu0 %v933
  %v1180 = vpop.f32.mrf.mxu0
  %v1181 = vadd.f32 0.0, %v1180
  %1182 = vmatmul.f32.gmra.mxu0 %v936
  %v1183 = vpop.f32.mrf.mxu0
  %v1184 = vadd.f32 0.0, %v1183
  %1185 = vmatmul.f32.gmra.mxu0 %v939
  %v1186 = vpop.f32.mrf.mxu0
  %v1187 = vadd.f32 0.0, %v1186
  %1188 = vmatmul.f32.gmra.mxu0 %v942
  %v1189 = vpop.f32.mrf.mxu0
  %v1190 = vadd.f32 0.0, %v1189
  %1191 = vmatmul.f32.gmra.mxu0 %v945
  %v1192 = vpop.f32.mrf.mxu0
  %v1193 = vadd.f32 0.0, %v1192
  %1194 = vmatmul.f32.gmra.mxu0 %v948
  %v1195 = vpop.f32.mrf.mxu0
  %v1196 = vadd.f32 0.0, %v1195
  %1197 = vdwg.mxu0
  %v1352 = vunpack.c.l.b16 %v24
  %v1353 = vunpack.c.h.b16 %v24
  %v1354 = vunpack.c.l.b16 %v25
  %v1355 = vunpack.c.l.b16 %v26
  %v1356 = vunpack.c.h.b16 %v26
  %v1357 = vunpack.c.l.b16 %v27
  %v1358 = vunpack.c.l.b16 %v28
  %v1359 = vunpack.c.h.b16 %v28
  %v1360 = vunpack.c.l.b16 %v29
  %v1361 = vunpack.c.l.b16 %v30
  %v1362 = vunpack.c.h.b16 %v30
  %v1363 = vunpack.c.l.b16 %v31
  %v1364 = vunpack.c.l.b16 %v32
  %v1365 = vunpack.c.h.b16 %v32
  %v1366 = vunpack.c.l.b16 %v33
  %v1367 = vunpack.c.l.b16 %v34
  %v1368 = vunpack.c.h.b16 %v34
  %v1369 = vunpack.c.l.b16 %v35
  %v1370 = vunpack.c.l.b16 %v36
  %v1371 = vunpack.c.h.b16 %v36
  %v1372 = vunpack.c.l.b16 %v37
  %v1373 = vunpack.c.l.b16 %v38
  %v1374 = vunpack.c.h.b16 %v38
  %v1375 = vunpack.c.l.b16 %v39
  %v1376 = vunpack.c.l.b16 %v40
  %v1377 = vunpack.c.h.b16 %v40
  %v1378 = vunpack.c.l.b16 %v41
  %v1379 = vunpack.c.l.b16 %v42
  %v1380 = vunpack.c.h.b16 %v42
  %v1381 = vunpack.c.l.b16 %v43
  %v1382 = vunpack.c.l.b16 %v44
  %v1383 = vunpack.c.h.b16 %v44
  %v1384 = vunpack.c.l.b16 %v45
  %v1385 = vunpack.c.l.b16 %v46
  %v1386 = vunpack.c.h.b16 %v46
  %v1387 = vunpack.c.l.b16 %v47
  %v1388 = vunpack.c.l.b16 %v48
  %v1389 = vunpack.c.h.b16 %v48
  %v1390 = vunpack.c.l.b16 %v49
  %v1391 = vunpack.c.l.b16 %v50
  %v1392 = vunpack.c.h.b16 %v50
  %v1393 = vunpack.c.l.b16 %v51
  %v1394 = vunpack.c.l.b16 %v52
  %v1395 = vunpack.c.h.b16 %v52
  %v1396 = vunpack.c.l.b16 %v53
  %v1397 = vunpack.c.l.b16 %v54
  %v1398 = vunpack.c.h.b16 %v54
  %v1399 = vunpack.c.l.b16 %v55
  %v1400 = vunpack.c.l.b16 %v56
  %v1401 = vunpack.c.h.b16 %v56
  %v1402 = vunpack.c.l.b16 %v57
  %v1403 = vunpack.c.l.b16 %v58
  %v1404 = vunpack.c.h.b16 %v58
  %v1405 = vunpack.c.l.b16 %v59
  %v1406 = vunpack.c.l.b16 %v60
  %v1407 = vunpack.c.h.b16 %v60
  %v1408 = vunpack.c.l.b16 %v61
  %v1409 = vunpack.c.l.b16 %v62
  %v1410 = vunpack.c.h.b16 %v62
  %v1411 = vunpack.c.l.b16 %v63
  %v1412 = vunpack.c.l.b16 %v64
  %v1413 = vunpack.c.h.b16 %v64
  %v1414 = vunpack.c.l.b16 %v65
  %v1415 = vunpack.c.l.b16 %v66
  %v1416 = vunpack.c.h.b16 %v66
  %v1417 = vunpack.c.l.b16 %v67
  %v1418 = vunpack.c.l.b16 %v68
  %v1419 = vunpack.c.h.b16 %v68
  %v1420 = vunpack.c.l.b16 %v69
  %v1421 = vunpack.c.l.b16 %v70
  %v1422 = vunpack.c.h.b16 %v70
  %v1423 = vunpack.c.l.b16 %v71
  %v1424 = vunpack.c.l.b16 %v72
  %v1425 = vunpack.c.h.b16 %v72
  %v1426 = vunpack.c.l.b16 %v73
  %v1427 = vunpack.c.l.b16 %v74
  %v1428 = vunpack.c.h.b16 %v74
  %v1429 = vunpack.c.l.b16 %v75
  %v1430 = vunpack.c.l.b16 %v76
  %v1431 = vunpack.c.h.b16 %v76
  %v1432 = vunpack.c.l.b16 %v77
  %v1433 = vunpack.c.l.b16 %v78
  %v1434 = vunpack.c.h.b16 %v78
  %v1435 = vunpack.c.l.b16 %v79
  %v1436 = vunpack.c.l.b16 %v80
  %v1437 = vunpack.c.h.b16 %v80
  %v1438 = vunpack.c.l.b16 %v81
  %v1439 = vunpack.c.l.b16 %v82
  %v1440 = vunpack.c.h.b16 %v82
  %v1441 = vunpack.c.l.b16 %v83
  %v1442 = vunpack.c.l.b16 %v84
  %v1443 = vunpack.c.h.b16 %v84
  %v1444 = vunpack.c.l.b16 %v85
  %v1445 = vunpack.c.l.b16 %v86
  %v1446 = vunpack.c.h.b16 %v86
  %v1447 = vunpack.c.l.b16 %v87
  %v1448 = vunpack.c.l.b16 %v88
  %v1449 = vunpack.c.h.b16 %v88
  %v1450 = vunpack.c.l.b16 %v89
  %v1451 = vunpack.c.l.b16 %v90
  %v1452 = vunpack.c.h.b16 %v90
  %v1453 = vunpack.c.l.b16 %v91
  %v1454 = vunpack.c.l.b16 %v92
  %v1455 = vunpack.c.h.b16 %v92
  %v1456 = vunpack.c.l.b16 %v93
  %v1457 = vunpack.c.l.b16 %v94
  %v1458 = vunpack.c.h.b16 %v94
  %v1459 = vunpack.c.l.b16 %v95
  %v1460 = vunpack.c.l.b16 %v96
  %v1461 = vunpack.c.h.b16 %v96
  %v1462 = vunpack.c.l.b16 %v97
  %v1463 = vunpack.c.l.b16 %v98
  %v1464 = vunpack.c.h.b16 %v98
  %v1465 = vunpack.c.l.b16 %v99
  %v1466 = vunpack.c.l.b16 %v100
  %v1467 = vunpack.c.h.b16 %v100
  %v1468 = vunpack.c.l.b16 %v101
  %v1469 = vunpack.c.l.b16 %v102
  %v1470 = vunpack.c.h.b16 %v102
  %v1471 = vunpack.c.l.b16 %v103
  %v1472 = vunpack.c.l.b16 %v104
  %v1473 = vunpack.c.h.b16 %v104
  %v1474 = vunpack.c.l.b16 %v105
  %v1475 = vunpack.c.l.b16 %v106
  %v1476 = vunpack.c.h.b16 %v106
  %v1477 = vunpack.c.l.b16 %v107
  %v1478 = vunpack.c.l.b16 %v108
  %v1479 = vunpack.c.h.b16 %v108
  %v1480 = vunpack.c.l.b16 %v109
  %v1481 = vunpack.c.l.b16 %v110
  %v1482 = vunpack.c.h.b16 %v110
  %v1483 = vunpack.c.l.b16 %v111
  %v1484 = vunpack.c.l.b16 %v112
  %v1485 = vunpack.c.h.b16 %v112
  %v1486 = vunpack.c.l.b16 %v113
  %v1487 = vunpack.c.l.b16 %v114
  %v1488 = vunpack.c.h.b16 %v114
  %v1489 = vunpack.c.l.b16 %v115
  %v1490 = vunpack.c.l.b16 %v116
  %v1491 = vunpack.c.h.b16 %v116
  %v1492 = vunpack.c.l.b16 %v117
  %v1493 = vunpack.c.l.b16 %v118
  %v1494 = vunpack.c.h.b16 %v118
  %v1495 = vunpack.c.l.b16 %v119
  %v1496 = vunpack.c.l.b16 %v120
  %v1497 = vunpack.c.h.b16 %v120
  %v1498 = vunpack.c.l.b16 %v121
  %v1499 = vunpack.c.l.b16 %v122
  %v1500 = vunpack.c.h.b16 %v122
  %v1501 = vunpack.c.l.b16 %v123
  %v1502 = vunpack.c.l.b16 %v124
  %v1503 = vunpack.c.h.b16 %v124
  %v1504 = vunpack.c.l.b16 %v125
  %v1505 = vunpack.c.l.b16 %v126
  %v1506 = vunpack.c.h.b16 %v126
  %v1507 = vunpack.c.l.b16 %v127
  %v1508 = vunpack.c.l.b16 %v128
  %v1509 = vunpack.c.h.b16 %v128
  %v1510 = vunpack.c.l.b16 %v129
  %v1511 = vunpack.c.l.b16 %v130
  %v1512 = vunpack.c.h.b16 %v130
  %v1513 = vunpack.c.l.b16 %v131
  %v1514 = vunpack.c.l.b16 %v132
  %v1515 = vunpack.c.h.b16 %v132
  %v1516 = vunpack.c.l.b16 %v133
  %v1517 = vunpack.c.l.b16 %v134
  %v1518 = vunpack.c.h.b16 %v134
  %v1519 = vunpack.c.l.b16 %v135
  %v1520 = vunpack.c.l.b16 %v136
  %v1521 = vunpack.c.h.b16 %v136
  %v1522 = vunpack.c.l.b16 %v137
  %v1523 = vunpack.c.l.b16 %v138
  %v1524 = vunpack.c.h.b16 %v138
  %v1525 = vunpack.c.l.b16 %v139
  %v1526 = vunpack.c.l.b16 %v140
  %v1527 = vunpack.c.h.b16 %v140
  %v1528 = vunpack.c.l.b16 %v141
  %v1529 = vunpack.c.l.b16 %v142
  %v1530 = vunpack.c.h.b16 %v142
  %v1531 = vunpack.c.l.b16 %v143
  %v1532 = vunpack.c.l.b16 %v144
  %v1533 = vunpack.c.h.b16 %v144
  %v1534 = vunpack.c.l.b16 %v145
  %v1535 = vunpack.c.l.b16 %v146
  %v1536 = vunpack.c.h.b16 %v146
  %v1537 = vunpack.c.l.b16 %v147
  %v1538 = vunpack.c.l.b16 %v148
  %v1539 = vunpack.c.h.b16 %v148
  %v1540 = vunpack.c.l.b16 %v149
  %v1541 = vunpack.c.l.b16 %v150
  %v1542 = vunpack.c.h.b16 %v150
  %v1543 = vunpack.c.l.b16 %v151
  %v1544 = vunpack.c.l.b16 %v152
  %v1545 = vunpack.c.h.b16 %v152
  %v1546 = vunpack.c.l.b16 %v153
  %v1547 = vunpack.c.l.b16 %v154
  %v1548 = vunpack.c.h.b16 %v154
  %v1549 = vunpack.c.l.b16 %v155
  %v1550 = vunpack.c.l.b16 %v156
  %v1551 = vunpack.c.h.b16 %v156
  %v1552 = vunpack.c.l.b16 %v157
  %v1553 = vunpack.c.l.b16 %v158
  %v1554 = vunpack.c.h.b16 %v158
  %v1555 = vunpack.c.l.b16 %v159
  %v1556 = vunpack.c.l.b16 %v160
  %v1557 = vunpack.c.h.b16 %v160
  %v1558 = vunpack.c.l.b16 %v161
  %v1559 = vunpack.c.l.b16 %v162
  %v1560 = vunpack.c.h.b16 %v162
  %v1561 = vunpack.c.l.b16 %v163
  %v1562 = vunpack.c.l.b16 %v164
  %v1563 = vunpack.c.h.b16 %v164
  %v1564 = vunpack.c.l.b16 %v165
  %v1565 = vunpack.c.l.b16 %v166
  %v1566 = vunpack.c.h.b16 %v166
  %v1567 = vunpack.c.l.b16 %v167
  %v1568 = vunpack.c.l.b16 %v168
  %v1569 = vunpack.c.h.b16 %v168
  %v1570 = vunpack.c.l.b16 %v169
  %v1571 = vunpack.c.l.b16 %v170
  %v1572 = vunpack.c.h.b16 %v170
  %v1573 = vunpack.c.l.b16 %v171
  %v1574 = vunpack.c.l.b16 %v172
  %v1575 = vunpack.c.h.b16 %v172
  %v1576 = vunpack.c.l.b16 %v173
  %v1577 = vunpack.c.l.b16 %v174
  %v1578 = vunpack.c.h.b16 %v174
  %v1579 = vunpack.c.l.b16 %v175
  %v1580 = vunpack.c.l.b16 %v176
  %v1581 = vunpack.c.h.b16 %v176
  %v1582 = vunpack.c.l.b16 %v177
  %v1583 = vpack.c.b16 %v1355, %v1352
  %v1584 = vpack.c.b16 %v1356, %v1353
  %v1585 = vpack.c.b16 %v1357, %v1354
  %v1586 = vpack.c.b16 %v1361, %v1358
  %v1587 = vpack.c.b16 %v1362, %v1359
  %v1588 = vpack.c.b16 %v1363, %v1360
  %v1589 = vpack.c.b16 %v1367, %v1364
  %v1590 = vpack.c.b16 %v1368, %v1365
  %v1591 = vpack.c.b16 %v1369, %v1366
  %v1592 = vpack.c.b16 %v1373, %v1370
  %v1593 = vpack.c.b16 %v1374, %v1371
  %v1594 = vpack.c.b16 %v1375, %v1372
  %v1595 = vpack.c.b16 %v1379, %v1376
  %v1596 = vpack.c.b16 %v1380, %v1377
  %v1597 = vpack.c.b16 %v1381, %v1378
  %v1598 = vpack.c.b16 %v1385, %v1382
  %v1599 = vpack.c.b16 %v1386, %v1383
  %v1600 = vpack.c.b16 %v1387, %v1384
  %v1601 = vpack.c.b16 %v1391, %v1388
  %v1602 = vpack.c.b16 %v1392, %v1389
  %v1603 = vpack.c.b16 %v1393, %v1390
  %v1604 = vpack.c.b16 %v1397, %v1394
  %v1605 = vpack.c.b16 %v1398, %v1395
  %v1606 = vpack.c.b16 %v1399, %v1396
  %v1607 = vpack.c.b16 %v1403, %v1400
  %v1608 = vpack.c.b16 %v1404, %v1401
  %v1609 = vpack.c.b16 %v1405, %v1402
  %v1610 = vpack.c.b16 %v1409, %v1406
  %v1611 = vpack.c.b16 %v1410, %v1407
  %v1612 = vpack.c.b16 %v1411, %v1408
  %v1613 = vpack.c.b16 %v1415, %v1412
  %v1614 = vpack.c.b16 %v1416, %v1413
  %v1615 = vpack.c.b16 %v1417, %v1414
  %v1616 = vpack.c.b16 %v1421, %v1418
  %v1617 = vpack.c.b16 %v1422, %v1419
  %v1618 = vpack.c.b16 %v1423, %v1420
  %v1619 = vpack.c.b16 %v1427, %v1424
  %v1620 = vpack.c.b16 %v1428, %v1425
  %v1621 = vpack.c.b16 %v1429, %v1426
  %v1622 = vpack.c.b16 %v1433, %v1430
  %v1623 = vpack.c.b16 %v1434, %v1431
  %v1624 = vpack.c.b16 %v1435, %v1432
  %v1625 = vpack.c.b16 %v1439, %v1436
  %v1626 = vpack.c.b16 %v1440, %v1437
  %v1627 = vpack.c.b16 %v1441, %v1438
  %v1628 = vpack.c.b16 %v1445, %v1442
  %v1629 = vpack.c.b16 %v1446, %v1443
  %v1630 = vpack.c.b16 %v1447, %v1444
  %v1631 = vpack.c.b16 %v1451, %v1448
  %v1632 = vpack.c.b16 %v1452, %v1449
  %v1633 = vpack.c.b16 %v1453, %v1450
  %v1634 = vpack.c.b16 %v1457, %v1454
  %v1635 = vpack.c.b16 %v1458, %v1455
  %v1636 = vpack.c.b16 %v1459, %v1456
  %v1637 = vpack.c.b16 %v1463, %v1460
  %v1638 = vpack.c.b16 %v1464, %v1461
  %v1639 = vpack.c.b16 %v1465, %v1462
  %v1640 = vpack.c.b16 %v1469, %v1466
  %v1641 = vpack.c.b16 %v1470, %v1467
  %v1642 = vpack.c.b16 %v1471, %v1468
  %v1643 = vpack.c.b16 %v1475, %v1472
  %v1644 = vpack.c.b16 %v1476, %v1473
  %v1645 = vpack.c.b16 %v1477, %v1474
  %v1646 = vpack.c.b16 %v1481, %v1478
  %v1647 = vpack.c.b16 %v1482, %v1479
  %v1648 = vpack.c.b16 %v1483, %v1480
  %v1649 = vpack.c.b16 %v1487, %v1484
  %v1650 = vpack.c.b16 %v1488, %v1485
  %v1651 = vpack.c.b16 %v1489, %v1486
  %v1652 = vpack.c.b16 %v1493, %v1490
  %v1653 = vpack.c.b16 %v1494, %v1491
  %v1654 = vpack.c.b16 %v1495, %v1492
  %v1655 = vpack.c.b16 %v1499, %v1496
  %v1656 = vpack.c.b16 %v1500, %v1497
  %v1657 = vpack.c.b16 %v1501, %v1498
  %v1658 = vpack.c.b16 %v1505, %v1502
  %v1659 = vpack.c.b16 %v1506, %v1503
  %v1660 = vpack.c.b16 %v1507, %v1504
  %v1661 = vpack.c.b16 %v1511, %v1508
  %v1662 = vpack.c.b16 %v1512, %v1509
  %v1663 = vpack.c.b16 %v1513, %v1510
  %v1664 = vpack.c.b16 %v1517, %v1514
  %v1665 = vpack.c.b16 %v1518, %v1515
  %v1666 = vpack.c.b16 %v1519, %v1516
  %v1667 = vpack.c.b16 %v1523, %v1520
  %v1668 = vpack.c.b16 %v1524, %v1521
  %v1669 = vpack.c.b16 %v1525, %v1522
  %v1670 = vpack.c.b16 %v1529, %v1526
  %v1671 = vpack.c.b16 %v1530, %v1527
  %v1672 = vpack.c.b16 %v1531, %v1528
  %v1673 = vpack.c.b16 %v1535, %v1532
  %v1674 = vpack.c.b16 %v1536, %v1533
  %v1675 = vpack.c.b16 %v1537, %v1534
  %v1676 = vpack.c.b16 %v1541, %v1538
  %v1677 = vpack.c.b16 %v1542, %v1539
  %v1678 = vpack.c.b16 %v1543, %v1540
  %v1679 = vpack.c.b16 %v1547, %v1544
  %v1680 = vpack.c.b16 %v1548, %v1545
  %v1681 = vpack.c.b16 %v1549, %v1546
  %v1682 = vpack.c.b16 %v1553, %v1550
  %v1683 = vpack.c.b16 %v1554, %v1551
  %v1684 = vpack.c.b16 %v1555, %v1552
  %v1685 = vpack.c.b16 %v1559, %v1556
  %v1686 = vpack.c.b16 %v1560, %v1557
  %v1687 = vpack.c.b16 %v1561, %v1558
  %v1688 = vpack.c.b16 %v1565, %v1562
  %v1689 = vpack.c.b16 %v1566, %v1563
  %v1690 = vpack.c.b16 %v1567, %v1564
  %v1691 = vpack.c.b16 %v1571, %v1568
  %v1692 = vpack.c.b16 %v1572, %v1569
  %v1693 = vpack.c.b16 %v1573, %v1570
  %v1694 = vpack.c.b16 %v1577, %v1574
  %v1695 = vpack.c.b16 %v1578, %v1575
  %v1696 = vpack.c.b16 %v1579, %v1576
  %v1697 = vpack.c.b16 %v1580, %v1580
  %v1698 = vpack.c.b16 %v1581, %v1581
  %v1699 = vpack.c.b16 %v1582, %v1582
  %v1816 = vunpack.c.l.b16 %v178
  %v1817 = vunpack.c.l.b16 %v179
  %v1818 = vunpack.c.l.b16 %v180
  %v1819 = vunpack.c.l.b16 %v181
  %v1820 = vunpack.c.l.b16 %v182
  %v1821 = vunpack.c.l.b16 %v183
  %v1822 = vunpack.c.l.b16 %v184
  %v1823 = vunpack.c.l.b16 %v185
  %v1824 = vunpack.c.l.b16 %v186
  %v1825 = vunpack.c.l.b16 %v187
  %v1826 = vunpack.c.l.b16 %v188
  %v1827 = vunpack.c.l.b16 %v189
  %v1828 = vunpack.c.l.b16 %v190
  %v1829 = vunpack.c.l.b16 %v191
  %v1830 = vunpack.c.l.b16 %v192
  %v1831 = vunpack.c.l.b16 %v193
  %v1832 = vunpack.c.l.b16 %v194
  %v1833 = vunpack.c.l.b16 %v195
  %v1834 = vunpack.c.l.b16 %v196
  %v1835 = vunpack.c.l.b16 %v197
  %v1836 = vunpack.c.l.b16 %v198
  %v1837 = vunpack.c.l.b16 %v199
  %v1838 = vunpack.c.l.b16 %v200
  %v1839 = vunpack.c.l.b16 %v201
  %v1840 = vunpack.c.l.b16 %v202
  %v1841 = vunpack.c.l.b16 %v203
  %v1842 = vunpack.c.l.b16 %v204
  %v1843 = vunpack.c.l.b16 %v205
  %v1844 = vunpack.c.l.b16 %v206
  %v1845 = vunpack.c.l.b16 %v207
  %v1846 = vunpack.c.l.b16 %v208
  %v1847 = vunpack.c.l.b16 %v209
  %v1848 = vunpack.c.l.b16 %v210
  %v1849 = vunpack.c.l.b16 %v211
  %v1850 = vunpack.c.l.b16 %v212
  %v1851 = vunpack.c.l.b16 %v213
  %v1852 = vunpack.c.l.b16 %v214
  %v1853 = vunpack.c.l.b16 %v215
  %v1854 = vpack.c.b16 %v1817, %v1816
  %v1855 = vpack.c.b16 %v1819, %v1818
  %v1856 = vpack.c.b16 %v1821, %v1820
  %v1857 = vpack.c.b16 %v1823, %v1822
  %v1858 = vpack.c.b16 %v1825, %v1824
  %v1859 = vpack.c.b16 %v1827, %v1826
  %v1860 = vpack.c.b16 %v1829, %v1828
  %v1861 = vpack.c.b16 %v1831, %v1830
  %v1862 = vpack.c.b16 %v1833, %v1832
  %v1863 = vpack.c.b16 %v1835, %v1834
  %v1864 = vpack.c.b16 %v1837, %v1836
  %v1865 = vpack.c.b16 %v1839, %v1838
  %v1866 = vpack.c.b16 %v1841, %v1840
  %v1867 = vpack.c.b16 %v1843, %v1842
  %v1868 = vpack.c.b16 %v1845, %v1844
  %v1869 = vpack.c.b16 %v1847, %v1846
  %v1870 = vpack.c.b16 %v1849, %v1848
  %v1871 = vpack.c.b16 %v1851, %v1850
  %v1872 = vpack.c.b16 %v1853, %v1852
  %vm1891 = vcmask 359424
  %v1893 = vsel %vm1891, %v1585, 0
  %v1896 = vsel %vm1891, %v1588, 0
  %v1899 = vsel %vm1891, %v1591, 0
  %v1902 = vsel %vm1891, %v1594, 0
  %v1905 = vsel %vm1891, %v1597, 0
  %v1908 = vsel %vm1891, %v1600, 0
  %v1911 = vsel %vm1891, %v1603, 0
  %v1914 = vsel %vm1891, %v1606, 0
  %v1917 = vsel %vm1891, %v1609, 0
  %v1920 = vsel %vm1891, %v1612, 0
  %v1923 = vsel %vm1891, %v1615, 0
  %v1926 = vsel %vm1891, %v1618, 0
  %v1929 = vsel %vm1891, %v1621, 0
  %v1932 = vsel %vm1891, %v1624, 0
  %v1935 = vsel %vm1891, %v1627, 0
  %v1938 = vsel %vm1891, %v1630, 0
  %v1941 = vsel %vm1891, %v1633, 0
  %v1944 = vsel %vm1891, %v1636, 0
  %v1947 = vsel %vm1891, %v1639, 0
  %v1950 = vsel %vm1891, %v1642, 0
  %v1953 = vsel %vm1891, %v1645, 0
  %v1956 = vsel %vm1891, %v1648, 0
  %v1959 = vsel %vm1891, %v1651, 0
  %v1962 = vsel %vm1891, %v1654, 0
  %v1965 = vsel %vm1891, %v1657, 0
  %v1968 = vsel %vm1891, %v1660, 0
  %v1971 = vsel %vm1891, %v1663, 0
  %v1974 = vsel %vm1891, %v1666, 0
  %v1977 = vsel %vm1891, %v1669, 0
  %v1980 = vsel %vm1891, %v1672, 0
  %v1983 = vsel %vm1891, %v1675, 0
  %v1986 = vsel %vm1891, %v1678, 0
  %v1989 = vsel %vm1891, %v1681, 0
  %v1992 = vsel %vm1891, %v1684, 0
  %v1995 = vsel %vm1891, %v1687, 0
  %v1998 = vsel %vm1891, %v1690, 0
  %v2001 = vsel %vm1891, %v1693, 0
  %v2004 = vsel %vm1891, %v1696, 0
  %v2007 = vsel %vm1891, %v1699, 0
  %vm2009 = vcmask 1045504
  %v2011 = vsel %vm2009, %v1872, 0
  %2013 = vmatpush.bf16.msra.mxu0 %v1861
  %2014 = vmatpush.bf16.msra.mxu0 %v1860
  %2015 = vmatpush.bf16.msra.mxu0 %v1859
  %2016 = vmatpush.bf16.msra.mxu0 %v1858
  %2017 = vmatpush.bf16.msra.mxu0 %v1857
  %2018 = vmatpush.bf16.msra.mxu0 %v1856
  %2019 = vmatpush.bf16.msra.mxu0 %v1855
  %2020 = vmatpush.bf16.msra.mxu0 %v1854
  %2021 = vmatmul.bf16.gmra.mxu0 %v1583
  %v2022 = vpop.f32.mrf.mxu0
  %v2023 = vadd.f32 %v968, %v2022
  %v2024 = vpop.f32.mrf.mxu0
  %v2025 = vadd.f32 %v971, %v2024
  %2026 = vmatmul.bf16.gmra.mxu0 %v1586
  %v2027 = vpop.f32.mrf.mxu0
  %v2028 = vadd.f32 %v974, %v2027
  %v2029 = vpop.f32.mrf.mxu0
  %v2030 = vadd.f32 %v977, %v2029
  %2031 = vmatmul.bf16.gmra.mxu0 %v1589
  %v2032 = vpop.f32.mrf.mxu0
  %v2033 = vadd.f32 %v980, %v2032
  %v2034 = vpop.f32.mrf.mxu0
  %v2035 = vadd.f32 %v983, %v2034
  %2036 = vmatmul.bf16.gmra.mxu0 %v1592
  %v2037 = vpop.f32.mrf.mxu0
  %v2038 = vadd.f32 %v986, %v2037
  %v2039 = vpop.f32.mrf.mxu0
  %v2040 = vadd.f32 %v989, %v2039
  %2041 = vmatmul.bf16.gmra.mxu0 %v1595
  %v2042 = vpop.f32.mrf.mxu0
  %v2043 = vadd.f32 %v992, %v2042
  %v2044 = vpop.f32.mrf.mxu0
  %v2045 = vadd.f32 %v995, %v2044
  %2046 = vmatmul.bf16.gmra.mxu0 %v1598
  %v2047 = vpop.f32.mrf.mxu0
  %v2048 = vadd.f32 %v998, %v2047
  %v2049 = vpop.f32.mrf.mxu0
  %v2050 = vadd.f32 %v1001, %v2049
  %2051 = vmatmul.bf16.gmra.mxu0 %v1601
  %v2052 = vpop.f32.mrf.mxu0
  %v2053 = vadd.f32 %v1004, %v2052
  %v2054 = vpop.f32.mrf.mxu0
  %v2055 = vadd.f32 %v1007, %v2054
  %2056 = vmatmul.bf16.gmra.mxu0 %v1604
  %v2057 = vpop.f32.mrf.mxu0
  %v2058 = vadd.f32 %v1010, %v2057
  %v2059 = vpop.f32.mrf.mxu0
  %v2060 = vadd.f32 %v1013, %v2059
  %2061 = vmatmul.bf16.gmra.mxu0 %v1607
  %v2062 = vpop.f32.mrf.mxu0
  %v2063 = vadd.f32 %v1016, %v2062
  %v2064 = vpop.f32.mrf.mxu0
  %v2065 = vadd.f32 %v1019, %v2064
  %2066 = vmatmul.bf16.gmra.mxu0 %v1610
  %v2067 = vpop.f32.mrf.mxu0
  %v2068 = vadd.f32 %v1022, %v2067
  %v2069 = vpop.f32.mrf.mxu0
  %v2070 = vadd.f32 %v1025, %v2069
  %2071 = vmatmul.bf16.gmra.mxu0 %v1613
  %v2072 = vpop.f32.mrf.mxu0
  %v2073 = vadd.f32 %v1028, %v2072
  %v2074 = vpop.f32.mrf.mxu0
  %v2075 = vadd.f32 %v1031, %v2074
  %2076 = vmatmul.bf16.gmra.mxu0 %v1616
  %v2077 = vpop.f32.mrf.mxu0
  %v2078 = vadd.f32 %v1034, %v2077
  %v2079 = vpop.f32.mrf.mxu0
  %v2080 = vadd.f32 %v1037, %v2079
  %2081 = vmatmul.bf16.gmra.mxu0 %v1619
  %v2082 = vpop.f32.mrf.mxu0
  %v2083 = vadd.f32 %v1040, %v2082
  %v2084 = vpop.f32.mrf.mxu0
  %v2085 = vadd.f32 %v1043, %v2084
  %2086 = vmatmul.bf16.gmra.mxu0 %v1622
  %v2087 = vpop.f32.mrf.mxu0
  %v2088 = vadd.f32 %v1046, %v2087
  %v2089 = vpop.f32.mrf.mxu0
  %v2090 = vadd.f32 %v1049, %v2089
  %2091 = vmatmul.bf16.gmra.mxu0 %v1625
  %v2092 = vpop.f32.mrf.mxu0
  %v2093 = vadd.f32 %v1052, %v2092
  %v2094 = vpop.f32.mrf.mxu0
  %v2095 = vadd.f32 %v1055, %v2094
  %2096 = vmatmul.bf16.gmra.mxu0 %v1628
  %v2097 = vpop.f32.mrf.mxu0
  %v2098 = vadd.f32 %v1058, %v2097
  %v2099 = vpop.f32.mrf.mxu0
  %v2100 = vadd.f32 %v1061, %v2099
  %2101 = vmatmul.bf16.gmra.mxu0 %v1631
  %v2102 = vpop.f32.mrf.mxu0
  %v2103 = vadd.f32 %v1064, %v2102
  %v2104 = vpop.f32.mrf.mxu0
  %v2105 = vadd.f32 %v1067, %v2104
  %2106 = vmatmul.bf16.gmra.mxu0 %v1634
  %v2107 = vpop.f32.mrf.mxu0
  %v2108 = vadd.f32 %v1070, %v2107
  %v2109 = vpop.f32.mrf.mxu0
  %v2110 = vadd.f32 %v1073, %v2109
  %2111 = vmatmul.bf16.gmra.mxu0 %v1637
  %v2112 = vpop.f32.mrf.mxu0
  %v2113 = vadd.f32 %v1076, %v2112
  %v2114 = vpop.f32.mrf.mxu0
  %v2115 = vadd.f32 %v1079, %v2114
  %2116 = vmatmul.bf16.gmra.mxu0 %v1640
  %v2117 = vpop.f32.mrf.mxu0
  %v2118 = vadd.f32 %v1082, %v2117
  %v2119 = vpop.f32.mrf.mxu0
  %v2120 = vadd.f32 %v1085, %v2119
  %2121 = vmatmul.bf16.gmra.mxu0 %v1643
  %v2122 = vpop.f32.mrf.mxu0
  %v2123 = vadd.f32 %v1088, %v2122
  %v2124 = vpop.f32.mrf.mxu0
  %v2125 = vadd.f32 %v1091, %v2124
  %2126 = vmatmul.bf16.gmra.mxu0 %v1646
  %v2127 = vpop.f32.mrf.mxu0
  %v2128 = vadd.f32 %v1094, %v2127
  %v2129 = vpop.f32.mrf.mxu0
  %v2130 = vadd.f32 %v1097, %v2129
  %2131 = vmatmul.bf16.gmra.mxu0 %v1649
  %v2132 = vpop.f32.mrf.mxu0
  %v2133 = vadd.f32 %v1100, %v2132
  %v2134 = vpop.f32.mrf.mxu0
  %v2135 = vadd.f32 %v1103, %v2134
  %2136 = vmatmul.bf16.gmra.mxu0 %v1652
  %v2137 = vpop.f32.mrf.mxu0
  %v2138 = vadd.f32 %v1106, %v2137
  %v2139 = vpop.f32.mrf.mxu0
  %v2140 = vadd.f32 %v1109, %v2139
  %2141 = vmatmul.bf16.gmra.mxu0 %v1655
  %v2142 = vpop.f32.mrf.mxu0
  %v2143 = vadd.f32 %v1112, %v2142
  %v2144 = vpop.f32.mrf.mxu0
  %v2145 = vadd.f32 %v1115, %v2144
  %2146 = vmatmul.bf16.gmra.mxu0 %v1658
  %v2147 = vpop.f32.mrf.mxu0
  %v2148 = vadd.f32 %v1118, %v2147
  %v2149 = vpop.f32.mrf.mxu0
  %v2150 = vadd.f32 %v1121, %v2149
  %2151 = vmatmul.bf16.gmra.mxu0 %v1661
  %v2152 = vpop.f32.mrf.mxu0
  %v2153 = vadd.f32 %v1124, %v2152
  %v2154 = vpop.f32.mrf.mxu0
  %v2155 = vadd.f32 %v1127, %v2154
  %2156 = vmatmul.bf16.gmra.mxu0 %v1664
  %v2157 = vpop.f32.mrf.mxu0
  %v2158 = vadd.f32 %v1130, %v2157
  %v2159 = vpop.f32.mrf.mxu0
  %v2160 = vadd.f32 %v1133, %v2159
  %2161 = vmatmul.bf16.gmra.mxu0 %v1667
  %v2162 = vpop.f32.mrf.mxu0
  %v2163 = vadd.f32 %v1136, %v2162
  %v2164 = vpop.f32.mrf.mxu0
  %v2165 = vadd.f32 %v1139, %v2164
  %2166 = vmatmul.bf16.gmra.mxu0 %v1670
  %v2167 = vpop.f32.mrf.mxu0
  %v2168 = vadd.f32 %v1142, %v2167
  %v2169 = vpop.f32.mrf.mxu0
  %v2170 = vadd.f32 %v1145, %v2169
  %2171 = vmatmul.bf16.gmra.mxu0 %v1673
  %v2172 = vpop.f32.mrf.mxu0
  %v2173 = vadd.f32 %v1148, %v2172
  %v2174 = vpop.f32.mrf.mxu0
  %v2175 = vadd.f32 %v1151, %v2174
  %2176 = vmatmul.bf16.gmra.mxu0 %v1676
  %v2177 = vpop.f32.mrf.mxu0
  %v2178 = vadd.f32 %v1154, %v2177
  %v2179 = vpop.f32.mrf.mxu0
  %v2180 = vadd.f32 %v1157, %v2179
  %2181 = vmatmul.bf16.gmra.mxu0 %v1679
  %v2182 = vpop.f32.mrf.mxu0
  %v2183 = vadd.f32 %v1160, %v2182
  %v2184 = vpop.f32.mrf.mxu0
  %v2185 = vadd.f32 %v1163, %v2184
  %2186 = vmatmul.bf16.gmra.mxu0 %v1682
  %v2187 = vpop.f32.mrf.mxu0
  %v2188 = vadd.f32 %v1166, %v2187
  %v2189 = vpop.f32.mrf.mxu0
  %v2190 = vadd.f32 %v1169, %v2189
  %2191 = vmatmul.bf16.gmra.mxu0 %v1685
  %v2192 = vpop.f32.mrf.mxu0
  %v2193 = vadd.f32 %v1172, %v2192
  %v2194 = vpop.f32.mrf.mxu0
  %v2195 = vadd.f32 %v1175, %v2194
  %2196 = vmatmul.bf16.gmra.mxu0 %v1688
  %v2197 = vpop.f32.mrf.mxu0
  %v2198 = vadd.f32 %v1178, %v2197
  %v2199 = vpop.f32.mrf.mxu0
  %v2200 = vadd.f32 %v1181, %v2199
  %2201 = vmatmul.bf16.gmra.mxu0 %v1691
  %v2202 = vpop.f32.mrf.mxu0
  %v2203 = vadd.f32 %v1184, %v2202
  %v2204 = vpop.f32.mrf.mxu0
  %v2205 = vadd.f32 %v1187, %v2204
  %2206 = vmatmul.bf16.gmra.mxu0 %v1694
  %v2207 = vpop.f32.mrf.mxu0
  %v2208 = vadd.f32 %v1190, %v2207
  %v2209 = vpop.f32.mrf.mxu0
  %v2210 = vadd.f32 %v1193, %v2209
  %2211 = vmatmul.bf16.gmra.mxu0 %v1697
  %v2212 = vpop.f32.mrf.mxu0
  %v2213 = vadd.f32 %v1196, %v2212
  %v2214 = vpop.f32.mrf.mxu0
  %2215 = vdwg.mxu0
  %2216 = vmatpush.bf16.msra.mxu0 %v1869
  %2217 = vmatpush.bf16.msra.mxu0 %v1868
  %2218 = vmatpush.bf16.msra.mxu0 %v1867
  %2219 = vmatpush.bf16.msra.mxu0 %v1866
  %2220 = vmatpush.bf16.msra.mxu0 %v1865
  %2221 = vmatpush.bf16.msra.mxu0 %v1864
  %2222 = vmatpush.bf16.msra.mxu0 %v1863
  %2223 = vmatpush.bf16.msra.mxu0 %v1862
  %2224 = vmatmul.bf16.gmra.mxu0 %v1584
  %v2225 = vpop.f32.mrf.mxu0
  %v2226 = vadd.f32 %v2023, %v2225
  %v2227 = vpop.f32.mrf.mxu0
  %v2228 = vadd.f32 %v2025, %v2227
  %2229 = vmatmul.bf16.gmra.mxu0 %v1587
  %v2230 = vpop.f32.mrf.mxu0
  %v2231 = vadd.f32 %v2028, %v2230
  %v2232 = vpop.f32.mrf.mxu0
  %v2233 = vadd.f32 %v2030, %v2232
  %2234 = vmatmul.bf16.gmra.mxu0 %v1590
  %v2235 = vpop.f32.mrf.mxu0
  %v2236 = vadd.f32 %v2033, %v2235
  %v2237 = vpop.f32.mrf.mxu0
  %v2238 = vadd.f32 %v2035, %v2237
  %2239 = vmatmul.bf16.gmra.mxu0 %v1593
  %v2240 = vpop.f32.mrf.mxu0
  %v2241 = vadd.f32 %v2038, %v2240
  %v2242 = vpop.f32.mrf.mxu0
  %v2243 = vadd.f32 %v2040, %v2242
  %2244 = vmatmul.bf16.gmra.mxu0 %v1596
  %v2245 = vpop.f32.mrf.mxu0
  %v2246 = vadd.f32 %v2043, %v2245
  %v2247 = vpop.f32.mrf.mxu0
  %v2248 = vadd.f32 %v2045, %v2247
  %2249 = vmatmul.bf16.gmra.mxu0 %v1599
  %v2250 = vpop.f32.mrf.mxu0
  %v2251 = vadd.f32 %v2048, %v2250
  %v2252 = vpop.f32.mrf.mxu0
  %v2253 = vadd.f32 %v2050, %v2252
  %2254 = vmatmul.bf16.gmra.mxu0 %v1602
  %v2255 = vpop.f32.mrf.mxu0
  %v2256 = vadd.f32 %v2053, %v2255
  %v2257 = vpop.f32.mrf.mxu0
  %v2258 = vadd.f32 %v2055, %v2257
  %2259 = vmatmul.bf16.gmra.mxu0 %v1605
  %v2260 = vpop.f32.mrf.mxu0
  %v2261 = vadd.f32 %v2058, %v2260
  %v2262 = vpop.f32.mrf.mxu0
  %v2263 = vadd.f32 %v2060, %v2262
  %2264 = vmatmul.bf16.gmra.mxu0 %v1608
  %v2265 = vpop.f32.mrf.mxu0
  %v2266 = vadd.f32 %v2063, %v2265
  %v2267 = vpop.f32.mrf.mxu0
  %v2268 = vadd.f32 %v2065, %v2267
  %2269 = vmatmul.bf16.gmra.mxu0 %v1611
  %v2270 = vpop.f32.mrf.mxu0
  %v2271 = vadd.f32 %v2068, %v2270
  %v2272 = vpop.f32.mrf.mxu0
  %v2273 = vadd.f32 %v2070, %v2272
  %2274 = vmatmul.bf16.gmra.mxu0 %v1614
  %v2275 = vpop.f32.mrf.mxu0
  %v2276 = vadd.f32 %v2073, %v2275
  %v2277 = vpop.f32.mrf.mxu0
  %v2278 = vadd.f32 %v2075, %v2277
  %2279 = vmatmul.bf16.gmra.mxu0 %v1617
  %v2280 = vpop.f32.mrf.mxu0
  %v2281 = vadd.f32 %v2078, %v2280
  %v2282 = vpop.f32.mrf.mxu0
  %v2283 = vadd.f32 %v2080, %v2282
  %2284 = vmatmul.bf16.gmra.mxu0 %v1620
  %v2285 = vpop.f32.mrf.mxu0
  %v2286 = vadd.f32 %v2083, %v2285
  %v2287 = vpop.f32.mrf.mxu0
  %v2288 = vadd.f32 %v2085, %v2287
  %2289 = vmatmul.bf16.gmra.mxu0 %v1623
  %v2290 = vpop.f32.mrf.mxu0
  %v2291 = vadd.f32 %v2088, %v2290
  %v2292 = vpop.f32.mrf.mxu0
  %v2293 = vadd.f32 %v2090, %v2292
  %2294 = vmatmul.bf16.gmra.mxu0 %v1626
  %v2295 = vpop.f32.mrf.mxu0
  %v2296 = vadd.f32 %v2093, %v2295
  %v2297 = vpop.f32.mrf.mxu0
  %v2298 = vadd.f32 %v2095, %v2297
  %2299 = vmatmul.bf16.gmra.mxu0 %v1629
  %v2300 = vpop.f32.mrf.mxu0
  %v2301 = vadd.f32 %v2098, %v2300
  %v2302 = vpop.f32.mrf.mxu0
  %v2303 = vadd.f32 %v2100, %v2302
  %2304 = vmatmul.bf16.gmra.mxu0 %v1632
  %v2305 = vpop.f32.mrf.mxu0
  %v2306 = vadd.f32 %v2103, %v2305
  %v2307 = vpop.f32.mrf.mxu0
  %v2308 = vadd.f32 %v2105, %v2307
  %2309 = vmatmul.bf16.gmra.mxu0 %v1635
  %v2310 = vpop.f32.mrf.mxu0
  %v2311 = vadd.f32 %v2108, %v2310
  %v2312 = vpop.f32.mrf.mxu0
  %v2313 = vadd.f32 %v2110, %v2312
  %2314 = vmatmul.bf16.gmra.mxu0 %v1638
  %v2315 = vpop.f32.mrf.mxu0
  %v2316 = vadd.f32 %v2113, %v2315
  %v2317 = vpop.f32.mrf.mxu0
  %v2318 = vadd.f32 %v2115, %v2317
  %2319 = vmatmul.bf16.gmra.mxu0 %v1641
  %v2320 = vpop.f32.mrf.mxu0
  %v2321 = vadd.f32 %v2118, %v2320
  %v2322 = vpop.f32.mrf.mxu0
  %v2323 = vadd.f32 %v2120, %v2322
  %2324 = vmatmul.bf16.gmra.mxu0 %v1644
  %v2325 = vpop.f32.mrf.mxu0
  %v2326 = vadd.f32 %v2123, %v2325
  %v2327 = vpop.f32.mrf.mxu0
  %v2328 = vadd.f32 %v2125, %v2327
  %2329 = vmatmul.bf16.gmra.mxu0 %v1647
  %v2330 = vpop.f32.mrf.mxu0
  %v2331 = vadd.f32 %v2128, %v2330
  %v2332 = vpop.f32.mrf.mxu0
  %v2333 = vadd.f32 %v2130, %v2332
  %2334 = vmatmul.bf16.gmra.mxu0 %v1650
  %v2335 = vpop.f32.mrf.mxu0
  %v2336 = vadd.f32 %v2133, %v2335
  %v2337 = vpop.f32.mrf.mxu0
  %v2338 = vadd.f32 %v2135, %v2337
  %2339 = vmatmul.bf16.gmra.mxu0 %v1653
  %v2340 = vpop.f32.mrf.mxu0
  %v2341 = vadd.f32 %v2138, %v2340
  %v2342 = vpop.f32.mrf.mxu0
  %v2343 = vadd.f32 %v2140, %v2342
  %2344 = vmatmul.bf16.gmra.mxu0 %v1656
  %v2345 = vpop.f32.mrf.mxu0
  %v2346 = vadd.f32 %v2143, %v2345
  %v2347 = vpop.f32.mrf.mxu0
  %v2348 = vadd.f32 %v2145, %v2347
  %2349 = vmatmul.bf16.gmra.mxu0 %v1659
  %v2350 = vpop.f32.mrf.mxu0
  %v2351 = vadd.f32 %v2148, %v2350
  %v2352 = vpop.f32.mrf.mxu0
  %v2353 = vadd.f32 %v2150, %v2352
  %2354 = vmatmul.bf16.gmra.mxu0 %v1662
  %v2355 = vpop.f32.mrf.mxu0
  %v2356 = vadd.f32 %v2153, %v2355
  %v2357 = vpop.f32.mrf.mxu0
  %v2358 = vadd.f32 %v2155, %v2357
  %2359 = vmatmul.bf16.gmra.mxu0 %v1665
  %v2360 = vpop.f32.mrf.mxu0
  %v2361 = vadd.f32 %v2158, %v2360
  %v2362 = vpop.f32.mrf.mxu0
  %v2363 = vadd.f32 %v2160, %v2362
  %2364 = vmatmul.bf16.gmra.mxu0 %v1668
  %v2365 = vpop.f32.mrf.mxu0
  %v2366 = vadd.f32 %v2163, %v2365
  %v2367 = vpop.f32.mrf.mxu0
  %v2368 = vadd.f32 %v2165, %v2367
  %2369 = vmatmul.bf16.gmra.mxu0 %v1671
  %v2370 = vpop.f32.mrf.mxu0
  %v2371 = vadd.f32 %v2168, %v2370
  %v2372 = vpop.f32.mrf.mxu0
  %v2373 = vadd.f32 %v2170, %v2372
  %2374 = vmatmul.bf16.gmra.mxu0 %v1674
  %v2375 = vpop.f32.mrf.mxu0
  %v2376 = vadd.f32 %v2173, %v2375
  %v2377 = vpop.f32.mrf.mxu0
  %v2378 = vadd.f32 %v2175, %v2377
  %2379 = vmatmul.bf16.gmra.mxu0 %v1677
  %v2380 = vpop.f32.mrf.mxu0
  %v2381 = vadd.f32 %v2178, %v2380
  %v2382 = vpop.f32.mrf.mxu0
  %v2383 = vadd.f32 %v2180, %v2382
  %2384 = vmatmul.bf16.gmra.mxu0 %v1680
  %v2385 = vpop.f32.mrf.mxu0
  %v2386 = vadd.f32 %v2183, %v2385
  %v2387 = vpop.f32.mrf.mxu0
  %v2388 = vadd.f32 %v2185, %v2387
  %2389 = vmatmul.bf16.gmra.mxu0 %v1683
  %v2390 = vpop.f32.mrf.mxu0
  %v2391 = vadd.f32 %v2188, %v2390
  %v2392 = vpop.f32.mrf.mxu0
  %v2393 = vadd.f32 %v2190, %v2392
  %2394 = vmatmul.bf16.gmra.mxu0 %v1686
  %v2395 = vpop.f32.mrf.mxu0
  %v2396 = vadd.f32 %v2193, %v2395
  %v2397 = vpop.f32.mrf.mxu0
  %v2398 = vadd.f32 %v2195, %v2397
  %2399 = vmatmul.bf16.gmra.mxu0 %v1689
  %v2400 = vpop.f32.mrf.mxu0
  %v2401 = vadd.f32 %v2198, %v2400
  %v2402 = vpop.f32.mrf.mxu0
  %v2403 = vadd.f32 %v2200, %v2402
  %2404 = vmatmul.bf16.gmra.mxu0 %v1692
  %v2405 = vpop.f32.mrf.mxu0
  %v2406 = vadd.f32 %v2203, %v2405
  %v2407 = vpop.f32.mrf.mxu0
  %v2408 = vadd.f32 %v2205, %v2407
  %2409 = vmatmul.bf16.gmra.mxu0 %v1695
  %v2410 = vpop.f32.mrf.mxu0
  %v2411 = vadd.f32 %v2208, %v2410
  %v2412 = vpop.f32.mrf.mxu0
  %v2413 = vadd.f32 %v2210, %v2412
  %2414 = vmatmul.bf16.gmra.mxu0 %v1698
  %v2415 = vpop.f32.mrf.mxu0
  %v2416 = vadd.f32 %v2213, %v2415
  %v2417 = vpop.f32.mrf.mxu0
  %2418 = vdwg.mxu0
  %2419 = vmatpush.bf16.msra.mxu0 0
  %2420 = vmatpush.bf16.msra.mxu0 0
  %2421 = vmatpush.bf16.msra.mxu0 0
  %2422 = vmatpush.bf16.msra.mxu0 0
  %2423 = vmatpush.bf16.msra.mxu0 0
  %2424 = vmatpush.bf16.msra.mxu0 %v2011
  %2425 = vmatpush.bf16.msra.mxu0 %v1871
  %2426 = vmatpush.bf16.msra.mxu0 %v1870
  %2427 = vmatmul.bf16.gmra.mxu0 %v1893
  %v2428 = vpop.f32.mrf.mxu0
  %v2429 = vadd.f32 %v2226, %v2428
  %v2430 = vpop.f32.mrf.mxu0
  %v2431 = vadd.f32 %v2228, %v2430
  %2432 = vmatmul.bf16.gmra.mxu0 %v1896
  %v2433 = vpop.f32.mrf.mxu0
  %v2434 = vadd.f32 %v2231, %v2433
  %v2435 = vpop.f32.mrf.mxu0
  %v2436 = vadd.f32 %v2233, %v2435
  %2437 = vmatmul.bf16.gmra.mxu0 %v1899
  %v2438 = vpop.f32.mrf.mxu0
  %v2439 = vadd.f32 %v2236, %v2438
  %v2440 = vpop.f32.mrf.mxu0
  %v2441 = vadd.f32 %v2238, %v2440
  %2442 = vmatmul.bf16.gmra.mxu0 %v1902
  %v2443 = vpop.f32.mrf.mxu0
  %v2444 = vadd.f32 %v2241, %v2443
  %v2445 = vpop.f32.mrf.mxu0
  %v2446 = vadd.f32 %v2243, %v2445
  %2447 = vmatmul.bf16.gmra.mxu0 %v1905
  %v2448 = vpop.f32.mrf.mxu0
  %v2449 = vadd.f32 %v2246, %v2448
  %v2450 = vpop.f32.mrf.mxu0
  %v2451 = vadd.f32 %v2248, %v2450
  %2452 = vmatmul.bf16.gmra.mxu0 %v1908
  %v2453 = vpop.f32.mrf.mxu0
  %v2454 = vadd.f32 %v2251, %v2453
  %v2455 = vpop.f32.mrf.mxu0
  %v2456 = vadd.f32 %v2253, %v2455
  %2457 = vmatmul.bf16.gmra.mxu0 %v1911
  %v2458 = vpop.f32.mrf.mxu0
  %v2459 = vadd.f32 %v2256, %v2458
  %v2460 = vpop.f32.mrf.mxu0
  %v2461 = vadd.f32 %v2258, %v2460
  %2462 = vmatmul.bf16.gmra.mxu0 %v1914
  %v2463 = vpop.f32.mrf.mxu0
  %v2464 = vadd.f32 %v2261, %v2463
  %v2465 = vpop.f32.mrf.mxu0
  %v2466 = vadd.f32 %v2263, %v2465
  %2467 = vmatmul.bf16.gmra.mxu0 %v1917
  %v2468 = vpop.f32.mrf.mxu0
  %v2469 = vadd.f32 %v2266, %v2468
  %v2470 = vpop.f32.mrf.mxu0
  %v2471 = vadd.f32 %v2268, %v2470
  %2472 = vmatmul.bf16.gmra.mxu0 %v1920
  %v2473 = vpop.f32.mrf.mxu0
  %v2474 = vadd.f32 %v2271, %v2473
  %v2475 = vpop.f32.mrf.mxu0
  %v2476 = vadd.f32 %v2273, %v2475
  %2477 = vmatmul.bf16.gmra.mxu0 %v1923
  %v2478 = vpop.f32.mrf.mxu0
  %v2479 = vadd.f32 %v2276, %v2478
  %v2480 = vpop.f32.mrf.mxu0
  %v2481 = vadd.f32 %v2278, %v2480
  %2482 = vmatmul.bf16.gmra.mxu0 %v1926
  %v2483 = vpop.f32.mrf.mxu0
  %v2484 = vadd.f32 %v2281, %v2483
  %v2485 = vpop.f32.mrf.mxu0
  %v2486 = vadd.f32 %v2283, %v2485
  %2487 = vmatmul.bf16.gmra.mxu0 %v1929
  %v2488 = vpop.f32.mrf.mxu0
  %v2489 = vadd.f32 %v2286, %v2488
  %v2490 = vpop.f32.mrf.mxu0
  %v2491 = vadd.f32 %v2288, %v2490
  %2492 = vmatmul.bf16.gmra.mxu0 %v1932
  %v2493 = vpop.f32.mrf.mxu0
  %v2494 = vadd.f32 %v2291, %v2493
  %v2495 = vpop.f32.mrf.mxu0
  %v2496 = vadd.f32 %v2293, %v2495
  %2497 = vmatmul.bf16.gmra.mxu0 %v1935
  %v2498 = vpop.f32.mrf.mxu0
  %v2499 = vadd.f32 %v2296, %v2498
  %v2500 = vpop.f32.mrf.mxu0
  %v2501 = vadd.f32 %v2298, %v2500
  %2502 = vmatmul.bf16.gmra.mxu0 %v1938
  %v2503 = vpop.f32.mrf.mxu0
  %v2504 = vadd.f32 %v2301, %v2503
  %v2505 = vpop.f32.mrf.mxu0
  %v2506 = vadd.f32 %v2303, %v2505
  %2507 = vmatmul.bf16.gmra.mxu0 %v1941
  %v2508 = vpop.f32.mrf.mxu0
  %v2509 = vadd.f32 %v2306, %v2508
  %v2510 = vpop.f32.mrf.mxu0
  %v2511 = vadd.f32 %v2308, %v2510
  %2512 = vmatmul.bf16.gmra.mxu0 %v1944
  %v2513 = vpop.f32.mrf.mxu0
  %v2514 = vadd.f32 %v2311, %v2513
  %v2515 = vpop.f32.mrf.mxu0
  %v2516 = vadd.f32 %v2313, %v2515
  %2517 = vmatmul.bf16.gmra.mxu0 %v1947
  %v2518 = vpop.f32.mrf.mxu0
  %v2519 = vadd.f32 %v2316, %v2518
  %v2520 = vpop.f32.mrf.mxu0
  %v2521 = vadd.f32 %v2318, %v2520
  %2522 = vmatmul.bf16.gmra.mxu0 %v1950
  %v2523 = vpop.f32.mrf.mxu0
  %v2524 = vadd.f32 %v2321, %v2523
  %v2525 = vpop.f32.mrf.mxu0
  %v2526 = vadd.f32 %v2323, %v2525
  %2527 = vmatmul.bf16.gmra.mxu0 %v1953
  %v2528 = vpop.f32.mrf.mxu0
  %v2529 = vadd.f32 %v2326, %v2528
  %v2530 = vpop.f32.mrf.mxu0
  %v2531 = vadd.f32 %v2328, %v2530
  %2532 = vmatmul.bf16.gmra.mxu0 %v1956
  %v2533 = vpop.f32.mrf.mxu0
  %v2534 = vadd.f32 %v2331, %v2533
  %v2535 = vpop.f32.mrf.mxu0
  %v2536 = vadd.f32 %v2333, %v2535
  %2537 = vmatmul.bf16.gmra.mxu0 %v1959
  %v2538 = vpop.f32.mrf.mxu0
  %v2539 = vadd.f32 %v2336, %v2538
  %v2540 = vpop.f32.mrf.mxu0
  %v2541 = vadd.f32 %v2338, %v2540
  %2542 = vmatmul.bf16.gmra.mxu0 %v1962
  %v2543 = vpop.f32.mrf.mxu0
  %v2544 = vadd.f32 %v2341, %v2543
  %v2545 = vpop.f32.mrf.mxu0
  %v2546 = vadd.f32 %v2343, %v2545
  %2547 = vmatmul.bf16.gmra.mxu0 %v1965
  %v2548 = vpop.f32.mrf.mxu0
  %v2549 = vadd.f32 %v2346, %v2548
  %v2550 = vpop.f32.mrf.mxu0
  %v2551 = vadd.f32 %v2348, %v2550
  %2552 = vmatmul.bf16.gmra.mxu0 %v1968
  %v2553 = vpop.f32.mrf.mxu0
  %v2554 = vadd.f32 %v2351, %v2553
  %v2555 = vpop.f32.mrf.mxu0
  %v2556 = vadd.f32 %v2353, %v2555
  %2557 = vmatmul.bf16.gmra.mxu0 %v1971
  %v2558 = vpop.f32.mrf.mxu0
  %v2559 = vadd.f32 %v2356, %v2558
  %v2560 = vpop.f32.mrf.mxu0
  %v2561 = vadd.f32 %v2358, %v2560
  %2562 = vmatmul.bf16.gmra.mxu0 %v1974
  %v2563 = vpop.f32.mrf.mxu0
  %v2564 = vadd.f32 %v2361, %v2563
  %v2565 = vpop.f32.mrf.mxu0
  %v2566 = vadd.f32 %v2363, %v2565
  %2567 = vmatmul.bf16.gmra.mxu0 %v1977
  %v2568 = vpop.f32.mrf.mxu0
  %v2569 = vadd.f32 %v2366, %v2568
  %v2570 = vpop.f32.mrf.mxu0
  %v2571 = vadd.f32 %v2368, %v2570
  %2572 = vmatmul.bf16.gmra.mxu0 %v1980
  %v2573 = vpop.f32.mrf.mxu0
  %v2574 = vadd.f32 %v2371, %v2573
  %v2575 = vpop.f32.mrf.mxu0
  %v2576 = vadd.f32 %v2373, %v2575
  %2577 = vmatmul.bf16.gmra.mxu0 %v1983
  %v2578 = vpop.f32.mrf.mxu0
  %v2579 = vadd.f32 %v2376, %v2578
  %v2580 = vpop.f32.mrf.mxu0
  %v2581 = vadd.f32 %v2378, %v2580
  %2582 = vmatmul.bf16.gmra.mxu0 %v1986
  %v2583 = vpop.f32.mrf.mxu0
  %v2584 = vadd.f32 %v2381, %v2583
  %v2585 = vpop.f32.mrf.mxu0
  %v2586 = vadd.f32 %v2383, %v2585
  %2587 = vmatmul.bf16.gmra.mxu0 %v1989
  %v2588 = vpop.f32.mrf.mxu0
  %v2589 = vadd.f32 %v2386, %v2588
  %v2590 = vpop.f32.mrf.mxu0
  %v2591 = vadd.f32 %v2388, %v2590
  %2592 = vmatmul.bf16.gmra.mxu0 %v1992
  %v2593 = vpop.f32.mrf.mxu0
  %v2594 = vadd.f32 %v2391, %v2593
  %v2595 = vpop.f32.mrf.mxu0
  %v2596 = vadd.f32 %v2393, %v2595
  %2597 = vmatmul.bf16.gmra.mxu0 %v1995
  %v2598 = vpop.f32.mrf.mxu0
  %v2599 = vadd.f32 %v2396, %v2598
  %v2600 = vpop.f32.mrf.mxu0
  %v2601 = vadd.f32 %v2398, %v2600
  %2602 = vmatmul.bf16.gmra.mxu0 %v1998
  %v2603 = vpop.f32.mrf.mxu0
  %v2604 = vadd.f32 %v2401, %v2603
  %v2605 = vpop.f32.mrf.mxu0
  %v2606 = vadd.f32 %v2403, %v2605
  %2607 = vmatmul.bf16.gmra.mxu0 %v2001
  %v2608 = vpop.f32.mrf.mxu0
  %v2609 = vadd.f32 %v2406, %v2608
  %v2610 = vpop.f32.mrf.mxu0
  %v2611 = vadd.f32 %v2408, %v2610
  %2612 = vmatmul.bf16.gmra.mxu0 %v2004
  %v2613 = vpop.f32.mrf.mxu0
  %v2614 = vadd.f32 %v2411, %v2613
  %v2615 = vpop.f32.mrf.mxu0
  %v2616 = vadd.f32 %v2413, %v2615
  %2617 = vmatmul.bf16.gmra.mxu0 %v2007
  %v2618 = vpop.f32.mrf.mxu0
  %v2619 = vadd.f32 %v2416, %v2618
  %v2620 = vpop.f32.mrf.mxu0
  %2621 = vdwg.mxu0
  %v2622 = vld [vmem:[%s4] sm:$0x1]
  %v2624 = vperm.slane %v2622, 0
  %v2626 = vadd.f32 %v2429, %v2624
  %v2627 = vadd.f32 %v2431, %v2624
  %v2628 = vadd.f32 %v2434, %v2624
  %v2629 = vadd.f32 %v2436, %v2624
  %v2630 = vadd.f32 %v2439, %v2624
  %v2631 = vadd.f32 %v2441, %v2624
  %v2632 = vadd.f32 %v2444, %v2624
  %v2633 = vadd.f32 %v2446, %v2624
  %v2634 = vadd.f32 %v2449, %v2624
  %v2635 = vadd.f32 %v2451, %v2624
  %v2636 = vadd.f32 %v2454, %v2624
  %v2637 = vadd.f32 %v2456, %v2624
  %v2638 = vadd.f32 %v2459, %v2624
  %v2639 = vadd.f32 %v2461, %v2624
  %v2640 = vadd.f32 %v2464, %v2624
  %v2641 = vadd.f32 %v2466, %v2624
  %v2642 = vadd.f32 %v2469, %v2624
  %v2643 = vadd.f32 %v2471, %v2624
  %v2644 = vadd.f32 %v2474, %v2624
  %v2645 = vadd.f32 %v2476, %v2624
  %v2646 = vadd.f32 %v2479, %v2624
  %v2647 = vadd.f32 %v2481, %v2624
  %v2648 = vadd.f32 %v2484, %v2624
  %v2649 = vadd.f32 %v2486, %v2624
  %v2650 = vadd.f32 %v2489, %v2624
  %v2651 = vadd.f32 %v2491, %v2624
  %v2652 = vadd.f32 %v2494, %v2624
  %v2653 = vadd.f32 %v2496, %v2624
  %v2654 = vadd.f32 %v2499, %v2624
  %v2655 = vadd.f32 %v2501, %v2624
  %v2656 = vadd.f32 %v2504, %v2624
  %v2657 = vadd.f32 %v2506, %v2624
  %v2658 = vadd.f32 %v2509, %v2624
  %v2659 = vadd.f32 %v2511, %v2624
  %v2660 = vadd.f32 %v2514, %v2624
  %v2661 = vadd.f32 %v2516, %v2624
  %v2662 = vadd.f32 %v2519, %v2624
  %v2663 = vadd.f32 %v2521, %v2624
  %v2664 = vadd.f32 %v2524, %v2624
  %v2665 = vadd.f32 %v2526, %v2624
  %v2666 = vadd.f32 %v2529, %v2624
  %v2667 = vadd.f32 %v2531, %v2624
  %v2668 = vadd.f32 %v2534, %v2624
  %v2669 = vadd.f32 %v2536, %v2624
  %v2670 = vadd.f32 %v2539, %v2624
  %v2671 = vadd.f32 %v2541, %v2624
  %v2672 = vadd.f32 %v2544, %v2624
  %v2673 = vadd.f32 %v2546, %v2624
  %v2674 = vadd.f32 %v2549, %v2624
  %v2675 = vadd.f32 %v2551, %v2624
  %v2676 = vadd.f32 %v2554, %v2624
  %v2677 = vadd.f32 %v2556, %v2624
  %v2678 = vadd.f32 %v2559, %v2624
  %v2679 = vadd.f32 %v2561, %v2624
  %v2680 = vadd.f32 %v2564, %v2624
  %v2681 = vadd.f32 %v2566, %v2624
  %v2682 = vadd.f32 %v2569, %v2624
  %v2683 = vadd.f32 %v2571, %v2624
  %v2684 = vadd.f32 %v2574, %v2624
  %v2685 = vadd.f32 %v2576, %v2624
  %v2686 = vadd.f32 %v2579, %v2624
  %v2687 = vadd.f32 %v2581, %v2624
  %v2688 = vadd.f32 %v2584, %v2624
  %v2689 = vadd.f32 %v2586, %v2624
  %v2690 = vadd.f32 %v2589, %v2624
  %v2691 = vadd.f32 %v2591, %v2624
  %v2692 = vadd.f32 %v2594, %v2624
  %v2693 = vadd.f32 %v2596, %v2624
  %v2694 = vadd.f32 %v2599, %v2624
  %v2695 = vadd.f32 %v2601, %v2624
  %v2696 = vadd.f32 %v2604, %v2624
  %v2697 = vadd.f32 %v2606, %v2624
  %v2698 = vadd.f32 %v2609, %v2624
  %v2699 = vadd.f32 %v2611, %v2624
  %v2700 = vadd.f32 %v2614, %v2624
  %v2701 = vadd.f32 %v2616, %v2624
  %v2702 = vadd.f32 %v2619, %v2624
  %v2703 = vtanh.pop %v2626
  %v2704 = vtanh.pop %v2627
  %v2705 = vtanh.pop %v2628
  %v2706 = vtanh.pop %v2629
  %v2707 = vtanh.pop %v2630
  %v2708 = vtanh.pop %v2631
  %v2709 = vtanh.pop %v2632
  %v2710 = vtanh.pop %v2633
  %v2711 = vtanh.pop %v2634
  %v2712 = vtanh.pop %v2635
  %v2713 = vtanh.pop %v2636
  %v2714 = vtanh.pop %v2637
  %v2715 = vtanh.pop %v2638
  %v2716 = vtanh.pop %v2639
  %v2717 = vtanh.pop %v2640
  %v2718 = vtanh.pop %v2641
  %v2719 = vtanh.pop %v2642
  %v2720 = vtanh.pop %v2643
  %v2721 = vtanh.pop %v2644
  %v2722 = vtanh.pop %v2645
  %v2723 = vtanh.pop %v2646
  %v2724 = vtanh.pop %v2647
  %v2725 = vtanh.pop %v2648
  %v2726 = vtanh.pop %v2649
  %v2727 = vtanh.pop %v2650
  %v2728 = vtanh.pop %v2651
  %v2729 = vtanh.pop %v2652
  %v2730 = vtanh.pop %v2653
  %v2731 = vtanh.pop %v2654
  %v2732 = vtanh.pop %v2655
  %v2733 = vtanh.pop %v2656
  %v2734 = vtanh.pop %v2657
  %v2735 = vtanh.pop %v2658
  %v2736 = vtanh.pop %v2659
  %v2737 = vtanh.pop %v2660
  %v2738 = vtanh.pop %v2661
  %v2739 = vtanh.pop %v2662
  %v2740 = vtanh.pop %v2663
  %v2741 = vtanh.pop %v2664
  %v2742 = vtanh.pop %v2665
  %v2743 = vtanh.pop %v2666
  %v2744 = vtanh.pop %v2667
  %v2745 = vtanh.pop %v2668
  %v2746 = vtanh.pop %v2669
  %v2747 = vtanh.pop %v2670
  %v2748 = vtanh.pop %v2671
  %v2749 = vtanh.pop %v2672
  %v2750 = vtanh.pop %v2673
  %v2751 = vtanh.pop %v2674
  %v2752 = vtanh.pop %v2675
  %v2753 = vtanh.pop %v2676
  %v2754 = vtanh.pop %v2677
  %v2755 = vtanh.pop %v2678
  %v2756 = vtanh.pop %v2679
  %v2757 = vtanh.pop %v2680
  %v2758 = vtanh.pop %v2681
  %v2759 = vtanh.pop %v2682
  %v2760 = vtanh.pop %v2683
  %v2761 = vtanh.pop %v2684
  %v2762 = vtanh.pop %v2685
  %v2763 = vtanh.pop %v2686
  %v2764 = vtanh.pop %v2687
  %v2765 = vtanh.pop %v2688
  %v2766 = vtanh.pop %v2689
  %v2767 = vtanh.pop %v2690
  %v2768 = vtanh.pop %v2691
  %v2769 = vtanh.pop %v2692
  %v2770 = vtanh.pop %v2693
  %v2771 = vtanh.pop %v2694
  %v2772 = vtanh.pop %v2695
  %v2773 = vtanh.pop %v2696
  %v2774 = vtanh.pop %v2697
  %v2775 = vtanh.pop %v2698
  %v2776 = vtanh.pop %v2699
  %v2777 = vtanh.pop %v2700
  %v2778 = vtanh.pop %v2701
  %v2779 = vtanh.pop %v2702
  %v2780 = vxor.u32 %v2626, 2147483648
  %v2781 = vxor.u32 %v2627, 2147483648
  %v2782 = vxor.u32 %v2628, 2147483648
  %v2783 = vxor.u32 %v2629, 2147483648
  %v2784 = vxor.u32 %v2630, 2147483648
  %v2785 = vxor.u32 %v2631, 2147483648
  %v2786 = vxor.u32 %v2632, 2147483648
  %v2787 = vxor.u32 %v2633, 2147483648
  %v2788 = vxor.u32 %v2634, 2147483648
  %v2789 = vxor.u32 %v2635, 2147483648
  %v2790 = vxor.u32 %v2636, 2147483648
  %v2791 = vxor.u32 %v2637, 2147483648
  %v2792 = vxor.u32 %v2638, 2147483648
  %v2793 = vxor.u32 %v2639, 2147483648
  %v2794 = vxor.u32 %v2640, 2147483648
  %v2795 = vxor.u32 %v2641, 2147483648
  %v2796 = vxor.u32 %v2642, 2147483648
  %v2797 = vxor.u32 %v2643, 2147483648
  %v2798 = vxor.u32 %v2644, 2147483648
  %v2799 = vxor.u32 %v2645, 2147483648
  %v2800 = vxor.u32 %v2646, 2147483648
  %v2801 = vxor.u32 %v2647, 2147483648
  %v2802 = vxor.u32 %v2648, 2147483648
  %v2803 = vxor.u32 %v2649, 2147483648
  %v2804 = vxor.u32 %v2650, 2147483648
  %v2805 = vxor.u32 %v2651, 2147483648
  %v2806 = vxor.u32 %v2652, 2147483648
  %v2807 = vxor.u32 %v2653, 2147483648
  %v2808 = vxor.u32 %v2654, 2147483648
  %v2809 = vxor.u32 %v2655, 2147483648
  %v2810 = vxor.u32 %v2656, 2147483648
  %v2811 = vxor.u32 %v2657, 2147483648
  %v2812 = vxor.u32 %v2658, 2147483648
  %v2813 = vxor.u32 %v2659, 2147483648
  %v2814 = vxor.u32 %v2660, 2147483648
  %v2815 = vxor.u32 %v2661, 2147483648
  %v2816 = vxor.u32 %v2662, 2147483648
  %v2817 = vxor.u32 %v2663, 2147483648
  %v2818 = vxor.u32 %v2664, 2147483648
  %v2819 = vxor.u32 %v2665, 2147483648
  %v2820 = vxor.u32 %v2666, 2147483648
  %v2821 = vxor.u32 %v2667, 2147483648
  %v2822 = vxor.u32 %v2668, 2147483648
  %v2823 = vxor.u32 %v2669, 2147483648
  %v2824 = vxor.u32 %v2670, 2147483648
  %v2825 = vxor.u32 %v2671, 2147483648
  %v2826 = vxor.u32 %v2672, 2147483648
  %v2827 = vxor.u32 %v2673, 2147483648
  %v2828 = vxor.u32 %v2674, 2147483648
  %v2829 = vxor.u32 %v2675, 2147483648
  %v2830 = vxor.u32 %v2676, 2147483648
  %v2831 = vxor.u32 %v2677, 2147483648
  %v2832 = vxor.u32 %v2678, 2147483648
  %v2833 = vxor.u32 %v2679, 2147483648
  %v2834 = vxor.u32 %v2680, 2147483648
  %v2835 = vxor.u32 %v2681, 2147483648
  %v2836 = vxor.u32 %v2682, 2147483648
  %v2837 = vxor.u32 %v2683, 2147483648
  %v2838 = vxor.u32 %v2684, 2147483648
  %v2839 = vxor.u32 %v2685, 2147483648
  %v2840 = vxor.u32 %v2686, 2147483648
  %v2841 = vxor.u32 %v2687, 2147483648
  %v2842 = vxor.u32 %v2688, 2147483648
  %v2843 = vxor.u32 %v2689, 2147483648
  %v2844 = vxor.u32 %v2690, 2147483648
  %v2845 = vxor.u32 %v2691, 2147483648
  %v2846 = vxor.u32 %v2692, 2147483648
  %v2847 = vxor.u32 %v2693, 2147483648
  %v2848 = vxor.u32 %v2694, 2147483648
  %v2849 = vxor.u32 %v2695, 2147483648
  %v2850 = vxor.u32 %v2696, 2147483648
  %v2851 = vxor.u32 %v2697, 2147483648
  %v2852 = vxor.u32 %v2698, 2147483648
  %v2853 = vxor.u32 %v2699, 2147483648
  %v2854 = vxor.u32 %v2700, 2147483648
  %v2855 = vxor.u32 %v2701, 2147483648
  %v2856 = vxor.u32 %v2702, 2147483648
  %v2857 = vmul.f32 %v2780, 1.442695
  %v2858 = vpow.pop %v2857
  %v2859 = vmul.f32 %v2781, 1.442695
  %v2860 = vpow.pop %v2859
  %v2861 = vmul.f32 %v2782, 1.442695
  %v2862 = vpow.pop %v2861
  %v2863 = vmul.f32 %v2783, 1.442695
  %v2864 = vpow.pop %v2863
  %v2865 = vmul.f32 %v2784, 1.442695
  %v2866 = vpow.pop %v2865
  %v2867 = vmul.f32 %v2785, 1.442695
  %v2868 = vpow.pop %v2867
  %v2869 = vmul.f32 %v2786, 1.442695
  %v2870 = vpow.pop %v2869
  %v2871 = vmul.f32 %v2787, 1.442695
  %v2872 = vpow.pop %v2871
  %v2873 = vmul.f32 %v2788, 1.442695
  %v2874 = vpow.pop %v2873
  %v2875 = vmul.f32 %v2789, 1.442695
  %v2876 = vpow.pop %v2875
  %v2877 = vmul.f32 %v2790, 1.442695
  %v2878 = vpow.pop %v2877
  %v2879 = vmul.f32 %v2791, 1.442695
  %v2880 = vpow.pop %v2879
  %v2881 = vmul.f32 %v2792, 1.442695
  %v2882 = vpow.pop %v2881
  %v2883 = vmul.f32 %v2793, 1.442695
  %v2884 = vpow.pop %v2883
  %v2885 = vmul.f32 %v2794, 1.442695
  %v2886 = vpow.pop %v2885
  %v2887 = vmul.f32 %v2795, 1.442695
  %v2888 = vpow.pop %v2887
  %v2889 = vmul.f32 %v2796, 1.442695
  %v2890 = vpow.pop %v2889
  %v2891 = vmul.f32 %v2797, 1.442695
  %v2892 = vpow.pop %v2891
  %v2893 = vmul.f32 %v2798, 1.442695
  %v2894 = vpow.pop %v2893
  %v2895 = vmul.f32 %v2799, 1.442695
  %v2896 = vpow.pop %v2895
  %v2897 = vmul.f32 %v2800, 1.442695
  %v2898 = vpow.pop %v2897
  %v2899 = vmul.f32 %v2801, 1.442695
  %v2900 = vpow.pop %v2899
  %v2901 = vmul.f32 %v2802, 1.442695
  %v2902 = vpow.pop %v2901
  %v2903 = vmul.f32 %v2803, 1.442695
  %v2904 = vpow.pop %v2903
  %v2905 = vmul.f32 %v2804, 1.442695
  %v2906 = vpow.pop %v2905
  %v2907 = vmul.f32 %v2805, 1.442695
  %v2908 = vpow.pop %v2907
  %v2909 = vmul.f32 %v2806, 1.442695
  %v2910 = vpow.pop %v2909
  %v2911 = vmul.f32 %v2807, 1.442695
  %v2912 = vpow.pop %v2911
  %v2913 = vmul.f32 %v2808, 1.442695
  %v2914 = vpow.pop %v2913
  %v2915 = vmul.f32 %v2809, 1.442695
  %v2916 = vpow.pop %v2915
  %v2917 = vmul.f32 %v2810, 1.442695
  %v2918 = vpow.pop %v2917
  %v2919 = vmul.f32 %v2811, 1.442695
  %v2920 = vpow.pop %v2919
  %v2921 = vmul.f32 %v2812, 1.442695
  %v2922 = vpow.pop %v2921
  %v2923 = vmul.f32 %v2813, 1.442695
  %v2924 = vpow.pop %v2923
  %v2925 = vmul.f32 %v2814, 1.442695
  %v2926 = vpow.pop %v2925
  %v2927 = vmul.f32 %v2815, 1.442695
  %v2928 = vpow.pop %v2927
  %v2929 = vmul.f32 %v2816, 1.442695
  %v2930 = vpow.pop %v2929
  %v2931 = vmul.f32 %v2817, 1.442695
  %v2932 = vpow.pop %v2931
  %v2933 = vmul.f32 %v2818, 1.442695
  %v2934 = vpow.pop %v2933
  %v2935 = vmul.f32 %v2819, 1.442695
  %v2936 = vpow.pop %v2935
  %v2937 = vmul.f32 %v2820, 1.442695
  %v2938 = vpow.pop %v2937
  %v2939 = vmul.f32 %v2821, 1.442695
  %v2940 = vpow.pop %v2939
  %v2941 = vmul.f32 %v2822, 1.442695
  %v2942 = vpow.pop %v2941
  %v2943 = vmul.f32 %v2823, 1.442695
  %v2944 = vpow.pop %v2943
  %v2945 = vmul.f32 %v2824, 1.442695
  %v2946 = vpow.pop %v2945
  %v2947 = vmul.f32 %v2825, 1.442695
  %v2948 = vpow.pop %v2947
  %v2949 = vmul.f32 %v2826, 1.442695
  %v2950 = vpow.pop %v2949
  %v2951 = vmul.f32 %v2827, 1.442695
  %v2952 = vpow.pop %v2951
  %v2953 = vmul.f32 %v2828, 1.442695
  %v2954 = vpow.pop %v2953
  %v2955 = vmul.f32 %v2829, 1.442695
  %v2956 = vpow.pop %v2955
  %v2957 = vmul.f32 %v2830, 1.442695
  %v2958 = vpow.pop %v2957
  %v2959 = vmul.f32 %v2831, 1.442695
  %v2960 = vpow.pop %v2959
  %v2961 = vmul.f32 %v2832, 1.442695
  %v2962 = vpow.pop %v2961
  %v2963 = vmul.f32 %v2833, 1.442695
  %v2964 = vpow.pop %v2963
  %v2965 = vmul.f32 %v2834, 1.442695
  %v2966 = vpow.pop %v2965
  %v2967 = vmul.f32 %v2835, 1.442695
  %v2968 = vpow.pop %v2967
  %v2969 = vmul.f32 %v2836, 1.442695
  %v2970 = vpow.pop %v2969
  %v2971 = vmul.f32 %v2837, 1.442695
  %v2972 = vpow.pop %v2971
  %v2973 = vmul.f32 %v2838, 1.442695
  %v2974 = vpow.pop %v2973
  %v2975 = vmul.f32 %v2839, 1.442695
  %v2976 = vpow.pop %v2975
  %v2977 = vmul.f32 %v2840, 1.442695
  %v2978 = vpow.pop %v2977
  %v2979 = vmul.f32 %v2841, 1.442695
  %v2980 = vpow.pop %v2979
  %v2981 = vmul.f32 %v2842, 1.442695
  %v2982 = vpow.pop %v2981
  %v2983 = vmul.f32 %v2843, 1.442695
  %v2984 = vpow.pop %v2983
  %v2985 = vmul.f32 %v2844, 1.442695
  %v2986 = vpow.pop %v2985
  %v2987 = vmul.f32 %v2845, 1.442695
  %v2988 = vpow.pop %v2987
  %v2989 = vmul.f32 %v2846, 1.442695
  %v2990 = vpow.pop %v2989
  %v2991 = vmul.f32 %v2847, 1.442695
  %v2992 = vpow.pop %v2991
  %v2993 = vmul.f32 %v2848, 1.442695
  %v2994 = vpow.pop %v2993
  %v2995 = vmul.f32 %v2849, 1.442695
  %v2996 = vpow.pop %v2995
  %v2997 = vmul.f32 %v2850, 1.442695
  %v2998 = vpow.pop %v2997
  %v2999 = vmul.f32 %v2851, 1.442695
  %v3000 = vpow.pop %v2999
  %v3001 = vmul.f32 %v2852, 1.442695
  %v3002 = vpow.pop %v3001
  %v3003 = vmul.f32 %v2853, 1.442695
  %v3004 = vpow.pop %v3003
  %v3005 = vmul.f32 %v2854, 1.442695
  %v3006 = vpow.pop %v3005
  %v3007 = vmul.f32 %v2855, 1.442695
  %v3008 = vpow.pop %v3007
  %v3009 = vmul.f32 %v2856, 1.442695
  %v3010 = vpow.pop %v3009
  %v3011 = vadd.f32 %v2858, 1.0
  %v3012 = vadd.f32 %v2860, 1.0
  %v3013 = vadd.f32 %v2862, 1.0
  %v3014 = vadd.f32 %v2864, 1.0
  %v3015 = vadd.f32 %v2866, 1.0
  %v3016 = vadd.f32 %v2868, 1.0
  %v3017 = vadd.f32 %v2870, 1.0
  %v3018 = vadd.f32 %v2872, 1.0
  %v3019 = vadd.f32 %v2874, 1.0
  %v3020 = vadd.f32 %v2876, 1.0
  %v3021 = vadd.f32 %v2878, 1.0
  %v3022 = vadd.f32 %v2880, 1.0
  %v3023 = vadd.f32 %v2882, 1.0
  %v3024 = vadd.f32 %v2884, 1.0
  %v3025 = vadd.f32 %v2886, 1.0
  %v3026 = vadd.f32 %v2888, 1.0
  %v3027 = vadd.f32 %v2890, 1.0
  %v3028 = vadd.f32 %v2892, 1.0
  %v3029 = vadd.f32 %v2894, 1.0
  %v3030 = vadd.f32 %v2896, 1.0
  %v3031 = vadd.f32 %v2898, 1.0
  %v3032 = vadd.f32 %v2900, 1.0
  %v3033 = vadd.f32 %v2902, 1.0
  %v3034 = vadd.f32 %v2904, 1.0
  %v3035 = vadd.f32 %v2906, 1.0
  %v3036 = vadd.f32 %v2908, 1.0
  %v3037 = vadd.f32 %v2910, 1.0
  %v3038 = vadd.f32 %v2912, 1.0
  %v3039 = vadd.f32 %v2914, 1.0
  %v3040 = vadd.f32 %v2916, 1.0
  %v3041 = vadd.f32 %v2918, 1.0
  %v3042 = vadd.f32 %v2920, 1.0
  %v3043 = vadd.f32 %v2922, 1.0
  %v3044 = vadd.f32 %v2924, 1.0
  %v3045 = vadd.f32 %v2926, 1.0
  %v3046 = vadd.f32 %v2928, 1.0
  %v3047 = vadd.f32 %v2930, 1.0
  %v3048 = vadd.f32 %v2932, 1.0
  %v3049 = vadd.f32 %v2934, 1.0
  %v3050 = vadd.f32 %v2936, 1.0
  %v3051 = vadd.f32 %v2938, 1.0
  %v3052 = vadd.f32 %v2940, 1.0
  %v3053 = vadd.f32 %v2942, 1.0
  %v3054 = vadd.f32 %v2944, 1.0
  %v3055 = vadd.f32 %v2946, 1.0
  %v3056 = vadd.f32 %v2948, 1.0
  %v3057 = vadd.f32 %v2950, 1.0
  %v3058 = vadd.f32 %v2952, 1.0
  %v3059 = vadd.f32 %v2954, 1.0
  %v3060 = vadd.f32 %v2956, 1.0
  %v3061 = vadd.f32 %v2958, 1.0
  %v3062 = vadd.f32 %v2960, 1.0
  %v3063 = vadd.f32 %v2962, 1.0
  %v3064 = vadd.f32 %v2964, 1.0
  %v3065 = vadd.f32 %v2966, 1.0
  %v3066 = vadd.f32 %v2968, 1.0
  %v3067 = vadd.f32 %v2970, 1.0
  %v3068 = vadd.f32 %v2972, 1.0
  %v3069 = vadd.f32 %v2974, 1.0
  %v3070 = vadd.f32 %v2976, 1.0
  %v3071 = vadd.f32 %v2978, 1.0
  %v3072 = vadd.f32 %v2980, 1.0
  %v3073 = vadd.f32 %v2982, 1.0
  %v3074 = vadd.f32 %v2984, 1.0
  %v3075 = vadd.f32 %v2986, 1.0
  %v3076 = vadd.f32 %v2988, 1.0
  %v3077 = vadd.f32 %v2990, 1.0
  %v3078 = vadd.f32 %v2992, 1.0
  %v3079 = vadd.f32 %v2994, 1.0
  %v3080 = vadd.f32 %v2996, 1.0
  %v3081 = vadd.f32 %v2998, 1.0
  %v3082 = vadd.f32 %v3000, 1.0
  %v3083 = vadd.f32 %v3002, 1.0
  %v3084 = vadd.f32 %v3004, 1.0
  %v3085 = vadd.f32 %v3006, 1.0
  %v3086 = vadd.f32 %v3008, 1.0
  %v3087 = vadd.f32 %v3010, 1.0
  %v3088 = vrcp.pop %v3011
  %v3089 = vmul.f32 %v3011, %v3088
  %v3090 = vsub.f32 1.0, %v3089
  %v3091 = vmul.f32 %v3088, %v3090
  %v3092 = vadd.f32 %v3088, %v3091
  %vm3093 = vweird.f32 %v3011
  %vm3094 = vweird.f32 %v3088
  %vm3095 = vmor %vm3093, %vm3094
  %v3096 = vsel %vm3095, %v3088, %v3092
  %v3097 = vand.u32 2147483647, %v3011
  %vm3098 = vcmp.eq.f32.partialorder %v3097, 8.507059e+37
  %v3099 = vand.u32 %v3011, 2147483648
  %v3100 = vor.u32 1.1754944e-38, %v3099
  %v3101 = vsel %vm3098, %v3100, %v3096
  %v3102 = vmul.f32 1.0, %v3101
  %v3103 = vrcp.pop %v3012
  %v3104 = vmul.f32 %v3012, %v3103
  %v3105 = vsub.f32 1.0, %v3104
  %v3106 = vmul.f32 %v3103, %v3105
  %v3107 = vadd.f32 %v3103, %v3106
  %vm3108 = vweird.f32 %v3012
  %vm3109 = vweird.f32 %v3103
  %vm3110 = vmor %vm3108, %vm3109
  %v3111 = vsel %vm3110, %v3103, %v3107
  %v3112 = vand.u32 2147483647, %v3012
  %vm3113 = vcmp.eq.f32.partialorder %v3112, 8.507059e+37
  %v3114 = vand.u32 %v3012, 2147483648
  %v3115 = vor.u32 1.1754944e-38, %v3114
  %v3116 = vsel %vm3113, %v3115, %v3111
  %v3117 = vmul.f32 1.0, %v3116
  %v3118 = vrcp.pop %v3013
  %v3119 = vmul.f32 %v3013, %v3118
  %v3120 = vsub.f32 1.0, %v3119
  %v3121 = vmul.f32 %v3118, %v3120
  %v3122 = vadd.f32 %v3118, %v3121
  %vm3123 = vweird.f32 %v3013
  %vm3124 = vweird.f32 %v3118
  %vm3125 = vmor %vm3123, %vm3124
  %v3126 = vsel %vm3125, %v3118, %v3122
  %v3127 = vand.u32 2147483647, %v3013
  %vm3128 = vcmp.eq.f32.partialorder %v3127, 8.507059e+37
  %v3129 = vand.u32 %v3013, 2147483648
  %v3130 = vor.u32 1.1754944e-38, %v3129
  %v3131 = vsel %vm3128, %v3130, %v3126
  %v3132 = vmul.f32 1.0, %v3131
  %v3133 = vrcp.pop %v3014
  %v3134 = vmul.f32 %v3014, %v3133
  %v3135 = vsub.f32 1.0, %v3134
  %v3136 = vmul.f32 %v3133, %v3135
  %v3137 = vadd.f32 %v3133, %v3136
  %vm3138 = vweird.f32 %v3014
  %vm3139 = vweird.f32 %v3133
  %vm3140 = vmor %vm3138, %vm3139
  %v3141 = vsel %vm3140, %v3133, %v3137
  %v3142 = vand.u32 2147483647, %v3014
  %vm3143 = vcmp.eq.f32.partialorder %v3142, 8.507059e+37
  %v3144 = vand.u32 %v3014, 2147483648
  %v3145 = vor.u32 1.1754944e-38, %v3144
  %v3146 = vsel %vm3143, %v3145, %v3141
  %v3147 = vmul.f32 1.0, %v3146
  %v3148 = vrcp.pop %v3015
  %v3149 = vmul.f32 %v3015, %v3148
  %v3150 = vsub.f32 1.0, %v3149
  %v3151 = vmul.f32 %v3148, %v3150
  %v3152 = vadd.f32 %v3148, %v3151
  %vm3153 = vweird.f32 %v3015
  %vm3154 = vweird.f32 %v3148
  %vm3155 = vmor %vm3153, %vm3154
  %v3156 = vsel %vm3155, %v3148, %v3152
  %v3157 = vand.u32 2147483647, %v3015
  %vm3158 = vcmp.eq.f32.partialorder %v3157, 8.507059e+37
  %v3159 = vand.u32 %v3015, 2147483648
  %v3160 = vor.u32 1.1754944e-38, %v3159
  %v3161 = vsel %vm3158, %v3160, %v3156
  %v3162 = vmul.f32 1.0, %v3161
  %v3163 = vrcp.pop %v3016
  %v3164 = vmul.f32 %v3016, %v3163
  %v3165 = vsub.f32 1.0, %v3164
  %v3166 = vmul.f32 %v3163, %v3165
  %v3167 = vadd.f32 %v3163, %v3166
  %vm3168 = vweird.f32 %v3016
  %vm3169 = vweird.f32 %v3163
  %vm3170 = vmor %vm3168, %vm3169
  %v3171 = vsel %vm3170, %v3163, %v3167
  %v3172 = vand.u32 2147483647, %v3016
  %vm3173 = vcmp.eq.f32.partialorder %v3172, 8.507059e+37
  %v3174 = vand.u32 %v3016, 2147483648
  %v3175 = vor.u32 1.1754944e-38, %v3174
  %v3176 = vsel %vm3173, %v3175, %v3171
  %v3177 = vmul.f32 1.0, %v3176
  %v3178 = vrcp.pop %v3017
  %v3179 = vmul.f32 %v3017, %v3178
  %v3180 = vsub.f32 1.0, %v3179
  %v3181 = vmul.f32 %v3178, %v3180
  %v3182 = vadd.f32 %v3178, %v3181
  %vm3183 = vweird.f32 %v3017
  %vm3184 = vweird.f32 %v3178
  %vm3185 = vmor %vm3183, %vm3184
  %v3186 = vsel %vm3185, %v3178, %v3182
  %v3187 = vand.u32 2147483647, %v3017
  %vm3188 = vcmp.eq.f32.partialorder %v3187, 8.507059e+37
  %v3189 = vand.u32 %v3017, 2147483648
  %v3190 = vor.u32 1.1754944e-38, %v3189
  %v3191 = vsel %vm3188, %v3190, %v3186
  %v3192 = vmul.f32 1.0, %v3191
  %v3193 = vrcp.pop %v3018
  %v3194 = vmul.f32 %v3018, %v3193
  %v3195 = vsub.f32 1.0, %v3194
  %v3196 = vmul.f32 %v3193, %v3195
  %v3197 = vadd.f32 %v3193, %v3196
  %vm3198 = vweird.f32 %v3018
  %vm3199 = vweird.f32 %v3193
  %vm3200 = vmor %vm3198, %vm3199
  %v3201 = vsel %vm3200, %v3193, %v3197
  %v3202 = vand.u32 2147483647, %v3018
  %vm3203 = vcmp.eq.f32.partialorder %v3202, 8.507059e+37
  %v3204 = vand.u32 %v3018, 2147483648
  %v3205 = vor.u32 1.1754944e-38, %v3204
  %v3206 = vsel %vm3203, %v3205, %v3201
  %v3207 = vmul.f32 1.0, %v3206
  %v3208 = vrcp.pop %v3019
  %v3209 = vmul.f32 %v3019, %v3208
  %v3210 = vsub.f32 1.0, %v3209
  %v3211 = vmul.f32 %v3208, %v3210
  %v3212 = vadd.f32 %v3208, %v3211
  %vm3213 = vweird.f32 %v3019
  %vm3214 = vweird.f32 %v3208
  %vm3215 = vmor %vm3213, %vm3214
  %v3216 = vsel %vm3215, %v3208, %v3212
  %v3217 = vand.u32 2147483647, %v3019
  %vm3218 = vcmp.eq.f32.partialorder %v3217, 8.507059e+37
  %v3219 = vand.u32 %v3019, 2147483648
  %v3220 = vor.u32 1.1754944e-38, %v3219
  %v3221 = vsel %vm3218, %v3220, %v3216
  %v3222 = vmul.f32 1.0, %v3221
  %v3223 = vrcp.pop %v3020
  %v3224 = vmul.f32 %v3020, %v3223
  %v3225 = vsub.f32 1.0, %v3224
  %v3226 = vmul.f32 %v3223, %v3225
  %v3227 = vadd.f32 %v3223, %v3226
  %vm3228 = vweird.f32 %v3020
  %vm3229 = vweird.f32 %v3223
  %vm3230 = vmor %vm3228, %vm3229
  %v3231 = vsel %vm3230, %v3223, %v3227
  %v3232 = vand.u32 2147483647, %v3020
  %vm3233 = vcmp.eq.f32.partialorder %v3232, 8.507059e+37
  %v3234 = vand.u32 %v3020, 2147483648
  %v3235 = vor.u32 1.1754944e-38, %v3234
  %v3236 = vsel %vm3233, %v3235, %v3231
  %v3237 = vmul.f32 1.0, %v3236
  %v3238 = vrcp.pop %v3021
  %v3239 = vmul.f32 %v3021, %v3238
  %v3240 = vsub.f32 1.0, %v3239
  %v3241 = vmul.f32 %v3238, %v3240
  %v3242 = vadd.f32 %v3238, %v3241
  %vm3243 = vweird.f32 %v3021
  %vm3244 = vweird.f32 %v3238
  %vm3245 = vmor %vm3243, %vm3244
  %v3246 = vsel %vm3245, %v3238, %v3242
  %v3247 = vand.u32 2147483647, %v3021
  %vm3248 = vcmp.eq.f32.partialorder %v3247, 8.507059e+37
  %v3249 = vand.u32 %v3021, 2147483648
  %v3250 = vor.u32 1.1754944e-38, %v3249
  %v3251 = vsel %vm3248, %v3250, %v3246
  %v3252 = vmul.f32 1.0, %v3251
  %v3253 = vrcp.pop %v3022
  %v3254 = vmul.f32 %v3022, %v3253
  %v3255 = vsub.f32 1.0, %v3254
  %v3256 = vmul.f32 %v3253, %v3255
  %v3257 = vadd.f32 %v3253, %v3256
  %vm3258 = vweird.f32 %v3022
  %vm3259 = vweird.f32 %v3253
  %vm3260 = vmor %vm3258, %vm3259
  %v3261 = vsel %vm3260, %v3253, %v3257
  %v3262 = vand.u32 2147483647, %v3022
  %vm3263 = vcmp.eq.f32.partialorder %v3262, 8.507059e+37
  %v3264 = vand.u32 %v3022, 2147483648
  %v3265 = vor.u32 1.1754944e-38, %v3264
  %v3266 = vsel %vm3263, %v3265, %v3261
  %v3267 = vmul.f32 1.0, %v3266
  %v3268 = vrcp.pop %v3023
  %v3269 = vmul.f32 %v3023, %v3268
  %v3270 = vsub.f32 1.0, %v3269
  %v3271 = vmul.f32 %v3268, %v3270
  %v3272 = vadd.f32 %v3268, %v3271
  %vm3273 = vweird.f32 %v3023
  %vm3274 = vweird.f32 %v3268
  %vm3275 = vmor %vm3273, %vm3274
  %v3276 = vsel %vm3275, %v3268, %v3272
  %v3277 = vand.u32 2147483647, %v3023
  %vm3278 = vcmp.eq.f32.partialorder %v3277, 8.507059e+37
  %v3279 = vand.u32 %v3023, 2147483648
  %v3280 = vor.u32 1.1754944e-38, %v3279
  %v3281 = vsel %vm3278, %v3280, %v3276
  %v3282 = vmul.f32 1.0, %v3281
  %v3283 = vrcp.pop %v3024
  %v3284 = vmul.f32 %v3024, %v3283
  %v3285 = vsub.f32 1.0, %v3284
  %v3286 = vmul.f32 %v3283, %v3285
  %v3287 = vadd.f32 %v3283, %v3286
  %vm3288 = vweird.f32 %v3024
  %vm3289 = vweird.f32 %v3283
  %vm3290 = vmor %vm3288, %vm3289
  %v3291 = vsel %vm3290, %v3283, %v3287
  %v3292 = vand.u32 2147483647, %v3024
  %vm3293 = vcmp.eq.f32.partialorder %v3292, 8.507059e+37
  %v3294 = vand.u32 %v3024, 2147483648
  %v3295 = vor.u32 1.1754944e-38, %v3294
  %v3296 = vsel %vm3293, %v3295, %v3291
  %v3297 = vmul.f32 1.0, %v3296
  %v3298 = vrcp.pop %v3025
  %v3299 = vmul.f32 %v3025, %v3298
  %v3300 = vsub.f32 1.0, %v3299
  %v3301 = vmul.f32 %v3298, %v3300
  %v3302 = vadd.f32 %v3298, %v3301
  %vm3303 = vweird.f32 %v3025
  %vm3304 = vweird.f32 %v3298
  %vm3305 = vmor %vm3303, %vm3304
  %v3306 = vsel %vm3305, %v3298, %v3302
  %v3307 = vand.u32 2147483647, %v3025
  %vm3308 = vcmp.eq.f32.partialorder %v3307, 8.507059e+37
  %v3309 = vand.u32 %v3025, 2147483648
  %v3310 = vor.u32 1.1754944e-38, %v3309
  %v3311 = vsel %vm3308, %v3310, %v3306
  %v3312 = vmul.f32 1.0, %v3311
  %v3313 = vrcp.pop %v3026
  %v3314 = vmul.f32 %v3026, %v3313
  %v3315 = vsub.f32 1.0, %v3314
  %v3316 = vmul.f32 %v3313, %v3315
  %v3317 = vadd.f32 %v3313, %v3316
  %vm3318 = vweird.f32 %v3026
  %vm3319 = vweird.f32 %v3313
  %vm3320 = vmor %vm3318, %vm3319
  %v3321 = vsel %vm3320, %v3313, %v3317
  %v3322 = vand.u32 2147483647, %v3026
  %vm3323 = vcmp.eq.f32.partialorder %v3322, 8.507059e+37
  %v3324 = vand.u32 %v3026, 2147483648
  %v3325 = vor.u32 1.1754944e-38, %v3324
  %v3326 = vsel %vm3323, %v3325, %v3321
  %v3327 = vmul.f32 1.0, %v3326
  %v3328 = vrcp.pop %v3027
  %v3329 = vmul.f32 %v3027, %v3328
  %v3330 = vsub.f32 1.0, %v3329
  %v3331 = vmul.f32 %v3328, %v3330
  %v3332 = vadd.f32 %v3328, %v3331
  %vm3333 = vweird.f32 %v3027
  %vm3334 = vweird.f32 %v3328
  %vm3335 = vmor %vm3333, %vm3334
  %v3336 = vsel %vm3335, %v3328, %v3332
  %v3337 = vand.u32 2147483647, %v3027
  %vm3338 = vcmp.eq.f32.partialorder %v3337, 8.507059e+37
  %v3339 = vand.u32 %v3027, 2147483648
  %v3340 = vor.u32 1.1754944e-38, %v3339
  %v3341 = vsel %vm3338, %v3340, %v3336
  %v3342 = vmul.f32 1.0, %v3341
  %v3343 = vrcp.pop %v3028
  %v3344 = vmul.f32 %v3028, %v3343
  %v3345 = vsub.f32 1.0, %v3344
  %v3346 = vmul.f32 %v3343, %v3345
  %v3347 = vadd.f32 %v3343, %v3346
  %vm3348 = vweird.f32 %v3028
  %vm3349 = vweird.f32 %v3343
  %vm3350 = vmor %vm3348, %vm3349
  %v3351 = vsel %vm3350, %v3343, %v3347
  %v3352 = vand.u32 2147483647, %v3028
  %vm3353 = vcmp.eq.f32.partialorder %v3352, 8.507059e+37
  %v3354 = vand.u32 %v3028, 2147483648
  %v3355 = vor.u32 1.1754944e-38, %v3354
  %v3356 = vsel %vm3353, %v3355, %v3351
  %v3357 = vmul.f32 1.0, %v3356
  %v3358 = vrcp.pop %v3029
  %v3359 = vmul.f32 %v3029, %v3358
  %v3360 = vsub.f32 1.0, %v3359
  %v3361 = vmul.f32 %v3358, %v3360
  %v3362 = vadd.f32 %v3358, %v3361
  %vm3363 = vweird.f32 %v3029
  %vm3364 = vweird.f32 %v3358
  %vm3365 = vmor %vm3363, %vm3364
  %v3366 = vsel %vm3365, %v3358, %v3362
  %v3367 = vand.u32 2147483647, %v3029
  %vm3368 = vcmp.eq.f32.partialorder %v3367, 8.507059e+37
  %v3369 = vand.u32 %v3029, 2147483648
  %v3370 = vor.u32 1.1754944e-38, %v3369
  %v3371 = vsel %vm3368, %v3370, %v3366
  %v3372 = vmul.f32 1.0, %v3371
  %v3373 = vrcp.pop %v3030
  %v3374 = vmul.f32 %v3030, %v3373
  %v3375 = vsub.f32 1.0, %v3374
  %v3376 = vmul.f32 %v3373, %v3375
  %v3377 = vadd.f32 %v3373, %v3376
  %vm3378 = vweird.f32 %v3030
  %vm3379 = vweird.f32 %v3373
  %vm3380 = vmor %vm3378, %vm3379
  %v3381 = vsel %vm3380, %v3373, %v3377
  %v3382 = vand.u32 2147483647, %v3030
  %vm3383 = vcmp.eq.f32.partialorder %v3382, 8.507059e+37
  %v3384 = vand.u32 %v3030, 2147483648
  %v3385 = vor.u32 1.1754944e-38, %v3384
  %v3386 = vsel %vm3383, %v3385, %v3381
  %v3387 = vmul.f32 1.0, %v3386
  %v3388 = vrcp.pop %v3031
  %v3389 = vmul.f32 %v3031, %v3388
  %v3390 = vsub.f32 1.0, %v3389
  %v3391 = vmul.f32 %v3388, %v3390
  %v3392 = vadd.f32 %v3388, %v3391
  %vm3393 = vweird.f32 %v3031
  %vm3394 = vweird.f32 %v3388
  %vm3395 = vmor %vm3393, %vm3394
  %v3396 = vsel %vm3395, %v3388, %v3392
  %v3397 = vand.u32 2147483647, %v3031
  %vm3398 = vcmp.eq.f32.partialorder %v3397, 8.507059e+37
  %v3399 = vand.u32 %v3031, 2147483648
  %v3400 = vor.u32 1.1754944e-38, %v3399
  %v3401 = vsel %vm3398, %v3400, %v3396
  %v3402 = vmul.f32 1.0, %v3401
  %v3403 = vrcp.pop %v3032
  %v3404 = vmul.f32 %v3032, %v3403
  %v3405 = vsub.f32 1.0, %v3404
  %v3406 = vmul.f32 %v3403, %v3405
  %v3407 = vadd.f32 %v3403, %v3406
  %vm3408 = vweird.f32 %v3032
  %vm3409 = vweird.f32 %v3403
  %vm3410 = vmor %vm3408, %vm3409
  %v3411 = vsel %vm3410, %v3403, %v3407
  %v3412 = vand.u32 2147483647, %v3032
  %vm3413 = vcmp.eq.f32.partialorder %v3412, 8.507059e+37
  %v3414 = vand.u32 %v3032, 2147483648
  %v3415 = vor.u32 1.1754944e-38, %v3414
  %v3416 = vsel %vm3413, %v3415, %v3411
  %v3417 = vmul.f32 1.0, %v3416
  %v3418 = vrcp.pop %v3033
  %v3419 = vmul.f32 %v3033, %v3418
  %v3420 = vsub.f32 1.0, %v3419
  %v3421 = vmul.f32 %v3418, %v3420
  %v3422 = vadd.f32 %v3418, %v3421
  %vm3423 = vweird.f32 %v3033
  %vm3424 = vweird.f32 %v3418
  %vm3425 = vmor %vm3423, %vm3424
  %v3426 = vsel %vm3425, %v3418, %v3422
  %v3427 = vand.u32 2147483647, %v3033
  %vm3428 = vcmp.eq.f32.partialorder %v3427, 8.507059e+37
  %v3429 = vand.u32 %v3033, 2147483648
  %v3430 = vor.u32 1.1754944e-38, %v3429
  %v3431 = vsel %vm3428, %v3430, %v3426
  %v3432 = vmul.f32 1.0, %v3431
  %v3433 = vrcp.pop %v3034
  %v3434 = vmul.f32 %v3034, %v3433
  %v3435 = vsub.f32 1.0, %v3434
  %v3436 = vmul.f32 %v3433, %v3435
  %v3437 = vadd.f32 %v3433, %v3436
  %vm3438 = vweird.f32 %v3034
  %vm3439 = vweird.f32 %v3433
  %vm3440 = vmor %vm3438, %vm3439
  %v3441 = vsel %vm3440, %v3433, %v3437
  %v3442 = vand.u32 2147483647, %v3034
  %vm3443 = vcmp.eq.f32.partialorder %v3442, 8.507059e+37
  %v3444 = vand.u32 %v3034, 2147483648
  %v3445 = vor.u32 1.1754944e-38, %v3444
  %v3446 = vsel %vm3443, %v3445, %v3441
  %v3447 = vmul.f32 1.0, %v3446
  %v3448 = vrcp.pop %v3035
  %v3449 = vmul.f32 %v3035, %v3448
  %v3450 = vsub.f32 1.0, %v3449
  %v3451 = vmul.f32 %v3448, %v3450
  %v3452 = vadd.f32 %v3448, %v3451
  %vm3453 = vweird.f32 %v3035
  %vm3454 = vweird.f32 %v3448
  %vm3455 = vmor %vm3453, %vm3454
  %v3456 = vsel %vm3455, %v3448, %v3452
  %v3457 = vand.u32 2147483647, %v3035
  %vm3458 = vcmp.eq.f32.partialorder %v3457, 8.507059e+37
  %v3459 = vand.u32 %v3035, 2147483648
  %v3460 = vor.u32 1.1754944e-38, %v3459
  %v3461 = vsel %vm3458, %v3460, %v3456
  %v3462 = vmul.f32 1.0, %v3461
  %v3463 = vrcp.pop %v3036
  %v3464 = vmul.f32 %v3036, %v3463
  %v3465 = vsub.f32 1.0, %v3464
  %v3466 = vmul.f32 %v3463, %v3465
  %v3467 = vadd.f32 %v3463, %v3466
  %vm3468 = vweird.f32 %v3036
  %vm3469 = vweird.f32 %v3463
  %vm3470 = vmor %vm3468, %vm3469
  %v3471 = vsel %vm3470, %v3463, %v3467
  %v3472 = vand.u32 2147483647, %v3036
  %vm3473 = vcmp.eq.f32.partialorder %v3472, 8.507059e+37
  %v3474 = vand.u32 %v3036, 2147483648
  %v3475 = vor.u32 1.1754944e-38, %v3474
  %v3476 = vsel %vm3473, %v3475, %v3471
  %v3477 = vmul.f32 1.0, %v3476
  %v3478 = vrcp.pop %v3037
  %v3479 = vmul.f32 %v3037, %v3478
  %v3480 = vsub.f32 1.0, %v3479
  %v3481 = vmul.f32 %v3478, %v3480
  %v3482 = vadd.f32 %v3478, %v3481
  %vm3483 = vweird.f32 %v3037
  %vm3484 = vweird.f32 %v3478
  %vm3485 = vmor %vm3483, %vm3484
  %v3486 = vsel %vm3485, %v3478, %v3482
  %v3487 = vand.u32 2147483647, %v3037
  %vm3488 = vcmp.eq.f32.partialorder %v3487, 8.507059e+37
  %v3489 = vand.u32 %v3037, 2147483648
  %v3490 = vor.u32 1.1754944e-38, %v3489
  %v3491 = vsel %vm3488, %v3490, %v3486
  %v3492 = vmul.f32 1.0, %v3491
  %v3493 = vrcp.pop %v3038
  %v3494 = vmul.f32 %v3038, %v3493
  %v3495 = vsub.f32 1.0, %v3494
  %v3496 = vmul.f32 %v3493, %v3495
  %v3497 = vadd.f32 %v3493, %v3496
  %vm3498 = vweird.f32 %v3038
  %vm3499 = vweird.f32 %v3493
  %vm3500 = vmor %vm3498, %vm3499
  %v3501 = vsel %vm3500, %v3493, %v3497
  %v3502 = vand.u32 2147483647, %v3038
  %vm3503 = vcmp.eq.f32.partialorder %v3502, 8.507059e+37
  %v3504 = vand.u32 %v3038, 2147483648
  %v3505 = vor.u32 1.1754944e-38, %v3504
  %v3506 = vsel %vm3503, %v3505, %v3501
  %v3507 = vmul.f32 1.0, %v3506
  %v3508 = vrcp.pop %v3039
  %v3509 = vmul.f32 %v3039, %v3508
  %v3510 = vsub.f32 1.0, %v3509
  %v3511 = vmul.f32 %v3508, %v3510
  %v3512 = vadd.f32 %v3508, %v3511
  %vm3513 = vweird.f32 %v3039
  %vm3514 = vweird.f32 %v3508
  %vm3515 = vmor %vm3513, %vm3514
  %v3516 = vsel %vm3515, %v3508, %v3512
  %v3517 = vand.u32 2147483647, %v3039
  %vm3518 = vcmp.eq.f32.partialorder %v3517, 8.507059e+37
  %v3519 = vand.u32 %v3039, 2147483648
  %v3520 = vor.u32 1.1754944e-38, %v3519
  %v3521 = vsel %vm3518, %v3520, %v3516
  %v3522 = vmul.f32 1.0, %v3521
  %v3523 = vrcp.pop %v3040
  %v3524 = vmul.f32 %v3040, %v3523
  %v3525 = vsub.f32 1.0, %v3524
  %v3526 = vmul.f32 %v3523, %v3525
  %v3527 = vadd.f32 %v3523, %v3526
  %vm3528 = vweird.f32 %v3040
  %vm3529 = vweird.f32 %v3523
  %vm3530 = vmor %vm3528, %vm3529
  %v3531 = vsel %vm3530, %v3523, %v3527
  %v3532 = vand.u32 2147483647, %v3040
  %vm3533 = vcmp.eq.f32.partialorder %v3532, 8.507059e+37
  %v3534 = vand.u32 %v3040, 2147483648
  %v3535 = vor.u32 1.1754944e-38, %v3534
  %v3536 = vsel %vm3533, %v3535, %v3531
  %v3537 = vmul.f32 1.0, %v3536
  %v3538 = vrcp.pop %v3041
  %v3539 = vmul.f32 %v3041, %v3538
  %v3540 = vsub.f32 1.0, %v3539
  %v3541 = vmul.f32 %v3538, %v3540
  %v3542 = vadd.f32 %v3538, %v3541
  %vm3543 = vweird.f32 %v3041
  %vm3544 = vweird.f32 %v3538
  %vm3545 = vmor %vm3543, %vm3544
  %v3546 = vsel %vm3545, %v3538, %v3542
  %v3547 = vand.u32 2147483647, %v3041
  %vm3548 = vcmp.eq.f32.partialorder %v3547, 8.507059e+37
  %v3549 = vand.u32 %v3041, 2147483648
  %v3550 = vor.u32 1.1754944e-38, %v3549
  %v3551 = vsel %vm3548, %v3550, %v3546
  %v3552 = vmul.f32 1.0, %v3551
  %v3553 = vrcp.pop %v3042
  %v3554 = vmul.f32 %v3042, %v3553
  %v3555 = vsub.f32 1.0, %v3554
  %v3556 = vmul.f32 %v3553, %v3555
  %v3557 = vadd.f32 %v3553, %v3556
  %vm3558 = vweird.f32 %v3042
  %vm3559 = vweird.f32 %v3553
  %vm3560 = vmor %vm3558, %vm3559
  %v3561 = vsel %vm3560, %v3553, %v3557
  %v3562 = vand.u32 2147483647, %v3042
  %vm3563 = vcmp.eq.f32.partialorder %v3562, 8.507059e+37
  %v3564 = vand.u32 %v3042, 2147483648
  %v3565 = vor.u32 1.1754944e-38, %v3564
  %v3566 = vsel %vm3563, %v3565, %v3561
  %v3567 = vmul.f32 1.0, %v3566
  %v3568 = vrcp.pop %v3043
  %v3569 = vmul.f32 %v3043, %v3568
  %v3570 = vsub.f32 1.0, %v3569
  %v3571 = vmul.f32 %v3568, %v3570
  %v3572 = vadd.f32 %v3568, %v3571
  %vm3573 = vweird.f32 %v3043
  %vm3574 = vweird.f32 %v3568
  %vm3575 = vmor %vm3573, %vm3574
  %v3576 = vsel %vm3575, %v3568, %v3572
  %v3577 = vand.u32 2147483647, %v3043
  %vm3578 = vcmp.eq.f32.partialorder %v3577, 8.507059e+37
  %v3579 = vand.u32 %v3043, 2147483648
  %v3580 = vor.u32 1.1754944e-38, %v3579
  %v3581 = vsel %vm3578, %v3580, %v3576
  %v3582 = vmul.f32 1.0, %v3581
  %v3583 = vrcp.pop %v3044
  %v3584 = vmul.f32 %v3044, %v3583
  %v3585 = vsub.f32 1.0, %v3584
  %v3586 = vmul.f32 %v3583, %v3585
  %v3587 = vadd.f32 %v3583, %v3586
  %vm3588 = vweird.f32 %v3044
  %vm3589 = vweird.f32 %v3583
  %vm3590 = vmor %vm3588, %vm3589
  %v3591 = vsel %vm3590, %v3583, %v3587
  %v3592 = vand.u32 2147483647, %v3044
  %vm3593 = vcmp.eq.f32.partialorder %v3592, 8.507059e+37
  %v3594 = vand.u32 %v3044, 2147483648
  %v3595 = vor.u32 1.1754944e-38, %v3594
  %v3596 = vsel %vm3593, %v3595, %v3591
  %v3597 = vmul.f32 1.0, %v3596
  %v3598 = vrcp.pop %v3045
  %v3599 = vmul.f32 %v3045, %v3598
  %v3600 = vsub.f32 1.0, %v3599
  %v3601 = vmul.f32 %v3598, %v3600
  %v3602 = vadd.f32 %v3598, %v3601
  %vm3603 = vweird.f32 %v3045
  %vm3604 = vweird.f32 %v3598
  %vm3605 = vmor %vm3603, %vm3604
  %v3606 = vsel %vm3605, %v3598, %v3602
  %v3607 = vand.u32 2147483647, %v3045
  %vm3608 = vcmp.eq.f32.partialorder %v3607, 8.507059e+37
  %v3609 = vand.u32 %v3045, 2147483648
  %v3610 = vor.u32 1.1754944e-38, %v3609
  %v3611 = vsel %vm3608, %v3610, %v3606
  %v3612 = vmul.f32 1.0, %v3611
  %v3613 = vrcp.pop %v3046
  %v3614 = vmul.f32 %v3046, %v3613
  %v3615 = vsub.f32 1.0, %v3614
  %v3616 = vmul.f32 %v3613, %v3615
  %v3617 = vadd.f32 %v3613, %v3616
  %vm3618 = vweird.f32 %v3046
  %vm3619 = vweird.f32 %v3613
  %vm3620 = vmor %vm3618, %vm3619
  %v3621 = vsel %vm3620, %v3613, %v3617
  %v3622 = vand.u32 2147483647, %v3046
  %vm3623 = vcmp.eq.f32.partialorder %v3622, 8.507059e+37
  %v3624 = vand.u32 %v3046, 2147483648
  %v3625 = vor.u32 1.1754944e-38, %v3624
  %v3626 = vsel %vm3623, %v3625, %v3621
  %v3627 = vmul.f32 1.0, %v3626
  %v3628 = vrcp.pop %v3047
  %v3629 = vmul.f32 %v3047, %v3628
  %v3630 = vsub.f32 1.0, %v3629
  %v3631 = vmul.f32 %v3628, %v3630
  %v3632 = vadd.f32 %v3628, %v3631
  %vm3633 = vweird.f32 %v3047
  %vm3634 = vweird.f32 %v3628
  %vm3635 = vmor %vm3633, %vm3634
  %v3636 = vsel %vm3635, %v3628, %v3632
  %v3637 = vand.u32 2147483647, %v3047
  %vm3638 = vcmp.eq.f32.partialorder %v3637, 8.507059e+37
  %v3639 = vand.u32 %v3047, 2147483648
  %v3640 = vor.u32 1.1754944e-38, %v3639
  %v3641 = vsel %vm3638, %v3640, %v3636
  %v3642 = vmul.f32 1.0, %v3641
  %v3643 = vrcp.pop %v3048
  %v3644 = vmul.f32 %v3048, %v3643
  %v3645 = vsub.f32 1.0, %v3644
  %v3646 = vmul.f32 %v3643, %v3645
  %v3647 = vadd.f32 %v3643, %v3646
  %vm3648 = vweird.f32 %v3048
  %vm3649 = vweird.f32 %v3643
  %vm3650 = vmor %vm3648, %vm3649
  %v3651 = vsel %vm3650, %v3643, %v3647
  %v3652 = vand.u32 2147483647, %v3048
  %vm3653 = vcmp.eq.f32.partialorder %v3652, 8.507059e+37
  %v3654 = vand.u32 %v3048, 2147483648
  %v3655 = vor.u32 1.1754944e-38, %v3654
  %v3656 = vsel %vm3653, %v3655, %v3651
  %v3657 = vmul.f32 1.0, %v3656
  %v3658 = vrcp.pop %v3049
  %v3659 = vmul.f32 %v3049, %v3658
  %v3660 = vsub.f32 1.0, %v3659
  %v3661 = vmul.f32 %v3658, %v3660
  %v3662 = vadd.f32 %v3658, %v3661
  %vm3663 = vweird.f32 %v3049
  %vm3664 = vweird.f32 %v3658
  %vm3665 = vmor %vm3663, %vm3664
  %v3666 = vsel %vm3665, %v3658, %v3662
  %v3667 = vand.u32 2147483647, %v3049
  %vm3668 = vcmp.eq.f32.partialorder %v3667, 8.507059e+37
  %v3669 = vand.u32 %v3049, 2147483648
  %v3670 = vor.u32 1.1754944e-38, %v3669
  %v3671 = vsel %vm3668, %v3670, %v3666
  %v3672 = vmul.f32 1.0, %v3671
  %v3673 = vrcp.pop %v3050
  %v3674 = vmul.f32 %v3050, %v3673
  %v3675 = vsub.f32 1.0, %v3674
  %v3676 = vmul.f32 %v3673, %v3675
  %v3677 = vadd.f32 %v3673, %v3676
  %vm3678 = vweird.f32 %v3050
  %vm3679 = vweird.f32 %v3673
  %vm3680 = vmor %vm3678, %vm3679
  %v3681 = vsel %vm3680, %v3673, %v3677
  %v3682 = vand.u32 2147483647, %v3050
  %vm3683 = vcmp.eq.f32.partialorder %v3682, 8.507059e+37
  %v3684 = vand.u32 %v3050, 2147483648
  %v3685 = vor.u32 1.1754944e-38, %v3684
  %v3686 = vsel %vm3683, %v3685, %v3681
  %v3687 = vmul.f32 1.0, %v3686
  %v3688 = vrcp.pop %v3051
  %v3689 = vmul.f32 %v3051, %v3688
  %v3690 = vsub.f32 1.0, %v3689
  %v3691 = vmul.f32 %v3688, %v3690
  %v3692 = vadd.f32 %v3688, %v3691
  %vm3693 = vweird.f32 %v3051
  %vm3694 = vweird.f32 %v3688
  %vm3695 = vmor %vm3693, %vm3694
  %v3696 = vsel %vm3695, %v3688, %v3692
  %v3697 = vand.u32 2147483647, %v3051
  %vm3698 = vcmp.eq.f32.partialorder %v3697, 8.507059e+37
  %v3699 = vand.u32 %v3051, 2147483648
  %v3700 = vor.u32 1.1754944e-38, %v3699
  %v3701 = vsel %vm3698, %v3700, %v3696
  %v3702 = vmul.f32 1.0, %v3701
  %v3703 = vrcp.pop %v3052
  %v3704 = vmul.f32 %v3052, %v3703
  %v3705 = vsub.f32 1.0, %v3704
  %v3706 = vmul.f32 %v3703, %v3705
  %v3707 = vadd.f32 %v3703, %v3706
  %vm3708 = vweird.f32 %v3052
  %vm3709 = vweird.f32 %v3703
  %vm3710 = vmor %vm3708, %vm3709
  %v3711 = vsel %vm3710, %v3703, %v3707
  %v3712 = vand.u32 2147483647, %v3052
  %vm3713 = vcmp.eq.f32.partialorder %v3712, 8.507059e+37
  %v3714 = vand.u32 %v3052, 2147483648
  %v3715 = vor.u32 1.1754944e-38, %v3714
  %v3716 = vsel %vm3713, %v3715, %v3711
  %v3717 = vmul.f32 1.0, %v3716
  %v3718 = vrcp.pop %v3053
  %v3719 = vmul.f32 %v3053, %v3718
  %v3720 = vsub.f32 1.0, %v3719
  %v3721 = vmul.f32 %v3718, %v3720
  %v3722 = vadd.f32 %v3718, %v3721
  %vm3723 = vweird.f32 %v3053
  %vm3724 = vweird.f32 %v3718
  %vm3725 = vmor %vm3723, %vm3724
  %v3726 = vsel %vm3725, %v3718, %v3722
  %v3727 = vand.u32 2147483647, %v3053
  %vm3728 = vcmp.eq.f32.partialorder %v3727, 8.507059e+37
  %v3729 = vand.u32 %v3053, 2147483648
  %v3730 = vor.u32 1.1754944e-38, %v3729
  %v3731 = vsel %vm3728, %v3730, %v3726
  %v3732 = vmul.f32 1.0, %v3731
  %v3733 = vrcp.pop %v3054
  %v3734 = vmul.f32 %v3054, %v3733
  %v3735 = vsub.f32 1.0, %v3734
  %v3736 = vmul.f32 %v3733, %v3735
  %v3737 = vadd.f32 %v3733, %v3736
  %vm3738 = vweird.f32 %v3054
  %vm3739 = vweird.f32 %v3733
  %vm3740 = vmor %vm3738, %vm3739
  %v3741 = vsel %vm3740, %v3733, %v3737
  %v3742 = vand.u32 2147483647, %v3054
  %vm3743 = vcmp.eq.f32.partialorder %v3742, 8.507059e+37
  %v3744 = vand.u32 %v3054, 2147483648
  %v3745 = vor.u32 1.1754944e-38, %v3744
  %v3746 = vsel %vm3743, %v3745, %v3741
  %v3747 = vmul.f32 1.0, %v3746
  %v3748 = vrcp.pop %v3055
  %v3749 = vmul.f32 %v3055, %v3748
  %v3750 = vsub.f32 1.0, %v3749
  %v3751 = vmul.f32 %v3748, %v3750
  %v3752 = vadd.f32 %v3748, %v3751
  %vm3753 = vweird.f32 %v3055
  %vm3754 = vweird.f32 %v3748
  %vm3755 = vmor %vm3753, %vm3754
  %v3756 = vsel %vm3755, %v3748, %v3752
  %v3757 = vand.u32 2147483647, %v3055
  %vm3758 = vcmp.eq.f32.partialorder %v3757, 8.507059e+37
  %v3759 = vand.u32 %v3055, 2147483648
  %v3760 = vor.u32 1.1754944e-38, %v3759
  %v3761 = vsel %vm3758, %v3760, %v3756
  %v3762 = vmul.f32 1.0, %v3761
  %v3763 = vrcp.pop %v3056
  %v3764 = vmul.f32 %v3056, %v3763
  %v3765 = vsub.f32 1.0, %v3764
  %v3766 = vmul.f32 %v3763, %v3765
  %v3767 = vadd.f32 %v3763, %v3766
  %vm3768 = vweird.f32 %v3056
  %vm3769 = vweird.f32 %v3763
  %vm3770 = vmor %vm3768, %vm3769
  %v3771 = vsel %vm3770, %v3763, %v3767
  %v3772 = vand.u32 2147483647, %v3056
  %vm3773 = vcmp.eq.f32.partialorder %v3772, 8.507059e+37
  %v3774 = vand.u32 %v3056, 2147483648
  %v3775 = vor.u32 1.1754944e-38, %v3774
  %v3776 = vsel %vm3773, %v3775, %v3771
  %v3777 = vmul.f32 1.0, %v3776
  %v3778 = vrcp.pop %v3057
  %v3779 = vmul.f32 %v3057, %v3778
  %v3780 = vsub.f32 1.0, %v3779
  %v3781 = vmul.f32 %v3778, %v3780
  %v3782 = vadd.f32 %v3778, %v3781
  %vm3783 = vweird.f32 %v3057
  %vm3784 = vweird.f32 %v3778
  %vm3785 = vmor %vm3783, %vm3784
  %v3786 = vsel %vm3785, %v3778, %v3782
  %v3787 = vand.u32 2147483647, %v3057
  %vm3788 = vcmp.eq.f32.partialorder %v3787, 8.507059e+37
  %v3789 = vand.u32 %v3057, 2147483648
  %v3790 = vor.u32 1.1754944e-38, %v3789
  %v3791 = vsel %vm3788, %v3790, %v3786
  %v3792 = vmul.f32 1.0, %v3791
  %v3793 = vrcp.pop %v3058
  %v3794 = vmul.f32 %v3058, %v3793
  %v3795 = vsub.f32 1.0, %v3794
  %v3796 = vmul.f32 %v3793, %v3795
  %v3797 = vadd.f32 %v3793, %v3796
  %vm3798 = vweird.f32 %v3058
  %vm3799 = vweird.f32 %v3793
  %vm3800 = vmor %vm3798, %vm3799
  %v3801 = vsel %vm3800, %v3793, %v3797
  %v3802 = vand.u32 2147483647, %v3058
  %vm3803 = vcmp.eq.f32.partialorder %v3802, 8.507059e+37
  %v3804 = vand.u32 %v3058, 2147483648
  %v3805 = vor.u32 1.1754944e-38, %v3804
  %v3806 = vsel %vm3803, %v3805, %v3801
  %v3807 = vmul.f32 1.0, %v3806
  %v3808 = vrcp.pop %v3059
  %v3809 = vmul.f32 %v3059, %v3808
  %v3810 = vsub.f32 1.0, %v3809
  %v3811 = vmul.f32 %v3808, %v3810
  %v3812 = vadd.f32 %v3808, %v3811
  %vm3813 = vweird.f32 %v3059
  %vm3814 = vweird.f32 %v3808
  %vm3815 = vmor %vm3813, %vm3814
  %v3816 = vsel %vm3815, %v3808, %v3812
  %v3817 = vand.u32 2147483647, %v3059
  %vm3818 = vcmp.eq.f32.partialorder %v3817, 8.507059e+37
  %v3819 = vand.u32 %v3059, 2147483648
  %v3820 = vor.u32 1.1754944e-38, %v3819
  %v3821 = vsel %vm3818, %v3820, %v3816
  %v3822 = vmul.f32 1.0, %v3821
  %v3823 = vrcp.pop %v3060
  %v3824 = vmul.f32 %v3060, %v3823
  %v3825 = vsub.f32 1.0, %v3824
  %v3826 = vmul.f32 %v3823, %v3825
  %v3827 = vadd.f32 %v3823, %v3826
  %vm3828 = vweird.f32 %v3060
  %vm3829 = vweird.f32 %v3823
  %vm3830 = vmor %vm3828, %vm3829
  %v3831 = vsel %vm3830, %v3823, %v3827
  %v3832 = vand.u32 2147483647, %v3060
  %vm3833 = vcmp.eq.f32.partialorder %v3832, 8.507059e+37
  %v3834 = vand.u32 %v3060, 2147483648
  %v3835 = vor.u32 1.1754944e-38, %v3834
  %v3836 = vsel %vm3833, %v3835, %v3831
  %v3837 = vmul.f32 1.0, %v3836
  %v3838 = vrcp.pop %v3061
  %v3839 = vmul.f32 %v3061, %v3838
  %v3840 = vsub.f32 1.0, %v3839
  %v3841 = vmul.f32 %v3838, %v3840
  %v3842 = vadd.f32 %v3838, %v3841
  %vm3843 = vweird.f32 %v3061
  %vm3844 = vweird.f32 %v3838
  %vm3845 = vmor %vm3843, %vm3844
  %v3846 = vsel %vm3845, %v3838, %v3842
  %v3847 = vand.u32 2147483647, %v3061
  %vm3848 = vcmp.eq.f32.partialorder %v3847, 8.507059e+37
  %v3849 = vand.u32 %v3061, 2147483648
  %v3850 = vor.u32 1.1754944e-38, %v3849
  %v3851 = vsel %vm3848, %v3850, %v3846
  %v3852 = vmul.f32 1.0, %v3851
  %v3853 = vrcp.pop %v3062
  %v3854 = vmul.f32 %v3062, %v3853
  %v3855 = vsub.f32 1.0, %v3854
  %v3856 = vmul.f32 %v3853, %v3855
  %v3857 = vadd.f32 %v3853, %v3856
  %vm3858 = vweird.f32 %v3062
  %vm3859 = vweird.f32 %v3853
  %vm3860 = vmor %vm3858, %vm3859
  %v3861 = vsel %vm3860, %v3853, %v3857
  %v3862 = vand.u32 2147483647, %v3062
  %vm3863 = vcmp.eq.f32.partialorder %v3862, 8.507059e+37
  %v3864 = vand.u32 %v3062, 2147483648
  %v3865 = vor.u32 1.1754944e-38, %v3864
  %v3866 = vsel %vm3863, %v3865, %v3861
  %v3867 = vmul.f32 1.0, %v3866
  %v3868 = vrcp.pop %v3063
  %v3869 = vmul.f32 %v3063, %v3868
  %v3870 = vsub.f32 1.0, %v3869
  %v3871 = vmul.f32 %v3868, %v3870
  %v3872 = vadd.f32 %v3868, %v3871
  %vm3873 = vweird.f32 %v3063
  %vm3874 = vweird.f32 %v3868
  %vm3875 = vmor %vm3873, %vm3874
  %v3876 = vsel %vm3875, %v3868, %v3872
  %v3877 = vand.u32 2147483647, %v3063
  %vm3878 = vcmp.eq.f32.partialorder %v3877, 8.507059e+37
  %v3879 = vand.u32 %v3063, 2147483648
  %v3880 = vor.u32 1.1754944e-38, %v3879
  %v3881 = vsel %vm3878, %v3880, %v3876
  %v3882 = vmul.f32 1.0, %v3881
  %v3883 = vrcp.pop %v3064
  %v3884 = vmul.f32 %v3064, %v3883
  %v3885 = vsub.f32 1.0, %v3884
  %v3886 = vmul.f32 %v3883, %v3885
  %v3887 = vadd.f32 %v3883, %v3886
  %vm3888 = vweird.f32 %v3064
  %vm3889 = vweird.f32 %v3883
  %vm3890 = vmor %vm3888, %vm3889
  %v3891 = vsel %vm3890, %v3883, %v3887
  %v3892 = vand.u32 2147483647, %v3064
  %vm3893 = vcmp.eq.f32.partialorder %v3892, 8.507059e+37
  %v3894 = vand.u32 %v3064, 2147483648
  %v3895 = vor.u32 1.1754944e-38, %v3894
  %v3896 = vsel %vm3893, %v3895, %v3891
  %v3897 = vmul.f32 1.0, %v3896
  %v3898 = vrcp.pop %v3065
  %v3899 = vmul.f32 %v3065, %v3898
  %v3900 = vsub.f32 1.0, %v3899
  %v3901 = vmul.f32 %v3898, %v3900
  %v3902 = vadd.f32 %v3898, %v3901
  %vm3903 = vweird.f32 %v3065
  %vm3904 = vweird.f32 %v3898
  %vm3905 = vmor %vm3903, %vm3904
  %v3906 = vsel %vm3905, %v3898, %v3902
  %v3907 = vand.u32 2147483647, %v3065
  %vm3908 = vcmp.eq.f32.partialorder %v3907, 8.507059e+37
  %v3909 = vand.u32 %v3065, 2147483648
  %v3910 = vor.u32 1.1754944e-38, %v3909
  %v3911 = vsel %vm3908, %v3910, %v3906
  %v3912 = vmul.f32 1.0, %v3911
  %v3913 = vrcp.pop %v3066
  %v3914 = vmul.f32 %v3066, %v3913
  %v3915 = vsub.f32 1.0, %v3914
  %v3916 = vmul.f32 %v3913, %v3915
  %v3917 = vadd.f32 %v3913, %v3916
  %vm3918 = vweird.f32 %v3066
  %vm3919 = vweird.f32 %v3913
  %vm3920 = vmor %vm3918, %vm3919
  %v3921 = vsel %vm3920, %v3913, %v3917
  %v3922 = vand.u32 2147483647, %v3066
  %vm3923 = vcmp.eq.f32.partialorder %v3922, 8.507059e+37
  %v3924 = vand.u32 %v3066, 2147483648
  %v3925 = vor.u32 1.1754944e-38, %v3924
  %v3926 = vsel %vm3923, %v3925, %v3921
  %v3927 = vmul.f32 1.0, %v3926
  %v3928 = vrcp.pop %v3067
  %v3929 = vmul.f32 %v3067, %v3928
  %v3930 = vsub.f32 1.0, %v3929
  %v3931 = vmul.f32 %v3928, %v3930
  %v3932 = vadd.f32 %v3928, %v3931
  %vm3933 = vweird.f32 %v3067
  %vm3934 = vweird.f32 %v3928
  %vm3935 = vmor %vm3933, %vm3934
  %v3936 = vsel %vm3935, %v3928, %v3932
  %v3937 = vand.u32 2147483647, %v3067
  %vm3938 = vcmp.eq.f32.partialorder %v3937, 8.507059e+37
  %v3939 = vand.u32 %v3067, 2147483648
  %v3940 = vor.u32 1.1754944e-38, %v3939
  %v3941 = vsel %vm3938, %v3940, %v3936
  %v3942 = vmul.f32 1.0, %v3941
  %v3943 = vrcp.pop %v3068
  %v3944 = vmul.f32 %v3068, %v3943
  %v3945 = vsub.f32 1.0, %v3944
  %v3946 = vmul.f32 %v3943, %v3945
  %v3947 = vadd.f32 %v3943, %v3946
  %vm3948 = vweird.f32 %v3068
  %vm3949 = vweird.f32 %v3943
  %vm3950 = vmor %vm3948, %vm3949
  %v3951 = vsel %vm3950, %v3943, %v3947
  %v3952 = vand.u32 2147483647, %v3068
  %vm3953 = vcmp.eq.f32.partialorder %v3952, 8.507059e+37
  %v3954 = vand.u32 %v3068, 2147483648
  %v3955 = vor.u32 1.1754944e-38, %v3954
  %v3956 = vsel %vm3953, %v3955, %v3951
  %v3957 = vmul.f32 1.0, %v3956
  %v3958 = vrcp.pop %v3069
  %v3959 = vmul.f32 %v3069, %v3958
  %v3960 = vsub.f32 1.0, %v3959
  %v3961 = vmul.f32 %v3958, %v3960
  %v3962 = vadd.f32 %v3958, %v3961
  %vm3963 = vweird.f32 %v3069
  %vm3964 = vweird.f32 %v3958
  %vm3965 = vmor %vm3963, %vm3964
  %v3966 = vsel %vm3965, %v3958, %v3962
  %v3967 = vand.u32 2147483647, %v3069
  %vm3968 = vcmp.eq.f32.partialorder %v3967, 8.507059e+37
  %v3969 = vand.u32 %v3069, 2147483648
  %v3970 = vor.u32 1.1754944e-38, %v3969
  %v3971 = vsel %vm3968, %v3970, %v3966
  %v3972 = vmul.f32 1.0, %v3971
  %v3973 = vrcp.pop %v3070
  %v3974 = vmul.f32 %v3070, %v3973
  %v3975 = vsub.f32 1.0, %v3974
  %v3976 = vmul.f32 %v3973, %v3975
  %v3977 = vadd.f32 %v3973, %v3976
  %vm3978 = vweird.f32 %v3070
  %vm3979 = vweird.f32 %v3973
  %vm3980 = vmor %vm3978, %vm3979
  %v3981 = vsel %vm3980, %v3973, %v3977
  %v3982 = vand.u32 2147483647, %v3070
  %vm3983 = vcmp.eq.f32.partialorder %v3982, 8.507059e+37
  %v3984 = vand.u32 %v3070, 2147483648
  %v3985 = vor.u32 1.1754944e-38, %v3984
  %v3986 = vsel %vm3983, %v3985, %v3981
  %v3987 = vmul.f32 1.0, %v3986
  %v3988 = vrcp.pop %v3071
  %v3989 = vmul.f32 %v3071, %v3988
  %v3990 = vsub.f32 1.0, %v3989
  %v3991 = vmul.f32 %v3988, %v3990
  %v3992 = vadd.f32 %v3988, %v3991
  %vm3993 = vweird.f32 %v3071
  %vm3994 = vweird.f32 %v3988
  %vm3995 = vmor %vm3993, %vm3994
  %v3996 = vsel %vm3995, %v3988, %v3992
  %v3997 = vand.u32 2147483647, %v3071
  %vm3998 = vcmp.eq.f32.partialorder %v3997, 8.507059e+37
  %v3999 = vand.u32 %v3071, 2147483648
  %v4000 = vor.u32 1.1754944e-38, %v3999
  %v4001 = vsel %vm3998, %v4000, %v3996
  %v4002 = vmul.f32 1.0, %v4001
  %v4003 = vrcp.pop %v3072
  %v4004 = vmul.f32 %v3072, %v4003
  %v4005 = vsub.f32 1.0, %v4004
  %v4006 = vmul.f32 %v4003, %v4005
  %v4007 = vadd.f32 %v4003, %v4006
  %vm4008 = vweird.f32 %v3072
  %vm4009 = vweird.f32 %v4003
  %vm4010 = vmor %vm4008, %vm4009
  %v4011 = vsel %vm4010, %v4003, %v4007
  %v4012 = vand.u32 2147483647, %v3072
  %vm4013 = vcmp.eq.f32.partialorder %v4012, 8.507059e+37
  %v4014 = vand.u32 %v3072, 2147483648
  %v4015 = vor.u32 1.1754944e-38, %v4014
  %v4016 = vsel %vm4013, %v4015, %v4011
  %v4017 = vmul.f32 1.0, %v4016
  %v4018 = vrcp.pop %v3073
  %v4019 = vmul.f32 %v3073, %v4018
  %v4020 = vsub.f32 1.0, %v4019
  %v4021 = vmul.f32 %v4018, %v4020
  %v4022 = vadd.f32 %v4018, %v4021
  %vm4023 = vweird.f32 %v3073
  %vm4024 = vweird.f32 %v4018
  %vm4025 = vmor %vm4023, %vm4024
  %v4026 = vsel %vm4025, %v4018, %v4022
  %v4027 = vand.u32 2147483647, %v3073
  %vm4028 = vcmp.eq.f32.partialorder %v4027, 8.507059e+37
  %v4029 = vand.u32 %v3073, 2147483648
  %v4030 = vor.u32 1.1754944e-38, %v4029
  %v4031 = vsel %vm4028, %v4030, %v4026
  %v4032 = vmul.f32 1.0, %v4031
  %v4033 = vrcp.pop %v3074
  %v4034 = vmul.f32 %v3074, %v4033
  %v4035 = vsub.f32 1.0, %v4034
  %v4036 = vmul.f32 %v4033, %v4035
  %v4037 = vadd.f32 %v4033, %v4036
  %vm4038 = vweird.f32 %v3074
  %vm4039 = vweird.f32 %v4033
  %vm4040 = vmor %vm4038, %vm4039
  %v4041 = vsel %vm4040, %v4033, %v4037
  %v4042 = vand.u32 2147483647, %v3074
  %vm4043 = vcmp.eq.f32.partialorder %v4042, 8.507059e+37
  %v4044 = vand.u32 %v3074, 2147483648
  %v4045 = vor.u32 1.1754944e-38, %v4044
  %v4046 = vsel %vm4043, %v4045, %v4041
  %v4047 = vmul.f32 1.0, %v4046
  %v4048 = vrcp.pop %v3075
  %v4049 = vmul.f32 %v3075, %v4048
  %v4050 = vsub.f32 1.0, %v4049
  %v4051 = vmul.f32 %v4048, %v4050
  %v4052 = vadd.f32 %v4048, %v4051
  %vm4053 = vweird.f32 %v3075
  %vm4054 = vweird.f32 %v4048
  %vm4055 = vmor %vm4053, %vm4054
  %v4056 = vsel %vm4055, %v4048, %v4052
  %v4057 = vand.u32 2147483647, %v3075
  %vm4058 = vcmp.eq.f32.partialorder %v4057, 8.507059e+37
  %v4059 = vand.u32 %v3075, 2147483648
  %v4060 = vor.u32 1.1754944e-38, %v4059
  %v4061 = vsel %vm4058, %v4060, %v4056
  %v4062 = vmul.f32 1.0, %v4061
  %v4063 = vrcp.pop %v3076
  %v4064 = vmul.f32 %v3076, %v4063
  %v4065 = vsub.f32 1.0, %v4064
  %v4066 = vmul.f32 %v4063, %v4065
  %v4067 = vadd.f32 %v4063, %v4066
  %vm4068 = vweird.f32 %v3076
  %vm4069 = vweird.f32 %v4063
  %vm4070 = vmor %vm4068, %vm4069
  %v4071 = vsel %vm4070, %v4063, %v4067
  %v4072 = vand.u32 2147483647, %v3076
  %vm4073 = vcmp.eq.f32.partialorder %v4072, 8.507059e+37
  %v4074 = vand.u32 %v3076, 2147483648
  %v4075 = vor.u32 1.1754944e-38, %v4074
  %v4076 = vsel %vm4073, %v4075, %v4071
  %v4077 = vmul.f32 1.0, %v4076
  %v4078 = vrcp.pop %v3077
  %v4079 = vmul.f32 %v3077, %v4078
  %v4080 = vsub.f32 1.0, %v4079
  %v4081 = vmul.f32 %v4078, %v4080
  %v4082 = vadd.f32 %v4078, %v4081
  %vm4083 = vweird.f32 %v3077
  %vm4084 = vweird.f32 %v4078
  %vm4085 = vmor %vm4083, %vm4084
  %v4086 = vsel %vm4085, %v4078, %v4082
  %v4087 = vand.u32 2147483647, %v3077
  %vm4088 = vcmp.eq.f32.partialorder %v4087, 8.507059e+37
  %v4089 = vand.u32 %v3077, 2147483648
  %v4090 = vor.u32 1.1754944e-38, %v4089
  %v4091 = vsel %vm4088, %v4090, %v4086
  %v4092 = vmul.f32 1.0, %v4091
  %v4093 = vrcp.pop %v3078
  %v4094 = vmul.f32 %v3078, %v4093
  %v4095 = vsub.f32 1.0, %v4094
  %v4096 = vmul.f32 %v4093, %v4095
  %v4097 = vadd.f32 %v4093, %v4096
  %vm4098 = vweird.f32 %v3078
  %vm4099 = vweird.f32 %v4093
  %vm4100 = vmor %vm4098, %vm4099
  %v4101 = vsel %vm4100, %v4093, %v4097
  %v4102 = vand.u32 2147483647, %v3078
  %vm4103 = vcmp.eq.f32.partialorder %v4102, 8.507059e+37
  %v4104 = vand.u32 %v3078, 2147483648
  %v4105 = vor.u32 1.1754944e-38, %v4104
  %v4106 = vsel %vm4103, %v4105, %v4101
  %v4107 = vmul.f32 1.0, %v4106
  %v4108 = vrcp.pop %v3079
  %v4109 = vmul.f32 %v3079, %v4108
  %v4110 = vsub.f32 1.0, %v4109
  %v4111 = vmul.f32 %v4108, %v4110
  %v4112 = vadd.f32 %v4108, %v4111
  %vm4113 = vweird.f32 %v3079
  %vm4114 = vweird.f32 %v4108
  %vm4115 = vmor %vm4113, %vm4114
  %v4116 = vsel %vm4115, %v4108, %v4112
  %v4117 = vand.u32 2147483647, %v3079
  %vm4118 = vcmp.eq.f32.partialorder %v4117, 8.507059e+37
  %v4119 = vand.u32 %v3079, 2147483648
  %v4120 = vor.u32 1.1754944e-38, %v4119
  %v4121 = vsel %vm4118, %v4120, %v4116
  %v4122 = vmul.f32 1.0, %v4121
  %v4123 = vrcp.pop %v3080
  %v4124 = vmul.f32 %v3080, %v4123
  %v4125 = vsub.f32 1.0, %v4124
  %v4126 = vmul.f32 %v4123, %v4125
  %v4127 = vadd.f32 %v4123, %v4126
  %vm4128 = vweird.f32 %v3080
  %vm4129 = vweird.f32 %v4123
  %vm4130 = vmor %vm4128, %vm4129
  %v4131 = vsel %vm4130, %v4123, %v4127
  %v4132 = vand.u32 2147483647, %v3080
  %vm4133 = vcmp.eq.f32.partialorder %v4132, 8.507059e+37
  %v4134 = vand.u32 %v3080, 2147483648
  %v4135 = vor.u32 1.1754944e-38, %v4134
  %v4136 = vsel %vm4133, %v4135, %v4131
  %v4137 = vmul.f32 1.0, %v4136
  %v4138 = vrcp.pop %v3081
  %v4139 = vmul.f32 %v3081, %v4138
  %v4140 = vsub.f32 1.0, %v4139
  %v4141 = vmul.f32 %v4138, %v4140
  %v4142 = vadd.f32 %v4138, %v4141
  %vm4143 = vweird.f32 %v3081
  %vm4144 = vweird.f32 %v4138
  %vm4145 = vmor %vm4143, %vm4144
  %v4146 = vsel %vm4145, %v4138, %v4142
  %v4147 = vand.u32 2147483647, %v3081
  %vm4148 = vcmp.eq.f32.partialorder %v4147, 8.507059e+37
  %v4149 = vand.u32 %v3081, 2147483648
  %v4150 = vor.u32 1.1754944e-38, %v4149
  %v4151 = vsel %vm4148, %v4150, %v4146
  %v4152 = vmul.f32 1.0, %v4151
  %v4153 = vrcp.pop %v3082
  %v4154 = vmul.f32 %v3082, %v4153
  %v4155 = vsub.f32 1.0, %v4154
  %v4156 = vmul.f32 %v4153, %v4155
  %v4157 = vadd.f32 %v4153, %v4156
  %vm4158 = vweird.f32 %v3082
  %vm4159 = vweird.f32 %v4153
  %vm4160 = vmor %vm4158, %vm4159
  %v4161 = vsel %vm4160, %v4153, %v4157
  %v4162 = vand.u32 2147483647, %v3082
  %vm4163 = vcmp.eq.f32.partialorder %v4162, 8.507059e+37
  %v4164 = vand.u32 %v3082, 2147483648
  %v4165 = vor.u32 1.1754944e-38, %v4164
  %v4166 = vsel %vm4163, %v4165, %v4161
  %v4167 = vmul.f32 1.0, %v4166
  %v4168 = vrcp.pop %v3083
  %v4169 = vmul.f32 %v3083, %v4168
  %v4170 = vsub.f32 1.0, %v4169
  %v4171 = vmul.f32 %v4168, %v4170
  %v4172 = vadd.f32 %v4168, %v4171
  %vm4173 = vweird.f32 %v3083
  %vm4174 = vweird.f32 %v4168
  %vm4175 = vmor %vm4173, %vm4174
  %v4176 = vsel %vm4175, %v4168, %v4172
  %v4177 = vand.u32 2147483647, %v3083
  %vm4178 = vcmp.eq.f32.partialorder %v4177, 8.507059e+37
  %v4179 = vand.u32 %v3083, 2147483648
  %v4180 = vor.u32 1.1754944e-38, %v4179
  %v4181 = vsel %vm4178, %v4180, %v4176
  %v4182 = vmul.f32 1.0, %v4181
  %v4183 = vrcp.pop %v3084
  %v4184 = vmul.f32 %v3084, %v4183
  %v4185 = vsub.f32 1.0, %v4184
  %v4186 = vmul.f32 %v4183, %v4185
  %v4187 = vadd.f32 %v4183, %v4186
  %vm4188 = vweird.f32 %v3084
  %vm4189 = vweird.f32 %v4183
  %vm4190 = vmor %vm4188, %vm4189
  %v4191 = vsel %vm4190, %v4183, %v4187
  %v4192 = vand.u32 2147483647, %v3084
  %vm4193 = vcmp.eq.f32.partialorder %v4192, 8.507059e+37
  %v4194 = vand.u32 %v3084, 2147483648
  %v4195 = vor.u32 1.1754944e-38, %v4194
  %v4196 = vsel %vm4193, %v4195, %v4191
  %v4197 = vmul.f32 1.0, %v4196
  %v4198 = vrcp.pop %v3085
  %v4199 = vmul.f32 %v3085, %v4198
  %v4200 = vsub.f32 1.0, %v4199
  %v4201 = vmul.f32 %v4198, %v4200
  %v4202 = vadd.f32 %v4198, %v4201
  %vm4203 = vweird.f32 %v3085
  %vm4204 = vweird.f32 %v4198
  %vm4205 = vmor %vm4203, %vm4204
  %v4206 = vsel %vm4205, %v4198, %v4202
  %v4207 = vand.u32 2147483647, %v3085
  %vm4208 = vcmp.eq.f32.partialorder %v4207, 8.507059e+37
  %v4209 = vand.u32 %v3085, 2147483648
  %v4210 = vor.u32 1.1754944e-38, %v4209
  %v4211 = vsel %vm4208, %v4210, %v4206
  %v4212 = vmul.f32 1.0, %v4211
  %v4213 = vrcp.pop %v3086
  %v4214 = vmul.f32 %v3086, %v4213
  %v4215 = vsub.f32 1.0, %v4214
  %v4216 = vmul.f32 %v4213, %v4215
  %v4217 = vadd.f32 %v4213, %v4216
  %vm4218 = vweird.f32 %v3086
  %vm4219 = vweird.f32 %v4213
  %vm4220 = vmor %vm4218, %vm4219
  %v4221 = vsel %vm4220, %v4213, %v4217
  %v4222 = vand.u32 2147483647, %v3086
  %vm4223 = vcmp.eq.f32.partialorder %v4222, 8.507059e+37
  %v4224 = vand.u32 %v3086, 2147483648
  %v4225 = vor.u32 1.1754944e-38, %v4224
  %v4226 = vsel %vm4223, %v4225, %v4221
  %v4227 = vmul.f32 1.0, %v4226
  %v4228 = vrcp.pop %v3087
  %v4229 = vmul.f32 %v3087, %v4228
  %v4230 = vsub.f32 1.0, %v4229
  %v4231 = vmul.f32 %v4228, %v4230
  %v4232 = vadd.f32 %v4228, %v4231
  %vm4233 = vweird.f32 %v3087
  %vm4234 = vweird.f32 %v4228
  %vm4235 = vmor %vm4233, %vm4234
  %v4236 = vsel %vm4235, %v4228, %v4232
  %v4237 = vand.u32 2147483647, %v3087
  %vm4238 = vcmp.eq.f32.partialorder %v4237, 8.507059e+37
  %v4239 = vand.u32 %v3087, 2147483648
  %v4240 = vor.u32 1.1754944e-38, %v4239
  %v4241 = vsel %vm4238, %v4240, %v4236
  %v4242 = vmul.f32 1.0, %v4241
  %4320 = vrot.lane.b32.xlu0 %v3102, 96
  %v4321 = vpop.permute.xlu0 %4320
  %4322 = vrot.lane.b32.xlu0 %v3117, 96
  %v4323 = vpop.permute.xlu0 %4322
  %4324 = vrot.lane.b32.xlu0 %v3132, 96
  %v4325 = vpop.permute.xlu0 %4324
  %4326 = vrot.lane.b32.xlu0 %v3147, 96
  %v4327 = vpop.permute.xlu0 %4326
  %4328 = vrot.lane.b32.xlu0 %v3162, 96
  %v4329 = vpop.permute.xlu0 %4328
  %4330 = vrot.lane.b32.xlu0 %v3177, 96
  %v4331 = vpop.permute.xlu0 %4330
  %4332 = vrot.lane.b32.xlu0 %v3192, 96
  %v4333 = vpop.permute.xlu0 %4332
  %4334 = vrot.lane.b32.xlu0 %v3207, 96
  %v4335 = vpop.permute.xlu0 %4334
  %4336 = vrot.lane.b32.xlu0 %v3222, 96
  %v4337 = vpop.permute.xlu0 %4336
  %4338 = vrot.lane.b32.xlu0 %v3237, 96
  %v4339 = vpop.permute.xlu0 %4338
  %4340 = vrot.lane.b32.xlu0 %v3252, 96
  %v4341 = vpop.permute.xlu0 %4340
  %4342 = vrot.lane.b32.xlu0 %v3267, 96
  %v4343 = vpop.permute.xlu0 %4342
  %4344 = vrot.lane.b32.xlu0 %v3282, 96
  %v4345 = vpop.permute.xlu0 %4344
  %4346 = vrot.lane.b32.xlu0 %v3297, 96
  %v4347 = vpop.permute.xlu0 %4346
  %4348 = vrot.lane.b32.xlu0 %v3312, 96
  %v4349 = vpop.permute.xlu0 %4348
  %4350 = vrot.lane.b32.xlu0 %v3327, 96
  %v4351 = vpop.permute.xlu0 %4350
  %4352 = vrot.lane.b32.xlu0 %v3342, 96
  %v4353 = vpop.permute.xlu0 %4352
  %4354 = vrot.lane.b32.xlu0 %v3357, 96
  %v4355 = vpop.permute.xlu0 %4354
  %4356 = vrot.lane.b32.xlu0 %v3372, 96
  %v4357 = vpop.permute.xlu0 %4356
  %4358 = vrot.lane.b32.xlu0 %v3387, 96
  %v4359 = vpop.permute.xlu0 %4358
  %4360 = vrot.lane.b32.xlu0 %v3402, 96
  %v4361 = vpop.permute.xlu0 %4360
  %4362 = vrot.lane.b32.xlu0 %v3417, 96
  %v4363 = vpop.permute.xlu0 %4362
  %4364 = vrot.lane.b32.xlu0 %v3432, 96
  %v4365 = vpop.permute.xlu0 %4364
  %4366 = vrot.lane.b32.xlu0 %v3447, 96
  %v4367 = vpop.permute.xlu0 %4366
  %4368 = vrot.lane.b32.xlu0 %v3462, 96
  %v4369 = vpop.permute.xlu0 %4368
  %4370 = vrot.lane.b32.xlu0 %v3477, 96
  %v4371 = vpop.permute.xlu0 %4370
  %4372 = vrot.lane.b32.xlu0 %v3492, 96
  %v4373 = vpop.permute.xlu0 %4372
  %4374 = vrot.lane.b32.xlu0 %v3507, 96
  %v4375 = vpop.permute.xlu0 %4374
  %4376 = vrot.lane.b32.xlu0 %v3522, 96
  %v4377 = vpop.permute.xlu0 %4376
  %4378 = vrot.lane.b32.xlu0 %v3537, 96
  %v4379 = vpop.permute.xlu0 %4378
  %4380 = vrot.lane.b32.xlu0 %v3552, 96
  %v4381 = vpop.permute.xlu0 %4380
  %4382 = vrot.lane.b32.xlu0 %v3567, 96
  %v4383 = vpop.permute.xlu0 %4382
  %4384 = vrot.lane.b32.xlu0 %v3582, 96
  %v4385 = vpop.permute.xlu0 %4384
  %4386 = vrot.lane.b32.xlu0 %v3597, 96
  %v4387 = vpop.permute.xlu0 %4386
  %4388 = vrot.lane.b32.xlu0 %v3612, 96
  %v4389 = vpop.permute.xlu0 %4388
  %4390 = vrot.lane.b32.xlu0 %v3627, 96
  %v4391 = vpop.permute.xlu0 %4390
  %4392 = vrot.lane.b32.xlu0 %v3642, 96
  %v4393 = vpop.permute.xlu0 %4392
  %4394 = vrot.lane.b32.xlu0 %v3657, 96
  %v4395 = vpop.permute.xlu0 %4394
  %4396 = vrot.lane.b32.xlu0 %v3672, 96
  %v4397 = vpop.permute.xlu0 %4396
  %4398 = vrot.lane.b32.xlu0 %v3687, 96
  %v4399 = vpop.permute.xlu0 %4398
  %4400 = vrot.lane.b32.xlu0 %v3702, 96
  %v4401 = vpop.permute.xlu0 %4400
  %4402 = vrot.lane.b32.xlu0 %v3717, 96
  %v4403 = vpop.permute.xlu0 %4402
  %4404 = vrot.lane.b32.xlu0 %v3732, 96
  %v4405 = vpop.permute.xlu0 %4404
  %4406 = vrot.lane.b32.xlu0 %v3747, 96
  %v4407 = vpop.permute.xlu0 %4406
  %4408 = vrot.lane.b32.xlu0 %v3762, 96
  %v4409 = vpop.permute.xlu0 %4408
  %4410 = vrot.lane.b32.xlu0 %v3777, 96
  %v4411 = vpop.permute.xlu0 %4410
  %4412 = vrot.lane.b32.xlu0 %v3792, 96
  %v4413 = vpop.permute.xlu0 %4412
  %4414 = vrot.lane.b32.xlu0 %v3807, 96
  %v4415 = vpop.permute.xlu0 %4414
  %4416 = vrot.lane.b32.xlu0 %v3822, 96
  %v4417 = vpop.permute.xlu0 %4416
  %4418 = vrot.lane.b32.xlu0 %v3837, 96
  %v4419 = vpop.permute.xlu0 %4418
  %4420 = vrot.lane.b32.xlu0 %v3852, 96
  %v4421 = vpop.permute.xlu0 %4420
  %4422 = vrot.lane.b32.xlu0 %v3867, 96
  %v4423 = vpop.permute.xlu0 %4422
  %4424 = vrot.lane.b32.xlu0 %v3882, 96
  %v4425 = vpop.permute.xlu0 %4424
  %4426 = vrot.lane.b32.xlu0 %v3897, 96
  %v4427 = vpop.permute.xlu0 %4426
  %4428 = vrot.lane.b32.xlu0 %v3912, 96
  %v4429 = vpop.permute.xlu0 %4428
  %4430 = vrot.lane.b32.xlu0 %v3927, 96
  %v4431 = vpop.permute.xlu0 %4430
  %4432 = vrot.lane.b32.xlu0 %v3942, 96
  %v4433 = vpop.permute.xlu0 %4432
  %4434 = vrot.lane.b32.xlu0 %v3957, 96
  %v4435 = vpop.permute.xlu0 %4434
  %4436 = vrot.lane.b32.xlu0 %v3972, 96
  %v4437 = vpop.permute.xlu0 %4436
  %4438 = vrot.lane.b32.xlu0 %v3987, 96
  %v4439 = vpop.permute.xlu0 %4438
  %4440 = vrot.lane.b32.xlu0 %v4002, 96
  %v4441 = vpop.permute.xlu0 %4440
  %4442 = vrot.lane.b32.xlu0 %v4017, 96
  %v4443 = vpop.permute.xlu0 %4442
  %4444 = vrot.lane.b32.xlu0 %v4032, 96
  %v4445 = vpop.permute.xlu0 %4444
  %4446 = vrot.lane.b32.xlu0 %v4047, 96
  %v4447 = vpop.permute.xlu0 %4446
  %4448 = vrot.lane.b32.xlu0 %v4062, 96
  %v4449 = vpop.permute.xlu0 %4448
  %4450 = vrot.lane.b32.xlu0 %v4077, 96
  %v4451 = vpop.permute.xlu0 %4450
  %4452 = vrot.lane.b32.xlu0 %v4092, 96
  %v4453 = vpop.permute.xlu0 %4452
  %4454 = vrot.lane.b32.xlu0 %v4107, 96
  %v4455 = vpop.permute.xlu0 %4454
  %4456 = vrot.lane.b32.xlu0 %v4122, 96
  %v4457 = vpop.permute.xlu0 %4456
  %4458 = vrot.lane.b32.xlu0 %v4137, 96
  %v4459 = vpop.permute.xlu0 %4458
  %4460 = vrot.lane.b32.xlu0 %v4152, 96
  %v4461 = vpop.permute.xlu0 %4460
  %4462 = vrot.lane.b32.xlu0 %v4167, 96
  %v4463 = vpop.permute.xlu0 %4462
  %4464 = vrot.lane.b32.xlu0 %v4182, 96
  %v4465 = vpop.permute.xlu0 %4464
  %4466 = vrot.lane.b32.xlu0 %v4197, 96
  %v4467 = vpop.permute.xlu0 %4466
  %4468 = vrot.lane.b32.xlu0 %v4212, 96
  %v4469 = vpop.permute.xlu0 %4468
  %4470 = vrot.lane.b32.xlu0 %v4227, 96
  %v4471 = vpop.permute.xlu0 %4470
  %4472 = vrot.lane.b32.xlu0 %v4242, 96
  %v4473 = vpop.permute.xlu0 %4472
  %v4551 = vmul.f32 %v2703, %v4321
  %v4552 = vmul.f32 %v2704, %v4323
  %v4553 = vmul.f32 %v2705, %v4325
  %v4554 = vmul.f32 %v2706, %v4327
  %v4555 = vmul.f32 %v2707, %v4329
  %v4556 = vmul.f32 %v2708, %v4331
  %v4557 = vmul.f32 %v2709, %v4333
  %v4558 = vmul.f32 %v2710, %v4335
  %v4559 = vmul.f32 %v2711, %v4337
  %v4560 = vmul.f32 %v2712, %v4339
  %v4561 = vmul.f32 %v2713, %v4341
  %v4562 = vmul.f32 %v2714, %v4343
  %v4563 = vmul.f32 %v2715, %v4345
  %v4564 = vmul.f32 %v2716, %v4347
  %v4565 = vmul.f32 %v2717, %v4349
  %v4566 = vmul.f32 %v2718, %v4351
  %v4567 = vmul.f32 %v2719, %v4353
  %v4568 = vmul.f32 %v2720, %v4355
  %v4569 = vmul.f32 %v2721, %v4357
  %v4570 = vmul.f32 %v2722, %v4359
  %v4571 = vmul.f32 %v2723, %v4361
  %v4572 = vmul.f32 %v2724, %v4363
  %v4573 = vmul.f32 %v2725, %v4365
  %v4574 = vmul.f32 %v2726, %v4367
  %v4575 = vmul.f32 %v2727, %v4369
  %v4576 = vmul.f32 %v2728, %v4371
  %v4577 = vmul.f32 %v2729, %v4373
  %v4578 = vmul.f32 %v2730, %v4375
  %v4579 = vmul.f32 %v2731, %v4377
  %v4580 = vmul.f32 %v2732, %v4379
  %v4581 = vmul.f32 %v2733, %v4381
  %v4582 = vmul.f32 %v2734, %v4383
  %v4583 = vmul.f32 %v2735, %v4385
  %v4584 = vmul.f32 %v2736, %v4387
  %v4585 = vmul.f32 %v2737, %v4389
  %v4586 = vmul.f32 %v2738, %v4391
  %v4587 = vmul.f32 %v2739, %v4393
  %v4588 = vmul.f32 %v2740, %v4395
  %v4589 = vmul.f32 %v2741, %v4397
  %v4590 = vmul.f32 %v2742, %v4399
  %v4591 = vmul.f32 %v2743, %v4401
  %v4592 = vmul.f32 %v2744, %v4403
  %v4593 = vmul.f32 %v2745, %v4405
  %v4594 = vmul.f32 %v2746, %v4407
  %v4595 = vmul.f32 %v2747, %v4409
  %v4596 = vmul.f32 %v2748, %v4411
  %v4597 = vmul.f32 %v2749, %v4413
  %v4598 = vmul.f32 %v2750, %v4415
  %v4599 = vmul.f32 %v2751, %v4417
  %v4600 = vmul.f32 %v2752, %v4419
  %v4601 = vmul.f32 %v2753, %v4421
  %v4602 = vmul.f32 %v2754, %v4423
  %v4603 = vmul.f32 %v2755, %v4425
  %v4604 = vmul.f32 %v2756, %v4427
  %v4605 = vmul.f32 %v2757, %v4429
  %v4606 = vmul.f32 %v2758, %v4431
  %v4607 = vmul.f32 %v2759, %v4433
  %v4608 = vmul.f32 %v2760, %v4435
  %v4609 = vmul.f32 %v2761, %v4437
  %v4610 = vmul.f32 %v2762, %v4439
  %v4611 = vmul.f32 %v2763, %v4441
  %v4612 = vmul.f32 %v2764, %v4443
  %v4613 = vmul.f32 %v2765, %v4445
  %v4614 = vmul.f32 %v2766, %v4447
  %v4615 = vmul.f32 %v2767, %v4449
  %v4616 = vmul.f32 %v2768, %v4451
  %v4617 = vmul.f32 %v2769, %v4453
  %v4618 = vmul.f32 %v2770, %v4455
  %v4619 = vmul.f32 %v2771, %v4457
  %v4620 = vmul.f32 %v2772, %v4459
  %v4621 = vmul.f32 %v2773, %v4461
  %v4622 = vmul.f32 %v2774, %v4463
  %v4623 = vmul.f32 %v2775, %v4465
  %v4624 = vmul.f32 %v2776, %v4467
  %v4625 = vmul.f32 %v2777, %v4469
  %v4626 = vmul.f32 %v2778, %v4471
  %v4627 = vmul.f32 %v2779, %v4473
  %v4628 = vld [vmem:[%s5] sm:$0x1]
  %v4630 = vsel %vm234, %v4628, 0
  %v4633 = vsel %vm234, %v4551, 0
  %v4636 = vsel %vm234, %v4552, 0
  %v4639 = vsel %vm234, %v4553, 0
  %v4642 = vsel %vm234, %v4554, 0
  %v4645 = vsel %vm234, %v4555, 0
  %v4648 = vsel %vm234, %v4556, 0
  %v4651 = vsel %vm234, %v4557, 0
  %v4654 = vsel %vm234, %v4558, 0
  %v4657 = vsel %vm234, %v4559, 0
  %v4660 = vsel %vm234, %v4560, 0
  %v4663 = vsel %vm234, %v4561, 0
  %v4666 = vsel %vm234, %v4562, 0
  %v4669 = vsel %vm234, %v4563, 0
  %v4672 = vsel %vm234, %v4564, 0
  %v4675 = vsel %vm234, %v4565, 0
  %v4678 = vsel %vm234, %v4566, 0
  %v4681 = vsel %vm234, %v4567, 0
  %v4684 = vsel %vm234, %v4568, 0
  %v4687 = vsel %vm234, %v4569, 0
  %v4690 = vsel %vm234, %v4570, 0
  %v4693 = vsel %vm234, %v4571, 0
  %v4696 = vsel %vm234, %v4572, 0
  %v4699 = vsel %vm234, %v4573, 0
  %v4702 = vsel %vm234, %v4574, 0
  %v4705 = vsel %vm234, %v4575, 0
  %v4708 = vsel %vm234, %v4576, 0
  %v4711 = vsel %vm234, %v4577, 0
  %v4714 = vsel %vm234, %v4578, 0
  %v4717 = vsel %vm234, %v4579, 0
  %v4720 = vsel %vm234, %v4580, 0
  %v4723 = vsel %vm234, %v4581, 0
  %v4726 = vsel %vm234, %v4582, 0
  %v4729 = vsel %vm234, %v4583, 0
  %v4732 = vsel %vm234, %v4584, 0
  %v4735 = vsel %vm234, %v4585, 0
  %v4738 = vsel %vm234, %v4586, 0
  %v4741 = vsel %vm234, %v4587, 0
  %v4744 = vsel %vm234, %v4588, 0
  %v4747 = vsel %vm234, %v4589, 0
  %v4750 = vsel %vm234, %v4590, 0
  %v4753 = vsel %vm234, %v4591, 0
  %v4756 = vsel %vm234, %v4592, 0
  %v4759 = vsel %vm234, %v4593, 0
  %v4762 = vsel %vm234, %v4594, 0
  %v4765 = vsel %vm234, %v4595, 0
  %v4768 = vsel %vm234, %v4596, 0
  %v4771 = vsel %vm234, %v4597, 0
  %v4774 = vsel %vm234, %v4598, 0
  %v4777 = vsel %vm234, %v4599, 0
  %v4780 = vsel %vm234, %v4600, 0
  %v4783 = vsel %vm234, %v4601, 0
  %v4786 = vsel %vm234, %v4602, 0
  %v4789 = vsel %vm234, %v4603, 0
  %v4792 = vsel %vm234, %v4604, 0
  %v4795 = vsel %vm234, %v4605, 0
  %v4798 = vsel %vm234, %v4606, 0
  %v4801 = vsel %vm234, %v4607, 0
  %v4804 = vsel %vm234, %v4608, 0
  %v4807 = vsel %vm234, %v4609, 0
  %v4810 = vsel %vm234, %v4610, 0
  %v4813 = vsel %vm234, %v4611, 0
  %v4816 = vsel %vm234, %v4612, 0
  %v4819 = vsel %vm234, %v4613, 0
  %v4822 = vsel %vm234, %v4614, 0
  %v4825 = vsel %vm234, %v4615, 0
  %v4828 = vsel %vm234, %v4616, 0
  %v4831 = vsel %vm234, %v4617, 0
  %v4834 = vsel %vm234, %v4618, 0
  %v4837 = vsel %vm234, %v4619, 0
  %v4840 = vsel %vm234, %v4620, 0
  %v4843 = vsel %vm234, %v4621, 0
  %v4846 = vsel %vm234, %v4622, 0
  %v4849 = vsel %vm234, %v4623, 0
  %v4852 = vsel %vm234, %v4624, 0
  %v4855 = vsel %vm234, %v4625, 0
  %v4858 = vsel %vm234, %v4626, 0
  %v4861 = vsel %vm234, %v4627, 0
  %4863 = vmatpush.xpose.msra.mxu0 %v4678
  %4864 = vmatpush.xpose.msra.mxu0 %v4675
  %4865 = vmatpush.xpose.msra.mxu0 %v4672
  %4866 = vmatpush.xpose.msra.mxu0 %v4669
  %4867 = vmatpush.xpose.msra.mxu0 %v4666
  %4868 = vmatpush.xpose.msra.mxu0 %v4663
  %4869 = vmatpush.xpose.msra.mxu0 %v4660
  %4870 = vmatpush.xpose.msra.mxu0 %v4657
  %4871 = vmatpush.xpose.msra.mxu0 %v4654
  %4872 = vmatpush.xpose.msra.mxu0 %v4651
  %4873 = vmatpush.xpose.msra.mxu0 %v4648
  %4874 = vmatpush.xpose.msra.mxu0 %v4645
  %4875 = vmatpush.xpose.msra.mxu0 %v4642
  %4876 = vmatpush.xpose.msra.mxu0 %v4639
  %4877 = vmatpush.xpose.msra.mxu0 %v4636
  %4878 = vmatpush.xpose.msra.mxu0 %v4633
  %4879 = vmatmul.f32.gmra.mxu0 %v4630
  %v4880 = vpop.f32.mrf.mxu0
  %v4881 = vadd.f32 0.0, %v4880
  %4882 = vdwg.mxu0
  %4883 = vmatpush.xpose.msra.mxu0 %v4726
  %4884 = vmatpush.xpose.msra.mxu0 %v4723
  %4885 = vmatpush.xpose.msra.mxu0 %v4720
  %4886 = vmatpush.xpose.msra.mxu0 %v4717
  %4887 = vmatpush.xpose.msra.mxu0 %v4714
  %4888 = vmatpush.xpose.msra.mxu0 %v4711
  %4889 = vmatpush.xpose.msra.mxu0 %v4708
  %4890 = vmatpush.xpose.msra.mxu0 %v4705
  %4891 = vmatpush.xpose.msra.mxu0 %v4702
  %4892 = vmatpush.xpose.msra.mxu0 %v4699
  %4893 = vmatpush.xpose.msra.mxu0 %v4696
  %4894 = vmatpush.xpose.msra.mxu0 %v4693
  %4895 = vmatpush.xpose.msra.mxu0 %v4690
  %4896 = vmatpush.xpose.msra.mxu0 %v4687
  %4897 = vmatpush.xpose.msra.mxu0 %v4684
  %4898 = vmatpush.xpose.msra.mxu0 %v4681
  %4899 = vmatmul.f32.gmra.mxu0 %v4630
  %v4900 = vpop.f32.mrf.mxu0
  %v4901 = vadd.f32 0.0, %v4900
  %4902 = vdwg.mxu0
  %4903 = vmatpush.xpose.msra.mxu0 %v4774
  %4904 = vmatpush.xpose.msra.mxu0 %v4771
  %4905 = vmatpush.xpose.msra.mxu0 %v4768
  %4906 = vmatpush.xpose.msra.mxu0 %v4765
  %4907 = vmatpush.xpose.msra.mxu0 %v4762
  %4908 = vmatpush.xpose.msra.mxu0 %v4759
  %4909 = vmatpush.xpose.msra.mxu0 %v4756
  %4910 = vmatpush.xpose.msra.mxu0 %v4753
  %4911 = vmatpush.xpose.msra.mxu0 %v4750
  %4912 = vmatpush.xpose.msra.mxu0 %v4747
  %4913 = vmatpush.xpose.msra.mxu0 %v4744
  %4914 = vmatpush.xpose.msra.mxu0 %v4741
  %4915 = vmatpush.xpose.msra.mxu0 %v4738
  %4916 = vmatpush.xpose.msra.mxu0 %v4735
  %4917 = vmatpush.xpose.msra.mxu0 %v4732
  %4918 = vmatpush.xpose.msra.mxu0 %v4729
  %4919 = vmatmul.f32.gmra.mxu0 %v4630
  %v4920 = vpop.f32.mrf.mxu0
  %v4921 = vadd.f32 0.0, %v4920
  %4922 = vdwg.mxu0
  %4923 = vmatpush.xpose.msra.mxu0 %v4822
  %4924 = vmatpush.xpose.msra.mxu0 %v4819
  %4925 = vmatpush.xpose.msra.mxu0 %v4816
  %4926 = vmatpush.xpose.msra.mxu0 %v4813
  %4927 = vmatpush.xpose.msra.mxu0 %v4810
  %4928 = vmatpush.xpose.msra.mxu0 %v4807
  %4929 = vmatpush.xpose.msra.mxu0 %v4804
  %4930 = vmatpush.xpose.msra.mxu0 %v4801
  %4931 = vmatpush.xpose.msra.mxu0 %v4798
  %4932 = vmatpush.xpose.msra.mxu0 %v4795
  %4933 = vmatpush.xpose.msra.mxu0 %v4792
  %4934 = vmatpush.xpose.msra.mxu0 %v4789
  %4935 = vmatpush.xpose.msra.mxu0 %v4786
  %4936 = vmatpush.xpose.msra.mxu0 %v4783
  %4937 = vmatpush.xpose.msra.mxu0 %v4780
  %4938 = vmatpush.xpose.msra.mxu0 %v4777
  %4939 = vmatmul.f32.gmra.mxu0 %v4630
  %v4940 = vpop.f32.mrf.mxu0
  %v4941 = vadd.f32 0.0, %v4940
  %4942 = vdwg.mxu0
  %4943 = vmatpush.xpose.msra.mxu0 0.0
  %4944 = vmatpush.xpose.msra.mxu0 0.0
  %4945 = vmatpush.xpose.msra.mxu0 0.0
  %4946 = vmatpush.xpose.msra.mxu0 %v4861
  %4947 = vmatpush.xpose.msra.mxu0 %v4858
  %4948 = vmatpush.xpose.msra.mxu0 %v4855
  %4949 = vmatpush.xpose.msra.mxu0 %v4852
  %4950 = vmatpush.xpose.msra.mxu0 %v4849
  %4951 = vmatpush.xpose.msra.mxu0 %v4846
  %4952 = vmatpush.xpose.msra.mxu0 %v4843
  %4953 = vmatpush.xpose.msra.mxu0 %v4840
  %4954 = vmatpush.xpose.msra.mxu0 %v4837
  %4955 = vmatpush.xpose.msra.mxu0 %v4834
  %4956 = vmatpush.xpose.msra.mxu0 %v4831
  %4957 = vmatpush.xpose.msra.mxu0 %v4828
  %4958 = vmatpush.xpose.msra.mxu0 %v4825
  %4959 = vmatmul.f32.gmra.mxu0 %v4630
  %v4960 = vpop.f32.mrf.mxu0
  %v4961 = vadd.f32 0.0, %v4960
  %4962 = vdwg.mxu0
  %v4963 = vadd.s32 %v330, 128
  %v4964 = vadd.s32 %v330, 256
  %v4965 = vadd.s32 %v330, 384
  %v4966 = vadd.s32 %v330, 512
  %v4967 = vmul.u32 %v252, 77
  %vm4968 = vcmp.ge.s32.totalorder %v330, %v4967
  %vm4969 = vcmp.ge.s32.totalorder %v4963, %v4967
  %vm4970 = vcmp.ge.s32.totalorder %v4964, %v4967
  %vm4971 = vcmp.ge.s32.totalorder %v4965, %v4967
  %vm4972 = vcmp.ge.s32.totalorder %v4966, %v4967
  %v4973 = vadd.s32 %v4967, 77
  %vm4974 = vcmp.lt.s32.totalorder %v330, %v4973
  %vm4975 = vcmp.lt.s32.totalorder %v4963, %v4973
  %vm4976 = vcmp.lt.s32.totalorder %v4964, %v4973
  %vm4977 = vcmp.lt.s32.totalorder %v4965, %v4973
  %vm4978 = vcmp.lt.s32.totalorder %v4966, %v4973
  %vm4979 = vmand %vm4968, %vm4974
  %vm4980 = vmand %vm4969, %vm4975
  %vm4981 = vmand %vm4970, %vm4976
  %vm4982 = vmand %vm4971, %vm4977
  %vm4983 = vmand %vm4972, %vm4978
  %v4984 = vperm.slane %v4881, 0
  %v4985 = vperm.slane %v4901, 0
  %v4986 = vperm.slane %v4921, 0
  %v4987 = vperm.slane %v4941, 0
  %v4988 = vperm.slane %v4961, 0
  %v4989 = vsel %vm4979, %v4984, -1e+30
  %v4990 = vsel %vm4980, %v4985, -1e+30
  %v4991 = vsel %vm4981, %v4986, -1e+30
  %v4992 = vsel %vm4982, %v4987, -1e+30
  %v4993 = vsel %vm4983, %v4988, -1e+30
  %vm4994 = vcmask 850944
  %v4995 = vsel %vm4994, %v4993, -inf
  %v4996 = vmax.f32 %v4989, %v4995
  %v4997 = vmax.f32 %v4996, %v4990
  %v4998 = vmax.f32 %v4991, %v4992
  %v4999 = vmax.f32 %v4997, %v4998
  %5000 = vmax.xlane.f32.xlu0 %v4999
  %v5001 = vpop.xlane.xlu0 %5000
  %v5002 = vsub.f32 %v4989, %v5001
  %v5003 = vsub.f32 %v4990, %v5001
  %v5004 = vsub.f32 %v4991, %v5001
  %v5005 = vsub.f32 %v4992, %v5001
  %v5006 = vsub.f32 %v4993, %v5001
  %v5007 = vmul.f32 %v5002, 1.442695
  %v5008 = vpow.pop %v5007
  %v5009 = vmul.f32 %v5003, 1.442695
  %v5010 = vpow.pop %v5009
  %v5011 = vmul.f32 %v5004, 1.442695
  %v5012 = vpow.pop %v5011
  %v5013 = vmul.f32 %v5005, 1.442695
  %v5014 = vpow.pop %v5013
  %v5015 = vmul.f32 %v5006, 1.442695
  %v5016 = vpow.pop %v5015
  %v5017 = vadd.f32 %v5008, %v5010
  %v5018 = vadd.f32 %v5017, %v5012
  %v5019 = vadd.f32 %v5018, %v5014
  %v5020 = vsel %vm4994, %v5016, 0.0
  %v5021 = vadd.f32 %v5019, %v5020
  %5022 = vadd.xlane.f32.xlu0 %v5021
  %v5023 = vpop.xlane.xlu0 %5022
  %v5024 = vrcp.pop %v5023
  %v5025 = vmul.f32 %v5023, %v5024
  %v5026 = vsub.f32 1.0, %v5025
  %v5027 = vmul.f32 %v5024, %v5026
  %v5028 = vadd.f32 %v5024, %v5027
  %vm5029 = vweird.f32 %v5023
  %vm5030 = vweird.f32 %v5024
  %vm5031 = vmor %vm5029, %vm5030
  %v5032 = vsel %vm5031, %v5024, %v5028
  %v5033 = vand.u32 2147483647, %v5023
  %vm5034 = vcmp.eq.f32.partialorder %v5033, 8.507059e+37
  %v5035 = vand.u32 %v5023, 2147483648
  %v5036 = vor.u32 1.1754944e-38, %v5035
  %v5037 = vsel %vm5034, %v5036, %v5032
  %v5038 = vmul.f32 %v5008, %v5037
  %v5039 = vmul.f32 %v5010, %v5037
  %v5040 = vmul.f32 %v5012, %v5037
  %v5041 = vmul.f32 %v5014, %v5037
  %v5042 = vmul.f32 %v5016, %v5037
  %v5043 = vadd.f32 %v5038, %v5039
  %v5044 = vadd.f32 %v5043, %v5040
  %v5045 = vadd.f32 %v5044, %v5041
  %v5046 = vsel %vm4994, %v5042, 0.0
  %v5047 = vadd.f32 %v5045, %v5046
  %5048 = vadd.xlane.f32.xlu0 %v5047
  %v5049 = vpop.xlane.xlu0 %5048
  %v5050 = vmul.f32 %v5049, %v216
  %5051 = vst.msk [vmem:[%s6] sm:$0xff] %vm234, %v5050
  // Predicated region
  $region26: #{question_attention.1} parent=0 // pred_check
    _
  $region27: #{question_attention.1} parent=0 // pred_check_branch
    %5053 = sbr.rel (0) target = $region29
  $region28: #{question_attention.1} parent=0 // pred_region
    _
  $region29: #{question_attention.1} parent=0 // pred_fallthru
    _
  // Predicated region
  $region30: #{question_attention.1} parent=0 // pred_check
    _
  $region31: #{question_attention.1} parent=0 // pred_check_branch
    %5055 = sbr.rel (0) target = $region33
  $region32: #{question_attention.1} parent=0 // pred_region
    _
  $region33: #{question_attention.1} parent=0 // pred_fallthru
    _

</llo_original>
